<compile_context>
chip_gen: v7x
topology: tpu7x:2x2x1
jax: 0.10.0
libtpu: 0.0.40
codegen_flags: <defaults>
</compile_context>

<pallas_src>
import functools
import math

import jax
import jax.numpy as jnp
from jax import lax
from jax.experimental import pallas as pl
from jax.experimental.pallas import tpu as pltpu


def _softmax_rows(s):
    """Row-wise softmax over the last axis in f32 (exact EUP reciprocal)."""
    s = s - jnp.max(s, axis=-1, keepdims=True)
    e = jnp.exp(s)
    return e * pl.reciprocal(jnp.sum(e, axis=-1, keepdims=True), approx=False)


def _sum_all(x):
    """Full reduction of a 2-D tile to a (1, 1) scalar (lane then sublane)."""
    return jnp.sum(jnp.sum(x, axis=-1, keepdims=True), axis=0, keepdims=True)


def _ssa_kernel(x_ref, wqkv_ref, bqkv_ref, wt_ref, bt_ref, o_ref,
                qkv_s, xhat_s, a_s, tqk_s, *, t, hw, c, scale):
    # x_ref block: (1, t, c, hw) -- all t frames of one video in native layout.
    # t is tiny and static, so the frame loops are Python-unrolled
    # (== fori_loop(unroll=True)); each iteration reads its operands
    # just-in-time from VMEM scratch and writes its result straight back, so
    # nothing of consequence stays live across iterations.
    f32 = jnp.float32
    bf16 = jnp.bfloat16

    # ---- per-frame fused QKV (1x1 conv) + pixel & channel attention -------- #
    for f in range(t):
        x_f = x_ref[0, f].astype(bf16)                                   # (c, hw)
        qkv_f = jnp.dot(wqkv_ref[...], x_f, preferred_element_type=f32)  # (3c, hw)
        qkv_f = qkv_f + bqkv_ref[...]
        qkv_s[f] = qkv_f.astype(bf16)                                    # stage in VMEM

        # Pixel-major Q for the pixel-pixel Gram: one small f32 XLU transpose,
        # so every matmul below is a plain NN / NT bf16 MXU op.
        q_pm = qkv_f[0:c, :].T.astype(bf16)                              # (hw, c)
        k = qkv_s[f, c:2 * c]                                            # (c, hw) bf16
        v = qkv_s[f, 2 * c:3 * c]                                        # (c, hw) bf16

        # pixel attention: softmax_j((q_i . k_j) * c^-0.5) @ v      (transposed)
        pd = jnp.dot(q_pm, k, preferred_element_type=f32) * scale        # (hw, hw)
        p = _softmax_rows(pd).astype(bf16)
        p_out = lax.dot_general(v, p, (((1,), (1,)), ((), ())),
                                preferred_element_type=f32)              # (c, hw)

        # channel attention: A = softmax_k((q^T k) * c^-0.5); out^T = A @ v^T
        q = qkv_s[f, 0:c]                                                # (c, hw) bf16
        cd = lax.dot_general(q, k, (((1,), (1,)), ((), ())),
                             preferred_element_type=f32) * scale         # (c, c)
        ca = _softmax_rows(cd).astype(bf16)
        c_out = jnp.dot(ca, v, preferred_element_type=f32)               # (c, hw)

        # x_hat, frames packed along lanes -> (c, t*hw) lane-dense slab
        xhat_s[:, f * hw:(f + 1) * hw] = (p_out + c_out).astype(bf16)

    # ---- temporal Conv3d (kernel (3,1,1), pad (1,0,0)) ---------------------- #
    # All three temporal taps are fused into one (6c, c) weight; the matmul over
    # the lane-dense x_hat slab is split into two row chunks only to bound vreg
    # pressure of the f32 result.
    xh = xhat_s[...]                                                     # (c, t*hw)
    half = 3 * c
    for r in range(2):
        a_s[r * half:(r + 1) * half, :] = jnp.dot(
            wt_ref[r * half:(r + 1) * half], xh, preferred_element_type=f32)
    # Bias hoisted out of the per-frame mixing: one slab-wide add on the
    # centre-tap rows (that tap contributes exactly once per output frame).
    a_s[2 * c:4 * c, :] = a_s[2 * c:4 * c, :] + bt_ref[...]

    # shift-add of the tap results along the temporal axis -> tq/tk per frame
    for f in range(t):
        acc = a_s[2 * c:4 * c, f * hw:(f + 1) * hw]          # W[kt=1] @ xhat[f] + b
        if f > 0:
            acc = acc + a_s[0:2 * c, (f - 1) * hw:f * hw]    # W[kt=0] @ xhat[f-1]
        if f + 1 < t:
            acc = acc + a_s[4 * c:6 * c, (f + 1) * hw:(f + 2) * hw]  # W[kt=2] @ xhat[f+1]
        tqk_s[f] = acc                                                   # (2c, hw)

    # ---- temporal attention over the t frames (reference applies no scale) -- #
    # t*t <= 16 scalar logits; the XLU reductions and scalar-scaled accumulation
    # are cheap next to the matmuls above, so this stays in scalar form rather
    # than a relayout-heavy matmul formulation.
    for i in range(t):
        tq_i = tqk_s[i, 0:c]                                             # (c, hw) f32
        logits = [_sum_all(tq_i * tqk_s[j, c:2 * c]) for j in range(t)]  # (1,1) each
        m = logits[0]
        for j in range(1, t):
            m = jnp.maximum(m, logits[j])
        exps = [jnp.exp(l - m) for l in logits]
        denom = exps[0]
        for j in range(1, t):
            denom = denom + exps[j]
        inv = pl.reciprocal(denom, approx=False)                         # (1, 1)
        out_i = (exps[0] * inv) * qkv_s[0, 2 * c:3 * c].astype(f32)
        for j in range(1, t):
            out_i = out_i + (exps[j] * inv) * qkv_s[j, 2 * c:3 * c].astype(f32)
        o_ref[0, i] = out_i.astype(o_ref.dtype)                          # (c, hw)


def ssa_forward(x, params, n_segment):
    """x: (b*t, c, h, w) float32 -> (b*t, c, h, w) float32."""
    bt, c, h, w = x.shape
    t = n_segment
    assert bt % t == 0, "batch must be a multiple of n_segment"
    b = bt // t
    hw = h * w

    # Pure reshapes only (no transposes => no extra HBM round trips): the kernel
    # works channels-on-sublanes / pixels-on-lanes.
    x_r = x.reshape(b, t, c, hw)

    # MXU-facing weights in bf16 (f32 accumulation inside the kernel); the 3
    # temporal-conv taps are pre-fused into a single (6c, c) matrix.
    wqkv = params["w_qkv"].astype(jnp.bfloat16)                          # (3c, c)
    wt6 = params["w_tqk"].reshape(6 * c, c).astype(jnp.bfloat16)         # (6c, c)

    kernel = functools.partial(_ssa_kernel, t=t, hw=hw, c=c,
                               scale=float(c) ** -0.5)
    out = pl.pallas_call(
        kernel,
        out_shape=jax.ShapeDtypeStruct((b, t, c, hw), jnp.float32),
        grid=(b,),
        in_specs=[
            pl.BlockSpec((1, t, c, hw), lambda i: (i, 0, 0, 0)),  # one whole video
            pl.BlockSpec((3 * c, c), lambda i: (0, 0)),           # fused QKV weight
            pl.BlockSpec((3 * c, 1), lambda i: (0, 0)),           # QKV bias
            pl.BlockSpec((6 * c, c), lambda i: (0, 0)),           # fused temporal taps
            pl.BlockSpec((2 * c, 1), lambda i: (0, 0)),           # temporal conv bias
        ],
        out_specs=pl.BlockSpec((1, t, c, hw), lambda i: (i, 0, 0, 0)),
        scratch_shapes=[
            pltpu.VMEM((t, 3 * c, hw), jnp.bfloat16),   # staged q/k/v per frame
            pltpu.VMEM((c, t * hw), jnp.bfloat16),      # x_hat, lane-dense over frames
            pltpu.VMEM((6 * c, t * hw), jnp.float32),   # fused temporal-conv taps
            pltpu.VMEM((t, 2 * c, hw), jnp.float32),    # temporal q/k per frame
        ],
        compiler_params=pltpu.CompilerParams(
            dimension_semantics=("parallel",),
            vmem_limit_bytes=32 * 1024 * 1024),
    )(x_r, wqkv, params["b_qkv"], wt6, params["b_tqk"])

    # (b, t, c, hw) -> (b*t, c, h, w): reshape only.
    return out.reshape(bt, c, h, w)


def init_params(key, dim):
    """Deterministic init matching the PyTorch layer shapes.

    Conv2d(dim, 3*dim, 1) weight kept as (3c, c); Conv3d(dim, 2*dim, (3,1,1))
    weight kept as (tap, 2c, c) with tap 0/1/2 <-> temporal offset -1/0/+1.
    """
    k1, k2, k3, k4 = jax.random.split(key, 4)
    lim2d = 1.0 / math.sqrt(dim)          # Conv2d fan_in = dim
    lim3d = 1.0 / math.sqrt(dim * 3)      # Conv3d fan_in = 3*dim
    return {
        "w_qkv": jax.random.uniform(k1, (3 * dim, dim), jnp.float32, -lim2d, lim2d),
        "b_qkv": jax.random.uniform(k2, (3 * dim, 1), jnp.float32, -lim2d, lim2d),
        "w_tqk": jax.random.uniform(k3, (3, 2 * dim, dim), jnp.float32, -lim3d, lim3d),
        "b_tqk": jax.random.uniform(k4, (2 * dim, 1), jnp.float32, -lim3d, lim3d),
    }


if __name__ == "__main__":
    key = jax.random.PRNGKey(0)
    dim = 32          # c
    n_segment = 4     # t
    b, h, w = 2, 8, 8
    bt = b * n_segment

    kx, kp = jax.random.split(key)
    x = jax.random.normal(kx, (bt, dim, h, w), jnp.float32)
    params = init_params(kp, dim)

    out = ssa_forward(x, params, n_segment)
    out = jax.block_until_ready(out)
    assert out.shape == (bt, dim, h, w), out.shape
    assert bool(jnp.all(jnp.isfinite(out)))
    print("KERNEL_OK")
</pallas_src>

<mosaic_0001>
module attributes {stable_mosaic.version = 11 : i64} {
  func.func @_ssa_kernel(%arg0: i32, %arg1: memref<1x4x32x64xf32, #tpu.memory_space<vmem>>, %arg2: memref<96x32xbf16, #tpu.memory_space<vmem>>, %arg3: memref<96x1xf32, #tpu.memory_space<vmem>>, %arg4: memref<192x32xbf16, #tpu.memory_space<vmem>>, %arg5: memref<64x1xf32, #tpu.memory_space<vmem>>, %arg6: memref<1x4x32x64xf32, #tpu.memory_space<vmem>>, %arg7: memref<4x96x64xbf16, #tpu.memory_space<vmem>>, %arg8: memref<32x256xbf16, #tpu.memory_space<vmem>>, %arg9: memref<192x256xf32, #tpu.memory_space<vmem>>, %arg10: memref<4x64x64xf32, #tpu.memory_space<vmem>>) attributes {dimension_semantics = [#tpu.dimension_semantics<parallel>], iteration_bounds = array<i64: 2>, scalar_prefetch = 0 : i64, scratch_operands = 4 : i64, tpu.core_type = #tpu.core_type<tc>, window_params = [{transform_indices = @transform_0, window_bounds = array<i64: 1, 4, 32, 64>}, {pipeline_mode = #tpu.pipeline_mode<synchronous>, transform_indices = @transform_1, window_bounds = array<i64: 96, 32>}, {pipeline_mode = #tpu.pipeline_mode<synchronous>, transform_indices = @transform_2, window_bounds = array<i64: 96, 1>}, {pipeline_mode = #tpu.pipeline_mode<synchronous>, transform_indices = @transform_3, window_bounds = array<i64: 192, 32>}, {pipeline_mode = #tpu.pipeline_mode<synchronous>, transform_indices = @transform_4, window_bounds = array<i64: 64, 1>}, {transform_indices = @transform_5, window_bounds = array<i64: 1, 4, 32, 64>}]} {
    %c0 = arith.constant 0 : index
    %c0_0 = arith.constant 0 : index
    %c0_1 = arith.constant 0 : index
    %c0_2 = arith.constant 0 : index
    %0 = vector.load %arg1[%c0, %c0_0, %c0_1, %c0_2] : memref<1x4x32x64xf32, #tpu.memory_space<vmem>>, vector<1x1x32x64xf32>
    %1 = vector.shape_cast %0 : vector<1x1x32x64xf32> to vector<32x64xf32>
    %2 = arith.truncf %1 : vector<32x64xf32> to vector<32x64xbf16>
    %c0_3 = arith.constant 0 : index
    %c0_4 = arith.constant 0 : index
    %3 = vector.load %arg2[%c0_3, %c0_4] : memref<96x32xbf16, #tpu.memory_space<vmem>>, vector<96x32xbf16>
    %cst = arith.constant dense<0.000000e+00> : vector<96x64xf32>
    %4 = tpu.matmul %3, %2, %cst {dimension_numbers = #tpu.dot_dimension_numbers<[1], [0], [0], [1], [0, 0, 1, 1], [], []>} : vector<96x32xbf16>, vector<32x64xbf16>, vector<96x64xf32> -> vector<96x64xf32>
    %c0_5 = arith.constant 0 : index
    %c0_6 = arith.constant 0 : index
    %5 = vector.load %arg3[%c0_5, %c0_6] : memref<96x1xf32, #tpu.memory_space<vmem>>, vector<96x1xf32>
    %6 = vector.broadcast %5 : vector<96x1xf32> to vector<96x64xf32>
    %7 = arith.addf %4, %6 : vector<96x64xf32>
    %8 = arith.truncf %7 : vector<96x64xf32> to vector<96x64xbf16>
    %c0_7 = arith.constant 0 : index
    %c0_8 = arith.constant 0 : index
    %c0_9 = arith.constant 0 : index
    %9 = vector.load %arg7[%c0_7, %c0_8, %c0_9] : memref<4x96x64xbf16, #tpu.memory_space<vmem>>, vector<1x96x64xbf16>
    %10 = vector.shape_cast %9 : vector<1x96x64xbf16> to vector<96x64xbf16>
    %11 = vector.shape_cast %8 : vector<96x64xbf16> to vector<1x96x64xbf16>
    tpu.vector_store %arg7[%c0_7, %c0_8, %c0_9], %11 {strides = array<i32>} : memref<4x96x64xbf16, #tpu.memory_space<vmem>>, vector<1x96x64xbf16>,
    %12 = vector.extract_strided_slice %7 {offsets = [0, 0], sizes = [32, 64], strides = [1, 1]} : vector<96x64xf32> to vector<32x64xf32>
    %13 = tpu.transpose %12, [1, 0] : vector<32x64xf32> -> vector<64x32xf32>
    %14 = arith.truncf %13 : vector<64x32xf32> to vector<64x32xbf16>
    %c0_10 = arith.constant 0 : index
    %c32 = arith.constant 32 : index
    %c0_11 = arith.constant 0 : index
    %15 = vector.load %arg7[%c0_10, %c32, %c0_11] : memref<4x96x64xbf16, #tpu.memory_space<vmem>>, vector<1x32x64xbf16>
    %16 = vector.shape_cast %15 : vector<1x32x64xbf16> to vector<32x64xbf16>
    %c0_12 = arith.constant 0 : index
    %c64 = arith.constant 64 : index
    %c0_13 = arith.constant 0 : index
    %17 = vector.load %arg7[%c0_12, %c64, %c0_13] : memref<4x96x64xbf16, #tpu.memory_space<vmem>>, vector<1x32x64xbf16>
    %18 = vector.shape_cast %17 : vector<1x32x64xbf16> to vector<32x64xbf16>
    %cst_14 = arith.constant dense<0.000000e+00> : vector<64x64xf32>
    %19 = tpu.matmul %14, %16, %cst_14 {dimension_numbers = #tpu.dot_dimension_numbers<[1], [0], [0], [1], [0, 0, 1, 1], [], []>} : vector<64x32xbf16>, vector<32x64xbf16>, vector<64x64xf32> -> vector<64x64xf32>
    %cst_15 = arith.constant 0.176776692 : f32
    %20 = vector.broadcast %cst_15 : f32 to vector<64x64xf32>
    %21 = arith.mulf %19, %20 : vector<64x64xf32>
    %cst_16 = arith.constant dense<0xFF800000> : vector<64xf32>
    %22 = vector.multi_reduction <maximumf>, %21, %cst_16 [1] : vector<64x64xf32> to vector<64xf32>
    %23 = vector.shape_cast %22 : vector<64xf32> to vector<64x1xf32>
    %24 = vector.broadcast %23 : vector<64x1xf32> to vector<64x64xf32>
    %25 = arith.subf %21, %24 : vector<64x64xf32>
    %26 = math.exp %25 : vector<64x64xf32>
    %cst_17 = arith.constant dense<0.000000e+00> : vector<64xf32>
    %27 = vector.multi_reduction <add>, %26, %cst_17 [1] : vector<64x64xf32> to vector<64xf32>
    %28 = vector.shape_cast %27 : vector<64xf32> to vector<64x1xf32>
    %29 = tpu.reciprocal %28 : vector<64x1xf32> -> vector<64x1xf32>
    %30 = vector.broadcast %29 : vector<64x1xf32> to vector<64x64xf32>
    %31 = arith.mulf %26, %30 : vector<64x64xf32>
    %32 = arith.truncf %31 : vector<64x64xf32> to vector<64x64xbf16>
    %cst_18 = arith.constant dense<0.000000e+00> : vector<32x64xf32>
    %33 = tpu.matmul %18, %32, %cst_18 {dimension_numbers = #tpu.dot_dimension_numbers<[1], [1], [0], [0], [0, 0, 1, 0], [], []>} : vector<32x64xbf16>, vector<64x64xbf16>, vector<32x64xf32> -> vector<32x64xf32>
    %c0_19 = arith.constant 0 : index
    %c0_20 = arith.constant 0 : index
    %c0_21 = arith.constant 0 : index
    %34 = vector.load %arg7[%c0_19, %c0_20, %c0_21] : memref<4x96x64xbf16, #tpu.memory_space<vmem>>, vector<1x32x64xbf16>
    %35 = vector.shape_cast %34 : vector<1x32x64xbf16> to vector<32x64xbf16>
    %cst_22 = arith.constant dense<0.000000e+00> : vector<32x32xf32>
    %36 = tpu.matmul %35, %16, %cst_22 {dimension_numbers = #tpu.dot_dimension_numbers<[1], [1], [0], [0], [0, 0, 1, 0], [], []>} : vector<32x64xbf16>, vector<32x64xbf16>, vector<32x32xf32> -> vector<32x32xf32>
    %cst_23 = arith.constant 0.176776692 : f32
    %37 = vector.broadcast %cst_23 : f32 to vector<32x32xf32>
    %38 = arith.mulf %36, %37 : vector<32x32xf32>
    %cst_24 = arith.constant dense<0xFF800000> : vector<32xf32>
    %39 = vector.multi_reduction <maximumf>, %38, %cst_24 [1] : vector<32x32xf32> to vector<32xf32>
    %40 = vector.shape_cast %39 : vector<32xf32> to vector<32x1xf32>
    %41 = vector.broadcast %40 : vector<32x1xf32> to vector<32x32xf32>
    %42 = arith.subf %38, %41 : vector<32x32xf32>
    %43 = math.exp %42 : vector<32x32xf32>
    %cst_25 = arith.constant dense<0.000000e+00> : vector<32xf32>
    %44 = vector.multi_reduction <add>, %43, %cst_25 [1] : vector<32x32xf32> to vector<32xf32>
    %45 = vector.shape_cast %44 : vector<32xf32> to vector<32x1xf32>
    %46 = tpu.reciprocal %45 : vector<32x1xf32> -> vector<32x1xf32>
    %47 = vector.broadcast %46 : vector<32x1xf32> to vector<32x32xf32>
    %48 = arith.mulf %43, %47 : vector<32x32xf32>
    %49 = arith.truncf %48 : vector<32x32xf32> to vector<32x32xbf16>
    %cst_26 = arith.constant dense<0.000000e+00> : vector<32x64xf32>
    %50 = tpu.matmul %49, %18, %cst_26 {dimension_numbers = #tpu.dot_dimension_numbers<[1], [0], [0], [1], [0, 0, 1, 1], [], []>} : vector<32x32xbf16>, vector<32x64xbf16>, vector<32x64xf32> -> vector<32x64xf32>
    %51 = arith.addf %33, %50 : vector<32x64xf32>
    %52 = arith.truncf %51 : vector<32x64xf32> to vector<32x64xbf16>
    %c0_27 = arith.constant 0 : index
    %c0_28 = arith.constant 0 : index
    %53 = vector.load %arg8[%c0_27, %c0_28] : memref<32x256xbf16, #tpu.memory_space<vmem>>, vector<32x64xbf16>
    tpu.vector_store %arg8[%c0_27, %c0_28], %52 {strides = array<i32>} : memref<32x256xbf16, #tpu.memory_space<vmem>>, vector<32x64xbf16>,
    %c0_29 = arith.constant 0 : index
    %c1 = arith.constant 1 : index
    %c0_30 = arith.constant 0 : index
    %c0_31 = arith.constant 0 : index
    %54 = vector.load %arg1[%c0_29, %c1, %c0_30, %c0_31] : memref<1x4x32x64xf32, #tpu.memory_space<vmem>>, vector<1x1x32x64xf32>
    %55 = vector.shape_cast %54 : vector<1x1x32x64xf32> to vector<32x64xf32>
    %56 = arith.truncf %55 : vector<32x64xf32> to vector<32x64xbf16>
    %c0_32 = arith.constant 0 : index
    %c0_33 = arith.constant 0 : index
    %57 = vector.load %arg2[%c0_32, %c0_33] : memref<96x32xbf16, #tpu.memory_space<vmem>>, vector<96x32xbf16>
    %cst_34 = arith.constant dense<0.000000e+00> : vector<96x64xf32>
    %58 = tpu.matmul %57, %56, %cst_34 {dimension_numbers = #tpu.dot_dimension_numbers<[1], [0], [0], [1], [0, 0, 1, 1], [], []>} : vector<96x32xbf16>, vector<32x64xbf16>, vector<96x64xf32> -> vector<96x64xf32>
    %c0_35 = arith.constant 0 : index
    %c0_36 = arith.constant 0 : index
    %59 = vector.load %arg3[%c0_35, %c0_36] : memref<96x1xf32, #tpu.memory_space<vmem>>, vector<96x1xf32>
    %60 = vector.broadcast %59 : vector<96x1xf32> to vector<96x64xf32>
    %61 = arith.addf %58, %60 : vector<96x64xf32>
    %62 = arith.truncf %61 : vector<96x64xf32> to vector<96x64xbf16>
    %c1_37 = arith.constant 1 : index
    %c0_38 = arith.constant 0 : index
    %c0_39 = arith.constant 0 : index
    %63 = vector.load %arg7[%c1_37, %c0_38, %c0_39] : memref<4x96x64xbf16, #tpu.memory_space<vmem>>, vector<1x96x64xbf16>
    %64 = vector.shape_cast %63 : vector<1x96x64xbf16> to vector<96x64xbf16>
    %65 = vector.shape_cast %62 : vector<96x64xbf16> to vector<1x96x64xbf16>
    tpu.vector_store %arg7[%c1_37, %c0_38, %c0_39], %65 {strides = array<i32>} : memref<4x96x64xbf16, #tpu.memory_space<vmem>>, vector<1x96x64xbf16>,
    %66 = vector.extract_strided_slice %61 {offsets = [0, 0], sizes = [32, 64], strides = [1, 1]} : vector<96x64xf32> to vector<32x64xf32>
    %67 = tpu.transpose %66, [1, 0] : vector<32x64xf32> -> vector<64x32xf32>
    %68 = arith.truncf %67 : vector<64x32xf32> to vector<64x32xbf16>
    %c1_40 = arith.constant 1 : index
    %c32_41 = arith.constant 32 : index
    %c0_42 = arith.constant 0 : index
    %69 = vector.load %arg7[%c1_40, %c32_41, %c0_42] : memref<4x96x64xbf16, #tpu.memory_space<vmem>>, vector<1x32x64xbf16>
    %70 = vector.shape_cast %69 : vector<1x32x64xbf16> to vector<32x64xbf16>
    %c1_43 = arith.constant 1 : index
    %c64_44 = arith.constant 64 : index
    %c0_45 = arith.constant 0 : index
    %71 = vector.load %arg7[%c1_43, %c64_44, %c0_45] : memref<4x96x64xbf16, #tpu.memory_space<vmem>>, vector<1x32x64xbf16>
    %72 = vector.shape_cast %71 : vector<1x32x64xbf16> to vector<32x64xbf16>
    %cst_46 = arith.constant dense<0.000000e+00> : vector<64x64xf32>
    %73 = tpu.matmul %68, %70, %cst_46 {dimension_numbers = #tpu.dot_dimension_numbers<[1], [0], [0], [1], [0, 0, 1, 1], [], []>} : vector<64x32xbf16>, vector<32x64xbf16>, vector<64x64xf32> -> vector<64x64xf32>
    %cst_47 = arith.constant 0.176776692 : f32
    %74 = vector.broadcast %cst_47 : f32 to vector<64x64xf32>
    %75 = arith.mulf %73, %74 : vector<64x64xf32>
    %cst_48 = arith.constant dense<0xFF800000> : vector<64xf32>
    %76 = vector.multi_reduction <maximumf>, %75, %cst_48 [1] : vector<64x64xf32> to vector<64xf32>
    %77 = vector.shape_cast %76 : vector<64xf32> to vector<64x1xf32>
    %78 = vector.broadcast %77 : vector<64x1xf32> to vector<64x64xf32>
    %79 = arith.subf %75, %78 : vector<64x64xf32>
    %80 = math.exp %79 : vector<64x64xf32>
    %cst_49 = arith.constant dense<0.000000e+00> : vector<64xf32>
    %81 = vector.multi_reduction <add>, %80, %cst_49 [1] : vector<64x64xf32> to vector<64xf32>
    %82 = vector.shape_cast %81 : vector<64xf32> to vector<64x1xf32>
    %83 = tpu.reciprocal %82 : vector<64x1xf32> -> vector<64x1xf32>
    %84 = vector.broadcast %83 : vector<64x1xf32> to vector<64x64xf32>
    %85 = arith.mulf %80, %84 : vector<64x64xf32>
    %86 = arith.truncf %85 : vector<64x64xf32> to vector<64x64xbf16>
    %cst_50 = arith.constant dense<0.000000e+00> : vector<32x64xf32>
    %87 = tpu.matmul %72, %86, %cst_50 {dimension_numbers = #tpu.dot_dimension_numbers<[1], [1], [0], [0], [0, 0, 1, 0], [], []>} : vector<32x64xbf16>, vector<64x64xbf16>, vector<32x64xf32> -> vector<32x64xf32>
    %c1_51 = arith.constant 1 : index
    %c0_52 = arith.constant 0 : index
    %c0_53 = arith.constant 0 : index
    %88 = vector.load %arg7[%c1_51, %c0_52, %c0_53] : memref<4x96x64xbf16, #tpu.memory_space<vmem>>, vector<1x32x64xbf16>
    %89 = vector.shape_cast %88 : vector<1x32x64xbf16> to vector<32x64xbf16>
    %cst_54 = arith.constant dense<0.000000e+00> : vector<32x32xf32>
    %90 = tpu.matmul %89, %70, %cst_54 {dimension_numbers = #tpu.dot_dimension_numbers<[1], [1], [0], [0], [0, 0, 1, 0], [], []>} : vector<32x64xbf16>, vector<32x64xbf16>, vector<32x32xf32> -> vector<32x32xf32>
    %cst_55 = arith.constant 0.176776692 : f32
    %91 = vector.broadcast %cst_55 : f32 to vector<32x32xf32>
    %92 = arith.mulf %90, %91 : vector<32x32xf32>
    %cst_56 = arith.constant dense<0xFF800000> : vector<32xf32>
    %93 = vector.multi_reduction <maximumf>, %92, %cst_56 [1] : vector<32x32xf32> to vector<32xf32>
    %94 = vector.shape_cast %93 : vector<32xf32> to vector<32x1xf32>
    %95 = vector.broadcast %94 : vector<32x1xf32> to vector<32x32xf32>
    %96 = arith.subf %92, %95 : vector<32x32xf32>
    %97 = math.exp %96 : vector<32x32xf32>
    %cst_57 = arith.constant dense<0.000000e+00> : vector<32xf32>
    %98 = vector.multi_reduction <add>, %97, %cst_57 [1] : vector<32x32xf32> to vector<32xf32>
    %99 = vector.shape_cast %98 : vector<32xf32> to vector<32x1xf32>
    %100 = tpu.reciprocal %99 : vector<32x1xf32> -> vector<32x1xf32>
    %101 = vector.broadcast %100 : vector<32x1xf32> to vector<32x32xf32>
    %102 = arith.mulf %97, %101 : vector<32x32xf32>
    %103 = arith.truncf %102 : vector<32x32xf32> to vector<32x32xbf16>
    %cst_58 = arith.constant dense<0.000000e+00> : vector<32x64xf32>
    %104 = tpu.matmul %103, %72, %cst_58 {dimension_numbers = #tpu.dot_dimension_numbers<[1], [0], [0], [1], [0, 0, 1, 1], [], []>} : vector<32x32xbf16>, vector<32x64xbf16>, vector<32x64xf32> -> vector<32x64xf32>
    %105 = arith.addf %87, %104 : vector<32x64xf32>
    %106 = arith.truncf %105 : vector<32x64xf32> to vector<32x64xbf16>
    %c0_59 = arith.constant 0 : index
    %c64_60 = arith.constant 64 : index
    %107 = vector.load %arg8[%c0_59, %c64_60] : memref<32x256xbf16, #tpu.memory_space<vmem>>, vector<32x64xbf16>
    tpu.vector_store %arg8[%c0_59, %c64_60], %106 {strides = array<i32>} : memref<32x256xbf16, #tpu.memory_space<vmem>>, vector<32x64xbf16>,
    %c0_61 = arith.constant 0 : index
    %c2 = arith.constant 2 : index
    %c0_62 = arith.constant 0 : index
    %c0_63 = arith.constant 0 : index
    %108 = vector.load %arg1[%c0_61, %c2, %c0_62, %c0_63] : memref<1x4x32x64xf32, #tpu.memory_space<vmem>>, vector<1x1x32x64xf32>
    %109 = vector.shape_cast %108 : vector<1x1x32x64xf32> to vector<32x64xf32>
    %110 = arith.truncf %109 : vector<32x64xf32> to vector<32x64xbf16>
    %c0_64 = arith.constant 0 : index
    %c0_65 = arith.constant 0 : index
    %111 = vector.load %arg2[%c0_64, %c0_65] : memref<96x32xbf16, #tpu.memory_space<vmem>>, vector<96x32xbf16>
    %cst_66 = arith.constant dense<0.000000e+00> : vector<96x64xf32>
    %112 = tpu.matmul %111, %110, %cst_66 {dimension_numbers = #tpu.dot_dimension_numbers<[1], [0], [0], [1], [0, 0, 1, 1], [], []>} : vector<96x32xbf16>, vector<32x64xbf16>, vector<96x64xf32> -> vector<96x64xf32>
    %c0_67 = arith.constant 0 : index
    %c0_68 = arith.constant 0 : index
    %113 = vector.load %arg3[%c0_67, %c0_68] : memref<96x1xf32, #tpu.memory_space<vmem>>, vector<96x1xf32>
    %114 = vector.broadcast %113 : vector<96x1xf32> to vector<96x64xf32>
    %115 = arith.addf %112, %114 : vector<96x64xf32>
    %116 = arith.truncf %115 : vector<96x64xf32> to vector<96x64xbf16>
    %c2_69 = arith.constant 2 : index
    %c0_70 = arith.constant 0 : index
    %c0_71 = arith.constant 0 : index
    %117 = vector.load %arg7[%c2_69, %c0_70, %c0_71] : memref<4x96x64xbf16, #tpu.memory_space<vmem>>, vector<1x96x64xbf16>
    %118 = vector.shape_cast %117 : vector<1x96x64xbf16> to vector<96x64xbf16>
    %119 = vector.shape_cast %116 : vector<96x64xbf16> to vector<1x96x64xbf16>
    tpu.vector_store %arg7[%c2_69, %c0_70, %c0_71], %119 {strides = array<i32>} : memref<4x96x64xbf16, #tpu.memory_space<vmem>>, vector<1x96x64xbf16>,
    %120 = vector.extract_strided_slice %115 {offsets = [0, 0], sizes = [32, 64], strides = [1, 1]} : vector<96x64xf32> to vector<32x64xf32>
    %121 = tpu.transpose %120, [1, 0] : vector<32x64xf32> -> vector<64x32xf32>
    %122 = arith.truncf %121 : vector<64x32xf32> to vector<64x32xbf16>
    %c2_72 = arith.constant 2 : index
    %c32_73 = arith.constant 32 : index
    %c0_74 = arith.constant 0 : index
    %123 = vector.load %arg7[%c2_72, %c32_73, %c0_74] : memref<4x96x64xbf16, #tpu.memory_space<vmem>>, vector<1x32x64xbf16>
    %124 = vector.shape_cast %123 : vector<1x32x64xbf16> to vector<32x64xbf16>
    %c2_75 = arith.constant 2 : index
    %c64_76 = arith.constant 64 : index
    %c0_77 = arith.constant 0 : index
    %125 = vector.load %arg7[%c2_75, %c64_76, %c0_77] : memref<4x96x64xbf16, #tpu.memory_space<vmem>>, vector<1x32x64xbf16>
    %126 = vector.shape_cast %125 : vector<1x32x64xbf16> to vector<32x64xbf16>
    %cst_78 = arith.constant dense<0.000000e+00> : vector<64x64xf32>
    %127 = tpu.matmul %122, %124, %cst_78 {dimension_numbers = #tpu.dot_dimension_numbers<[1], [0], [0], [1], [0, 0, 1, 1], [], []>} : vector<64x32xbf16>, vector<32x64xbf16>, vector<64x64xf32> -> vector<64x64xf32>
    %cst_79 = arith.constant 0.176776692 : f32
    %128 = vector.broadcast %cst_79 : f32 to vector<64x64xf32>
    %129 = arith.mulf %127, %128 : vector<64x64xf32>
    %cst_80 = arith.constant dense<0xFF800000> : vector<64xf32>
    %130 = vector.multi_reduction <maximumf>, %129, %cst_80 [1] : vector<64x64xf32> to vector<64xf32>
    %131 = vector.shape_cast %130 : vector<64xf32> to vector<64x1xf32>
    %132 = vector.broadcast %131 : vector<64x1xf32> to vector<64x64xf32>
    %133 = arith.subf %129, %132 : vector<64x64xf32>
    %134 = math.exp %133 : vector<64x64xf32>
    %cst_81 = arith.constant dense<0.000000e+00> : vector<64xf32>
    %135 = vector.multi_reduction <add>, %134, %cst_81 [1] : vector<64x64xf32> to vector<64xf32>
    %136 = vector.shape_cast %135 : vector<64xf32> to vector<64x1xf32>
    %137 = tpu.reciprocal %136 : vector<64x1xf32> -> vector<64x1xf32>
    %138 = vector.broadcast %137 : vector<64x1xf32> to vector<64x64xf32>
    %139 = arith.mulf %134, %138 : vector<64x64xf32>
    %140 = arith.truncf %139 : vector<64x64xf32> to vector<64x64xbf16>
    %cst_82 = arith.constant dense<0.000000e+00> : vector<32x64xf32>
    %141 = tpu.matmul %126, %140, %cst_82 {dimension_numbers = #tpu.dot_dimension_numbers<[1], [1], [0], [0], [0, 0, 1, 0], [], []>} : vector<32x64xbf16>, vector<64x64xbf16>, vector<32x64xf32> -> vector<32x64xf32>
    %c2_83 = arith.constant 2 : index
    %c0_84 = arith.constant 0 : index
    %c0_85 = arith.constant 0 : index
    %142 = vector.load %arg7[%c2_83, %c0_84, %c0_85] : memref<4x96x64xbf16, #tpu.memory_space<vmem>>, vector<1x32x64xbf16>
    %143 = vector.shape_cast %142 : vector<1x32x64xbf16> to vector<32x64xbf16>
    %cst_86 = arith.constant dense<0.000000e+00> : vector<32x32xf32>
    %144 = tpu.matmul %143, %124, %cst_86 {dimension_numbers = #tpu.dot_dimension_numbers<[1], [1], [0], [0], [0, 0, 1, 0], [], []>} : vector<32x64xbf16>, vector<32x64xbf16>, vector<32x32xf32> -> vector<32x32xf32>
    %cst_87 = arith.constant 0.176776692 : f32
    %145 = vector.broadcast %cst_87 : f32 to vector<32x32xf32>
    %146 = arith.mulf %144, %145 : vector<32x32xf32>
    %cst_88 = arith.constant dense<0xFF800000> : vector<32xf32>
    %147 = vector.multi_reduction <maximumf>, %146, %cst_88 [1] : vector<32x32xf32> to vector<32xf32>
    %148 = vector.shape_cast %147 : vector<32xf32> to vector<32x1xf32>
    %149 = vector.broadcast %148 : vector<32x1xf32> to vector<32x32xf32>
    %150 = arith.subf %146, %149 : vector<32x32xf32>
    %151 = math.exp %150 : vector<32x32xf32>
    %cst_89 = arith.constant dense<0.000000e+00> : vector<32xf32>
    %152 = vector.multi_reduction <add>, %151, %cst_89 [1] : vector<32x32xf32> to vector<32xf32>
    %153 = vector.shape_cast %152 : vector<32xf32> to vector<32x1xf32>
    %154 = tpu.reciprocal %153 : vector<32x1xf32> -> vector<32x1xf32>
    %155 = vector.broadcast %154 : vector<32x1xf32> to vector<32x32xf32>
    %156 = arith.mulf %151, %155 : vector<32x32xf32>
    %157 = arith.truncf %156 : vector<32x32xf32> to vector<32x32xbf16>
    %cst_90 = arith.constant dense<0.000000e+00> : vector<32x64xf32>
    %158 = tpu.matmul %157, %126, %cst_90 {dimension_numbers = #tpu.dot_dimension_numbers<[1], [0], [0], [1], [0, 0, 1, 1], [], []>} : vector<32x32xbf16>, vector<32x64xbf16>, vector<32x64xf32> -> vector<32x64xf32>
    %159 = arith.addf %141, %158 : vector<32x64xf32>
    %160 = arith.truncf %159 : vector<32x64xf32> to vector<32x64xbf16>
    %c0_91 = arith.constant 0 : index
    %c128 = arith.constant 128 : index
    %161 = vector.load %arg8[%c0_91, %c128] : memref<32x256xbf16, #tpu.memory_space<vmem>>, vector<32x64xbf16>
    tpu.vector_store %arg8[%c0_91, %c128], %160 {strides = array<i32>} : memref<32x256xbf16, #tpu.memory_space<vmem>>, vector<32x64xbf16>,
    %c0_92 = arith.constant 0 : index
    %c3 = arith.constant 3 : index
    %c0_93 = arith.constant 0 : index
    %c0_94 = arith.constant 0 : index
    %162 = vector.load %arg1[%c0_92, %c3, %c0_93, %c0_94] : memref<1x4x32x64xf32, #tpu.memory_space<vmem>>, vector<1x1x32x64xf32>
    %163 = vector.shape_cast %162 : vector<1x1x32x64xf32> to vector<32x64xf32>
    %164 = arith.truncf %163 : vector<32x64xf32> to vector<32x64xbf16>
    %c0_95 = arith.constant 0 : index
    %c0_96 = arith.constant 0 : index
    %165 = vector.load %arg2[%c0_95, %c0_96] : memref<96x32xbf16, #tpu.memory_space<vmem>>, vector<96x32xbf16>
    %cst_97 = arith.constant dense<0.000000e+00> : vector<96x64xf32>
    %166 = tpu.matmul %165, %164, %cst_97 {dimension_numbers = #tpu.dot_dimension_numbers<[1], [0], [0], [1], [0, 0, 1, 1], [], []>} : vector<96x32xbf16>, vector<32x64xbf16>, vector<96x64xf32> -> vector<96x64xf32>
    %c0_98 = arith.constant 0 : index
    %c0_99 = arith.constant 0 : index
    %167 = vector.load %arg3[%c0_98, %c0_99] : memref<96x1xf32, #tpu.memory_space<vmem>>, vector<96x1xf32>
    %168 = vector.broadcast %167 : vector<96x1xf32> to vector<96x64xf32>
    %169 = arith.addf %166, %168 : vector<96x64xf32>
    %170 = arith.truncf %169 : vector<96x64xf32> to vector<96x64xbf16>
    %c3_100 = arith.constant 3 : index
    %c0_101 = arith.constant 0 : index
    %c0_102 = arith.constant 0 : index
    %171 = vector.load %arg7[%c3_100, %c0_101, %c0_102] : memref<4x96x64xbf16, #tpu.memory_space<vmem>>, vector<1x96x64xbf16>
    %172 = vector.shape_cast %171 : vector<1x96x64xbf16> to vector<96x64xbf16>
    %173 = vector.shape_cast %170 : vector<96x64xbf16> to vector<1x96x64xbf16>
    tpu.vector_store %arg7[%c3_100, %c0_101, %c0_102], %173 {strides = array<i32>} : memref<4x96x64xbf16, #tpu.memory_space<vmem>>, vector<1x96x64xbf16>,
    %174 = vector.extract_strided_slice %169 {offsets = [0, 0], sizes = [32, 64], strides = [1, 1]} : vector<96x64xf32> to vector<32x64xf32>
    %175 = tpu.transpose %174, [1, 0] : vector<32x64xf32> -> vector<64x32xf32>
    %176 = arith.truncf %175 : vector<64x32xf32> to vector<64x32xbf16>
    %c3_103 = arith.constant 3 : index
    %c32_104 = arith.constant 32 : index
    %c0_105 = arith.constant 0 : index
    %177 = vector.load %arg7[%c3_103, %c32_104, %c0_105] : memref<4x96x64xbf16, #tpu.memory_space<vmem>>, vector<1x32x64xbf16>
    %178 = vector.shape_cast %177 : vector<1x32x64xbf16> to vector<32x64xbf16>
    %c3_106 = arith.constant 3 : index
    %c64_107 = arith.constant 64 : index
    %c0_108 = arith.constant 0 : index
    %179 = vector.load %arg7[%c3_106, %c64_107, %c0_108] : memref<4x96x64xbf16, #tpu.memory_space<vmem>>, vector<1x32x64xbf16>
    %180 = vector.shape_cast %179 : vector<1x32x64xbf16> to vector<32x64xbf16>
    %cst_109 = arith.constant dense<0.000000e+00> : vector<64x64xf32>
    %181 = tpu.matmul %176, %178, %cst_109 {dimension_numbers = #tpu.dot_dimension_numbers<[1], [0], [0], [1], [0, 0, 1, 1], [], []>} : vector<64x32xbf16>, vector<32x64xbf16>, vector<64x64xf32> -> vector<64x64xf32>
    %cst_110 = arith.constant 0.176776692 : f32
    %182 = vector.broadcast %cst_110 : f32 to vector<64x64xf32>
    %183 = arith.mulf %181, %182 : vector<64x64xf32>
    %cst_111 = arith.constant dense<0xFF800000> : vector<64xf32>
    %184 = vector.multi_reduction <maximumf>, %183, %cst_111 [1] : vector<64x64xf32> to vector<64xf32>
    %185 = vector.shape_cast %184 : vector<64xf32> to vector<64x1xf32>
    %186 = vector.broadcast %185 : vector<64x1xf32> to vector<64x64xf32>
    %187 = arith.subf %183, %186 : vector<64x64xf32>
    %188 = math.exp %187 : vector<64x64xf32>
    %cst_112 = arith.constant dense<0.000000e+00> : vector<64xf32>
    %189 = vector.multi_reduction <add>, %188, %cst_112 [1] : vector<64x64xf32> to vector<64xf32>
    %190 = vector.shape_cast %189 : vector<64xf32> to vector<64x1xf32>
    %191 = tpu.reciprocal %190 : vector<64x1xf32> -> vector<64x1xf32>
    %192 = vector.broadcast %191 : vector<64x1xf32> to vector<64x64xf32>
    %193 = arith.mulf %188, %192 : vector<64x64xf32>
    %194 = arith.truncf %193 : vector<64x64xf32> to vector<64x64xbf16>
    %cst_113 = arith.constant dense<0.000000e+00> : vector<32x64xf32>
    %195 = tpu.matmul %180, %194, %cst_113 {dimension_numbers = #tpu.dot_dimension_numbers<[1], [1], [0], [0], [0, 0, 1, 0], [], []>} : vector<32x64xbf16>, vector<64x64xbf16>, vector<32x64xf32> -> vector<32x64xf32>
    %c3_114 = arith.constant 3 : index
    %c0_115 = arith.constant 0 : index
    %c0_116 = arith.constant 0 : index
    %196 = vector.load %arg7[%c3_114, %c0_115, %c0_116] : memref<4x96x64xbf16, #tpu.memory_space<vmem>>, vector<1x32x64xbf16>
    %197 = vector.shape_cast %196 : vector<1x32x64xbf16> to vector<32x64xbf16>
    %cst_117 = arith.constant dense<0.000000e+00> : vector<32x32xf32>
    %198 = tpu.matmul %197, %178, %cst_117 {dimension_numbers = #tpu.dot_dimension_numbers<[1], [1], [0], [0], [0, 0, 1, 0], [], []>} : vector<32x64xbf16>, vector<32x64xbf16>, vector<32x32xf32> -> vector<32x32xf32>
    %cst_118 = arith.constant 0.176776692 : f32
    %199 = vector.broadcast %cst_118 : f32 to vector<32x32xf32>
    %200 = arith.mulf %198, %199 : vector<32x32xf32>
    %cst_119 = arith.constant dense<0xFF800000> : vector<32xf32>
    %201 = vector.multi_reduction <maximumf>, %200, %cst_119 [1] : vector<32x32xf32> to vector<32xf32>
    %202 = vector.shape_cast %201 : vector<32xf32> to vector<32x1xf32>
    %203 = vector.broadcast %202 : vector<32x1xf32> to vector<32x32xf32>
    %204 = arith.subf %200, %203 : vector<32x32xf32>
    %205 = math.exp %204 : vector<32x32xf32>
    %cst_120 = arith.constant dense<0.000000e+00> : vector<32xf32>
    %206 = vector.multi_reduction <add>, %205, %cst_120 [1] : vector<32x32xf32> to vector<32xf32>
    %207 = vector.shape_cast %206 : vector<32xf32> to vector<32x1xf32>
    %208 = tpu.reciprocal %207 : vector<32x1xf32> -> vector<32x1xf32>
    %209 = vector.broadcast %208 : vector<32x1xf32> to vector<32x32xf32>
    %210 = arith.mulf %205, %209 : vector<32x32xf32>
    %211 = arith.truncf %210 : vector<32x32xf32> to vector<32x32xbf16>
    %cst_121 = arith.constant dense<0.000000e+00> : vector<32x64xf32>
    %212 = tpu.matmul %211, %180, %cst_121 {dimension_numbers = #tpu.dot_dimension_numbers<[1], [0], [0], [1], [0, 0, 1, 1], [], []>} : vector<32x32xbf16>, vector<32x64xbf16>, vector<32x64xf32> -> vector<32x64xf32>
    %213 = arith.addf %195, %212 : vector<32x64xf32>
    %214 = arith.truncf %213 : vector<32x64xf32> to vector<32x64xbf16>
    %c0_122 = arith.constant 0 : index
    %c192 = arith.constant 192 : index
    %215 = vector.load %arg8[%c0_122, %c192] : memref<32x256xbf16, #tpu.memory_space<vmem>>, vector<32x64xbf16>
    tpu.vector_store %arg8[%c0_122, %c192], %214 {strides = array<i32>} : memref<32x256xbf16, #tpu.memory_space<vmem>>, vector<32x64xbf16>,
    %c0_123 = arith.constant 0 : index
    %c0_124 = arith.constant 0 : index
    %216 = vector.load %arg8[%c0_123, %c0_124] : memref<32x256xbf16, #tpu.memory_space<vmem>>, vector<32x256xbf16>
    %c0_125 = arith.constant 0 : index
    %c0_126 = arith.constant 0 : index
    %217 = vector.load %arg4[%c0_125, %c0_126] : memref<192x32xbf16, #tpu.memory_space<vmem>>, vector<96x32xbf16>
    %cst_127 = arith.constant dense<0.000000e+00> : vector<96x256xf32>
    %218 = tpu.matmul %217, %216, %cst_127 {dimension_numbers = #tpu.dot_dimension_numbers<[1], [0], [0], [1], [0, 0, 1, 1], [], []>} : vector<96x32xbf16>, vector<32x256xbf16>, vector<96x256xf32> -> vector<96x256xf32>
    %c0_128 = arith.constant 0 : index
    %c0_129 = arith.constant 0 : index
    %219 = vector.load %arg9[%c0_128, %c0_129] : memref<192x256xf32, #tpu.memory_space<vmem>>, vector<96x256xf32>
    tpu.vector_store %arg9[%c0_128, %c0_129], %218 {strides = array<i32>} : memref<192x256xf32, #tpu.memory_space<vmem>>, vector<96x256xf32>,
    %c96 = arith.constant 96 : index
    %c0_130 = arith.constant 0 : index
    %220 = vector.load %arg4[%c96, %c0_130] : memref<192x32xbf16, #tpu.memory_space<vmem>>, vector<96x32xbf16>
    %cst_131 = arith.constant dense<0.000000e+00> : vector<96x256xf32>
    %221 = tpu.matmul %220, %216, %cst_131 {dimension_numbers = #tpu.dot_dimension_numbers<[1], [0], [0], [1], [0, 0, 1, 1], [], []>} : vector<96x32xbf16>, vector<32x256xbf16>, vector<96x256xf32> -> vector<96x256xf32>
    %c96_132 = arith.constant 96 : index
    %c0_133 = arith.constant 0 : index
    %222 = vector.load %arg9[%c96_132, %c0_133] : memref<192x256xf32, #tpu.memory_space<vmem>>, vector<96x256xf32>
    tpu.vector_store %arg9[%c96_132, %c0_133], %221 {strides = array<i32>} : memref<192x256xf32, #tpu.memory_space<vmem>>, vector<96x256xf32>,
    %c64_134 = arith.constant 64 : index
    %c0_135 = arith.constant 0 : index
    %223 = vector.load %arg9[%c64_134, %c0_135] : memref<192x256xf32, #tpu.memory_space<vmem>>, vector<64x256xf32>
    %c0_136 = arith.constant 0 : index
    %c0_137 = arith.constant 0 : index
    %224 = vector.load %arg5[%c0_136, %c0_137] : memref<64x1xf32, #tpu.memory_space<vmem>>, vector<64x1xf32>
    %225 = vector.broadcast %224 : vector<64x1xf32> to vector<64x256xf32>
    %226 = arith.addf %223, %225 : vector<64x256xf32>
    %c64_138 = arith.constant 64 : index
    %c0_139 = arith.constant 0 : index
    %227 = vector.load %arg9[%c64_138, %c0_139] : memref<192x256xf32, #tpu.memory_space<vmem>>, vector<64x256xf32>
    tpu.vector_store %arg9[%c64_138, %c0_139], %226 {strides = array<i32>} : memref<192x256xf32, #tpu.memory_space<vmem>>, vector<64x256xf32>,
    %c64_140 = arith.constant 64 : index
    %c0_141 = arith.constant 0 : index
    %228 = vector.load %arg9[%c64_140, %c0_141] : memref<192x256xf32, #tpu.memory_space<vmem>>, vector<64x64xf32>
    %c128_142 = arith.constant 128 : index
    %c64_143 = arith.constant 64 : index
    %229 = vector.load %arg9[%c128_142, %c64_143] : memref<192x256xf32, #tpu.memory_space<vmem>>, vector<64x64xf32>
    %230 = arith.addf %228, %229 : vector<64x64xf32>
    %c0_144 = arith.constant 0 : index
    %c0_145 = arith.constant 0 : index
    %c0_146 = arith.constant 0 : index
    %231 = vector.load %arg10[%c0_144, %c0_145, %c0_146] : memref<4x64x64xf32, #tpu.memory_space<vmem>>, vector<1x64x64xf32>
    %232 = vector.shape_cast %231 : vector<1x64x64xf32> to vector<64x64xf32>
    %233 = vector.shape_cast %230 : vector<64x64xf32> to vector<1x64x64xf32>
    tpu.vector_store %arg10[%c0_144, %c0_145, %c0_146], %233 {strides = array<i32>} : memref<4x64x64xf32, #tpu.memory_space<vmem>>, vector<1x64x64xf32>,
    %c64_147 = arith.constant 64 : index
    %c64_148 = arith.constant 64 : index
    %234 = vector.load %arg9[%c64_147, %c64_148] : memref<192x256xf32, #tpu.memory_space<vmem>>, vector<64x64xf32>
    %c0_149 = arith.constant 0 : index
    %c0_150 = arith.constant 0 : index
    %235 = vector.load %arg9[%c0_149, %c0_150] : memref<192x256xf32, #tpu.memory_space<vmem>>, vector<64x64xf32>
    %236 = arith.addf %234, %235 : vector<64x64xf32>
    %c128_151 = arith.constant 128 : index
    %c128_152 = arith.constant 128 : index
    %237 = vector.load %arg9[%c128_151, %c128_152] : memref<192x256xf32, #tpu.memory_space<vmem>>, vector<64x64xf32>
    %238 = arith.addf %236, %237 : vector<64x64xf32>
    %c1_153 = arith.constant 1 : index
    %c0_154 = arith.constant 0 : index
    %c0_155 = arith.constant 0 : index
    %239 = vector.load %arg10[%c1_153, %c0_154, %c0_155] : memref<4x64x64xf32, #tpu.memory_space<vmem>>, vector<1x64x64xf32>
    %240 = vector.shape_cast %239 : vector<1x64x64xf32> to vector<64x64xf32>
    %241 = vector.shape_cast %238 : vector<64x64xf32> to vector<1x64x64xf32>
    tpu.vector_store %arg10[%c1_153, %c0_154, %c0_155], %241 {strides = array<i32>} : memref<4x64x64xf32, #tpu.memory_space<vmem>>, vector<1x64x64xf32>,
    %c64_156 = arith.constant 64 : index
    %c128_157 = arith.constant 128 : index
    %242 = vector.load %arg9[%c64_156, %c128_157] : memref<192x256xf32, #tpu.memory_space<vmem>>, vector<64x64xf32>
    %c0_158 = arith.constant 0 : index
    %c64_159 = arith.constant 64 : index
    %243 = vector.load %arg9[%c0_158, %c64_159] : memref<192x256xf32, #tpu.memory_space<vmem>>, vector<64x64xf32>
    %244 = arith.addf %242, %243 : vector<64x64xf32>
    %c128_160 = arith.constant 128 : index
    %c192_161 = arith.constant 192 : index
    %245 = vector.load %arg9[%c128_160, %c192_161] : memref<192x256xf32, #tpu.memory_space<vmem>>, vector<64x64xf32>
    %246 = arith.addf %244, %245 : vector<64x64xf32>
    %c2_162 = arith.constant 2 : index
    %c0_163 = arith.constant 0 : index
    %c0_164 = arith.constant 0 : index
    %247 = vector.load %arg10[%c2_162, %c0_163, %c0_164] : memref<4x64x64xf32, #tpu.memory_space<vmem>>, vector<1x64x64xf32>
    %248 = vector.shape_cast %247 : vector<1x64x64xf32> to vector<64x64xf32>
    %249 = vector.shape_cast %246 : vector<64x64xf32> to vector<1x64x64xf32>
    tpu.vector_store %arg10[%c2_162, %c0_163, %c0_164], %249 {strides = array<i32>} : memref<4x64x64xf32, #tpu.memory_space<vmem>>, vector<1x64x64xf32>,
    %c64_165 = arith.constant 64 : index
    %c192_166 = arith.constant 192 : index
    %250 = vector.load %arg9[%c64_165, %c192_166] : memref<192x256xf32, #tpu.memory_space<vmem>>, vector<64x64xf32>
    %c0_167 = arith.constant 0 : index
    %c128_168 = arith.constant 128 : index
    %251 = vector.load %arg9[%c0_167, %c128_168] : memref<192x256xf32, #tpu.memory_space<vmem>>, vector<64x64xf32>
    %252 = arith.addf %250, %251 : vector<64x64xf32>
    %c3_169 = arith.constant 3 : index
    %c0_170 = arith.constant 0 : index
    %c0_171 = arith.constant 0 : index
    %253 = vector.load %arg10[%c3_169, %c0_170, %c0_171] : memref<4x64x64xf32, #tpu.memory_space<vmem>>, vector<1x64x64xf32>
    %254 = vector.shape_cast %253 : vector<1x64x64xf32> to vector<64x64xf32>
    %255 = vector.shape_cast %252 : vector<64x64xf32> to vector<1x64x64xf32>
    tpu.vector_store %arg10[%c3_169, %c0_170, %c0_171], %255 {strides = array<i32>} : memref<4x64x64xf32, #tpu.memory_space<vmem>>, vector<1x64x64xf32>,
    %c0_172 = arith.constant 0 : index
    %c0_173 = arith.constant 0 : index
    %c0_174 = arith.constant 0 : index
    %256 = vector.load %arg10[%c0_172, %c0_173, %c0_174] : memref<4x64x64xf32, #tpu.memory_space<vmem>>, vector<1x32x64xf32>
    %257 = vector.shape_cast %256 : vector<1x32x64xf32> to vector<32x64xf32>
    %c0_175 = arith.constant 0 : index
    %c32_176 = arith.constant 32 : index
    %c0_177 = arith.constant 0 : index
    %258 = vector.load %arg10[%c0_175, %c32_176, %c0_177] : memref<4x64x64xf32, #tpu.memory_space<vmem>>, vector<1x32x64xf32>
    %259 = vector.shape_cast %258 : vector<1x32x64xf32> to vector<32x64xf32>
    %260 = arith.mulf %257, %259 : vector<32x64xf32>
    %cst_178 = arith.constant dense<0.000000e+00> : vector<32xf32>
    %261 = vector.multi_reduction <add>, %260, %cst_178 [1] : vector<32x64xf32> to vector<32xf32>
    %262 = vector.shape_cast %261 : vector<32xf32> to vector<32x1xf32>
    %cst_179 = arith.constant dense<0.000000e+00> : vector<1xf32>
    %263 = vector.multi_reduction <add>, %262, %cst_179 [0] : vector<32x1xf32> to vector<1xf32>
    %264 = vector.shape_cast %263 : vector<1xf32> to vector<1x1xf32>
    %c1_180 = arith.constant 1 : index
    %c32_181 = arith.constant 32 : index
    %c0_182 = arith.constant 0 : index
    %265 = vector.load %arg10[%c1_180, %c32_181, %c0_182] : memref<4x64x64xf32, #tpu.memory_space<vmem>>, vector<1x32x64xf32>
    %266 = vector.shape_cast %265 : vector<1x32x64xf32> to vector<32x64xf32>
    %267 = arith.mulf %257, %266 : vector<32x64xf32>
    %cst_183 = arith.constant dense<0.000000e+00> : vector<32xf32>
    %268 = vector.multi_reduction <add>, %267, %cst_183 [1] : vector<32x64xf32> to vector<32xf32>
    %269 = vector.shape_cast %268 : vector<32xf32> to vector<32x1xf32>
    %cst_184 = arith.constant dense<0.000000e+00> : vector<1xf32>
    %270 = vector.multi_reduction <add>, %269, %cst_184 [0] : vector<32x1xf32> to vector<1xf32>
    %271 = vector.shape_cast %270 : vector<1xf32> to vector<1x1xf32>
    %c2_185 = arith.constant 2 : index
    %c32_186 = arith.constant 32 : index
    %c0_187 = arith.constant 0 : index
    %272 = vector.load %arg10[%c2_185, %c32_186, %c0_187] : memref<4x64x64xf32, #tpu.memory_space<vmem>>, vector<1x32x64xf32>
    %273 = vector.shape_cast %272 : vector<1x32x64xf32> to vector<32x64xf32>
    %274 = arith.mulf %257, %273 : vector<32x64xf32>
    %cst_188 = arith.constant dense<0.000000e+00> : vector<32xf32>
    %275 = vector.multi_reduction <add>, %274, %cst_188 [1] : vector<32x64xf32> to vector<32xf32>
    %276 = vector.shape_cast %275 : vector<32xf32> to vector<32x1xf32>
    %cst_189 = arith.constant dense<0.000000e+00> : vector<1xf32>
    %277 = vector.multi_reduction <add>, %276, %cst_189 [0] : vector<32x1xf32> to vector<1xf32>
    %278 = vector.shape_cast %277 : vector<1xf32> to vector<1x1xf32>
    %c3_190 = arith.constant 3 : index
    %c32_191 = arith.constant 32 : index
    %c0_192 = arith.constant 0 : index
    %279 = vector.load %arg10[%c3_190, %c32_191, %c0_192] : memref<4x64x64xf32, #tpu.memory_space<vmem>>, vector<1x32x64xf32>
    %280 = vector.shape_cast %279 : vector<1x32x64xf32> to vector<32x64xf32>
    %281 = arith.mulf %257, %280 : vector<32x64xf32>
    %cst_193 = arith.constant dense<0.000000e+00> : vector<32xf32>
    %282 = vector.multi_reduction <add>, %281, %cst_193 [1] : vector<32x64xf32> to vector<32xf32>
    %283 = vector.shape_cast %282 : vector<32xf32> to vector<32x1xf32>
    %cst_194 = arith.constant dense<0.000000e+00> : vector<1xf32>
    %284 = vector.multi_reduction <add>, %283, %cst_194 [0] : vector<32x1xf32> to vector<1xf32>
    %285 = vector.shape_cast %284 : vector<1xf32> to vector<1x1xf32>
    %286 = arith.maximumf %264, %271 : vector<1x1xf32>
    %287 = arith.maximumf %286, %278 : vector<1x1xf32>
    %288 = arith.maximumf %287, %285 : vector<1x1xf32>
    %289 = arith.subf %264, %288 : vector<1x1xf32>
    %290 = math.exp %289 : vector<1x1xf32>
    %291 = arith.subf %271, %288 : vector<1x1xf32>
    %292 = math.exp %291 : vector<1x1xf32>
    %293 = arith.subf %278, %288 : vector<1x1xf32>
    %294 = math.exp %293 : vector<1x1xf32>
    %295 = arith.subf %285, %288 : vector<1x1xf32>
    %296 = math.exp %295 : vector<1x1xf32>
    %297 = arith.addf %290, %292 : vector<1x1xf32>
    %298 = arith.addf %297, %294 : vector<1x1xf32>
    %299 = arith.addf %298, %296 : vector<1x1xf32>
    %300 = tpu.reciprocal %299 : vector<1x1xf32> -> vector<1x1xf32>
    %301 = arith.mulf %290, %300 : vector<1x1xf32>
    %c0_195 = arith.constant 0 : index
    %c64_196 = arith.constant 64 : index
    %c0_197 = arith.constant 0 : index
    %302 = vector.load %arg7[%c0_195, %c64_196, %c0_197] : memref<4x96x64xbf16, #tpu.memory_space<vmem>>, vector<1x32x64xbf16>
    %303 = vector.shape_cast %302 : vector<1x32x64xbf16> to vector<32x64xbf16>
    %304 = arith.extf %303 : vector<32x64xbf16> to vector<32x64xf32>
    %305 = vector.broadcast %301 : vector<1x1xf32> to vector<32x64xf32>
    %306 = arith.mulf %305, %304 : vector<32x64xf32>
    %307 = arith.mulf %292, %300 : vector<1x1xf32>
    %c1_198 = arith.constant 1 : index
    %c64_199 = arith.constant 64 : index
    %c0_200 = arith.constant 0 : index
    %308 = vector.load %arg7[%c1_198, %c64_199, %c0_200] : memref<4x96x64xbf16, #tpu.memory_space<vmem>>, vector<1x32x64xbf16>
    %309 = vector.shape_cast %308 : vector<1x32x64xbf16> to vector<32x64xbf16>
    %310 = arith.extf %309 : vector<32x64xbf16> to vector<32x64xf32>
    %311 = vector.broadcast %307 : vector<1x1xf32> to vector<32x64xf32>
    %312 = arith.mulf %311, %310 : vector<32x64xf32>
    %313 = arith.addf %306, %312 : vector<32x64xf32>
    %314 = arith.mulf %294, %300 : vector<1x1xf32>
    %c2_201 = arith.constant 2 : index
    %c64_202 = arith.constant 64 : index
    %c0_203 = arith.constant 0 : index
    %315 = vector.load %arg7[%c2_201, %c64_202, %c0_203] : memref<4x96x64xbf16, #tpu.memory_space<vmem>>, vector<1x32x64xbf16>
    %316 = vector.shape_cast %315 : vector<1x32x64xbf16> to vector<32x64xbf16>
    %317 = arith.extf %316 : vector<32x64xbf16> to vector<32x64xf32>
    %318 = vector.broadcast %314 : vector<1x1xf32> to vector<32x64xf32>
    %319 = arith.mulf %318, %317 : vector<32x64xf32>
    %320 = arith.addf %313, %319 : vector<32x64xf32>
    %321 = arith.mulf %296, %300 : vector<1x1xf32>
    %c3_204 = arith.constant 3 : index
    %c64_205 = arith.constant 64 : index
    %c0_206 = arith.constant 0 : index
    %322 = vector.load %arg7[%c3_204, %c64_205, %c0_206] : memref<4x96x64xbf16, #tpu.memory_space<vmem>>, vector<1x32x64xbf16>
    %323 = vector.shape_cast %322 : vector<1x32x64xbf16> to vector<32x64xbf16>
    %324 = arith.extf %323 : vector<32x64xbf16> to vector<32x64xf32>
    %325 = vector.broadcast %321 : vector<1x1xf32> to vector<32x64xf32>
    %326 = arith.mulf %325, %324 : vector<32x64xf32>
    %327 = arith.addf %320, %326 : vector<32x64xf32>
    %c0_207 = arith.constant 0 : index
    %c0_208 = arith.constant 0 : index
    %c0_209 = arith.constant 0 : index
    %c0_210 = arith.constant 0 : index
    %328 = vector.load %arg6[%c0_207, %c0_208, %c0_209, %c0_210] : memref<1x4x32x64xf32, #tpu.memory_space<vmem>>, vector<1x1x32x64xf32>
    %329 = vector.shape_cast %328 : vector<1x1x32x64xf32> to vector<32x64xf32>
    %330 = vector.shape_cast %327 : vector<32x64xf32> to vector<1x1x32x64xf32>
    tpu.vector_store %arg6[%c0_207, %c0_208, %c0_209, %c0_210], %330 {strides = array<i32>} : memref<1x4x32x64xf32, #tpu.memory_space<vmem>>, vector<1x1x32x64xf32>,
    %c1_211 = arith.constant 1 : index
    %c0_212 = arith.constant 0 : index
    %c0_213 = arith.constant 0 : index
    %331 = vector.load %arg10[%c1_211, %c0_212, %c0_213] : memref<4x64x64xf32, #tpu.memory_space<vmem>>, vector<1x32x64xf32>
    %332 = vector.shape_cast %331 : vector<1x32x64xf32> to vector<32x64xf32>
    %c0_214 = arith.constant 0 : index
    %c32_215 = arith.constant 32 : index
    %c0_216 = arith.constant 0 : index
    %333 = vector.load %arg10[%c0_214, %c32_215, %c0_216] : memref<4x64x64xf32, #tpu.memory_space<vmem>>, vector<1x32x64xf32>
    %334 = vector.shape_cast %333 : vector<1x32x64xf32> to vector<32x64xf32>
    %335 = arith.mulf %332, %334 : vector<32x64xf32>
    %cst_217 = arith.constant dense<0.000000e+00> : vector<32xf32>
    %336 = vector.multi_reduction <add>, %335, %cst_217 [1] : vector<32x64xf32> to vector<32xf32>
    %337 = vector.shape_cast %336 : vector<32xf32> to vector<32x1xf32>
    %cst_218 = arith.constant dense<0.000000e+00> : vector<1xf32>
    %338 = vector.multi_reduction <add>, %337, %cst_218 [0] : vector<32x1xf32> to vector<1xf32>
    %339 = vector.shape_cast %338 : vector<1xf32> to vector<1x1xf32>
    %c1_219 = arith.constant 1 : index
    %c32_220 = arith.constant 32 : index
    %c0_221 = arith.constant 0 : index
    %340 = vector.load %arg10[%c1_219, %c32_220, %c0_221] : memref<4x64x64xf32, #tpu.memory_space<vmem>>, vector<1x32x64xf32>
    %341 = vector.shape_cast %340 : vector<1x32x64xf32> to vector<32x64xf32>
    %342 = arith.mulf %332, %341 : vector<32x64xf32>
    %cst_222 = arith.constant dense<0.000000e+00> : vector<32xf32>
    %343 = vector.multi_reduction <add>, %342, %cst_222 [1] : vector<32x64xf32> to vector<32xf32>
    %344 = vector.shape_cast %343 : vector<32xf32> to vector<32x1xf32>
    %cst_223 = arith.constant dense<0.000000e+00> : vector<1xf32>
    %345 = vector.multi_reduction <add>, %344, %cst_223 [0] : vector<32x1xf32> to vector<1xf32>
    %346 = vector.shape_cast %345 : vector<1xf32> to vector<1x1xf32>
    %c2_224 = arith.constant 2 : index
    %c32_225 = arith.constant 32 : index
    %c0_226 = arith.constant 0 : index
    %347 = vector.load %arg10[%c2_224, %c32_225, %c0_226] : memref<4x64x64xf32, #tpu.memory_space<vmem>>, vector<1x32x64xf32>
    %348 = vector.shape_cast %347 : vector<1x32x64xf32> to vector<32x64xf32>
    %349 = arith.mulf %332, %348 : vector<32x64xf32>
    %cst_227 = arith.constant dense<0.000000e+00> : vector<32xf32>
    %350 = vector.multi_reduction <add>, %349, %cst_227 [1] : vector<32x64xf32> to vector<32xf32>
    %351 = vector.shape_cast %350 : vector<32xf32> to vector<32x1xf32>
    %cst_228 = arith.constant dense<0.000000e+00> : vector<1xf32>
    %352 = vector.multi_reduction <add>, %351, %cst_228 [0] : vector<32x1xf32> to vector<1xf32>
    %353 = vector.shape_cast %352 : vector<1xf32> to vector<1x1xf32>
    %c3_229 = arith.constant 3 : index
    %c32_230 = arith.constant 32 : index
    %c0_231 = arith.constant 0 : index
    %354 = vector.load %arg10[%c3_229, %c32_230, %c0_231] : memref<4x64x64xf32, #tpu.memory_space<vmem>>, vector<1x32x64xf32>
    %355 = vector.shape_cast %354 : vector<1x32x64xf32> to vector<32x64xf32>
    %356 = arith.mulf %332, %355 : vector<32x64xf32>
    %cst_232 = arith.constant dense<0.000000e+00> : vector<32xf32>
    %357 = vector.multi_reduction <add>, %356, %cst_232 [1] : vector<32x64xf32> to vector<32xf32>
    %358 = vector.shape_cast %357 : vector<32xf32> to vector<32x1xf32>
    %cst_233 = arith.constant dense<0.000000e+00> : vector<1xf32>
    %359 = vector.multi_reduction <add>, %358, %cst_233 [0] : vector<32x1xf32> to vector<1xf32>
    %360 = vector.shape_cast %359 : vector<1xf32> to vector<1x1xf32>
    %361 = arith.maximumf %339, %346 : vector<1x1xf32>
    %362 = arith.maximumf %361, %353 : vector<1x1xf32>
    %363 = arith.maximumf %362, %360 : vector<1x1xf32>
    %364 = arith.subf %339, %363 : vector<1x1xf32>
    %365 = math.exp %364 : vector<1x1xf32>
    %366 = arith.subf %346, %363 : vector<1x1xf32>
    %367 = math.exp %366 : vector<1x1xf32>
    %368 = arith.subf %353, %363 : vector<1x1xf32>
    %369 = math.exp %368 : vector<1x1xf32>
    %370 = arith.subf %360, %363 : vector<1x1xf32>
    %371 = math.exp %370 : vector<1x1xf32>
    %372 = arith.addf %365, %367 : vector<1x1xf32>
    %373 = arith.addf %372, %369 : vector<1x1xf32>
    %374 = arith.addf %373, %371 : vector<1x1xf32>
    %375 = tpu.reciprocal %374 : vector<1x1xf32> -> vector<1x1xf32>
    %376 = arith.mulf %365, %375 : vector<1x1xf32>
    %c0_234 = arith.constant 0 : index
    %c64_235 = arith.constant 64 : index
    %c0_236 = arith.constant 0 : index
    %377 = vector.load %arg7[%c0_234, %c64_235, %c0_236] : memref<4x96x64xbf16, #tpu.memory_space<vmem>>, vector<1x32x64xbf16>
    %378 = vector.shape_cast %377 : vector<1x32x64xbf16> to vector<32x64xbf16>
    %379 = arith.extf %378 : vector<32x64xbf16> to vector<32x64xf32>
    %380 = vector.broadcast %376 : vector<1x1xf32> to vector<32x64xf32>
    %381 = arith.mulf %380, %379 : vector<32x64xf32>
    %382 = arith.mulf %367, %375 : vector<1x1xf32>
    %c1_237 = arith.constant 1 : index
    %c64_238 = arith.constant 64 : index
    %c0_239 = arith.constant 0 : index
    %383 = vector.load %arg7[%c1_237, %c64_238, %c0_239] : memref<4x96x64xbf16, #tpu.memory_space<vmem>>, vector<1x32x64xbf16>
    %384 = vector.shape_cast %383 : vector<1x32x64xbf16> to vector<32x64xbf16>
    %385 = arith.extf %384 : vector<32x64xbf16> to vector<32x64xf32>
    %386 = vector.broadcast %382 : vector<1x1xf32> to vector<32x64xf32>
    %387 = arith.mulf %386, %385 : vector<32x64xf32>
    %388 = arith.addf %381, %387 : vector<32x64xf32>
    %389 = arith.mulf %369, %375 : vector<1x1xf32>
    %c2_240 = arith.constant 2 : index
    %c64_241 = arith.constant 64 : index
    %c0_242 = arith.constant 0 : index
    %390 = vector.load %arg7[%c2_240, %c64_241, %c0_242] : memref<4x96x64xbf16, #tpu.memory_space<vmem>>, vector<1x32x64xbf16>
    %391 = vector.shape_cast %390 : vector<1x32x64xbf16> to vector<32x64xbf16>
    %392 = arith.extf %391 : vector<32x64xbf16> to vector<32x64xf32>
    %393 = vector.broadcast %389 : vector<1x1xf32> to vector<32x64xf32>
    %394 = arith.mulf %393, %392 : vector<32x64xf32>
    %395 = arith.addf %388, %394 : vector<32x64xf32>
    %396 = arith.mulf %371, %375 : vector<1x1xf32>
    %c3_243 = arith.constant 3 : index
    %c64_244 = arith.constant 64 : index
    %c0_245 = arith.constant 0 : index
    %397 = vector.load %arg7[%c3_243, %c64_244, %c0_245] : memref<4x96x64xbf16, #tpu.memory_space<vmem>>, vector<1x32x64xbf16>
    %398 = vector.shape_cast %397 : vector<1x32x64xbf16> to vector<32x64xbf16>
    %399 = arith.extf %398 : vector<32x64xbf16> to vector<32x64xf32>
    %400 = vector.broadcast %396 : vector<1x1xf32> to vector<32x64xf32>
    %401 = arith.mulf %400, %399 : vector<32x64xf32>
    %402 = arith.addf %395, %401 : vector<32x64xf32>
    %c0_246 = arith.constant 0 : index
    %c1_247 = arith.constant 1 : index
    %c0_248 = arith.constant 0 : index
    %c0_249 = arith.constant 0 : index
    %403 = vector.load %arg6[%c0_246, %c1_247, %c0_248, %c0_249] : memref<1x4x32x64xf32, #tpu.memory_space<vmem>>, vector<1x1x32x64xf32>
    %404 = vector.shape_cast %403 : vector<1x1x32x64xf32> to vector<32x64xf32>
    %405 = vector.shape_cast %402 : vector<32x64xf32> to vector<1x1x32x64xf32>
    tpu.vector_store %arg6[%c0_246, %c1_247, %c0_248, %c0_249], %405 {strides = array<i32>} : memref<1x4x32x64xf32, #tpu.memory_space<vmem>>, vector<1x1x32x64xf32>,
    %c2_250 = arith.constant 2 : index
    %c0_251 = arith.constant 0 : index
    %c0_252 = arith.constant 0 : index
    %406 = vector.load %arg10[%c2_250, %c0_251, %c0_252] : memref<4x64x64xf32, #tpu.memory_space<vmem>>, vector<1x32x64xf32>
    %407 = vector.shape_cast %406 : vector<1x32x64xf32> to vector<32x64xf32>
    %c0_253 = arith.constant 0 : index
    %c32_254 = arith.constant 32 : index
    %c0_255 = arith.constant 0 : index
    %408 = vector.load %arg10[%c0_253, %c32_254, %c0_255] : memref<4x64x64xf32, #tpu.memory_space<vmem>>, vector<1x32x64xf32>
    %409 = vector.shape_cast %408 : vector<1x32x64xf32> to vector<32x64xf32>
    %410 = arith.mulf %407, %409 : vector<32x64xf32>
    %cst_256 = arith.constant dense<0.000000e+00> : vector<32xf32>
    %411 = vector.multi_reduction <add>, %410, %cst_256 [1] : vector<32x64xf32> to vector<32xf32>
    %412 = vector.shape_cast %411 : vector<32xf32> to vector<32x1xf32>
    %cst_257 = arith.constant dense<0.000000e+00> : vector<1xf32>
    %413 = vector.multi_reduction <add>, %412, %cst_257 [0] : vector<32x1xf32> to vector<1xf32>
    %414 = vector.shape_cast %413 : vector<1xf32> to vector<1x1xf32>
    %c1_258 = arith.constant 1 : index
    %c32_259 = arith.constant 32 : index
    %c0_260 = arith.constant 0 : index
    %415 = vector.load %arg10[%c1_258, %c32_259, %c0_260] : memref<4x64x64xf32, #tpu.memory_space<vmem>>, vector<1x32x64xf32>
    %416 = vector.shape_cast %415 : vector<1x32x64xf32> to vector<32x64xf32>
    %417 = arith.mulf %407, %416 : vector<32x64xf32>
    %cst_261 = arith.constant dense<0.000000e+00> : vector<32xf32>
    %418 = vector.multi_reduction <add>, %417, %cst_261 [1] : vector<32x64xf32> to vector<32xf32>
    %419 = vector.shape_cast %418 : vector<32xf32> to vector<32x1xf32>
    %cst_262 = arith.constant dense<0.000000e+00> : vector<1xf32>
    %420 = vector.multi_reduction <add>, %419, %cst_262 [0] : vector<32x1xf32> to vector<1xf32>
    %421 = vector.shape_cast %420 : vector<1xf32> to vector<1x1xf32>
    %c2_263 = arith.constant 2 : index
    %c32_264 = arith.constant 32 : index
    %c0_265 = arith.constant 0 : index
    %422 = vector.load %arg10[%c2_263, %c32_264, %c0_265] : memref<4x64x64xf32, #tpu.memory_space<vmem>>, vector<1x32x64xf32>
    %423 = vector.shape_cast %422 : vector<1x32x64xf32> to vector<32x64xf32>
    %424 = arith.mulf %407, %423 : vector<32x64xf32>
    %cst_266 = arith.constant dense<0.000000e+00> : vector<32xf32>
    %425 = vector.multi_reduction <add>, %424, %cst_266 [1] : vector<32x64xf32> to vector<32xf32>
    %426 = vector.shape_cast %425 : vector<32xf32> to vector<32x1xf32>
    %cst_267 = arith.constant dense<0.000000e+00> : vector<1xf32>
    %427 = vector.multi_reduction <add>, %426, %cst_267 [0] : vector<32x1xf32> to vector<1xf32>
    %428 = vector.shape_cast %427 : vector<1xf32> to vector<1x1xf32>
    %c3_268 = arith.constant 3 : index
    %c32_269 = arith.constant 32 : index
    %c0_270 = arith.constant 0 : index
    %429 = vector.load %arg10[%c3_268, %c32_269, %c0_270] : memref<4x64x64xf32, #tpu.memory_space<vmem>>, vector<1x32x64xf32>
    %430 = vector.shape_cast %429 : vector<1x32x64xf32> to vector<32x64xf32>
    %431 = arith.mulf %407, %430 : vector<32x64xf32>
    %cst_271 = arith.constant dense<0.000000e+00> : vector<32xf32>
    %432 = vector.multi_reduction <add>, %431, %cst_271 [1] : vector<32x64xf32> to vector<32xf32>
    %433 = vector.shape_cast %432 : vector<32xf32> to vector<32x1xf32>
    %cst_272 = arith.constant dense<0.000000e+00> : vector<1xf32>
    %434 = vector.multi_reduction <add>, %433, %cst_272 [0] : vector<32x1xf32> to vector<1xf32>
    %435 = vector.shape_cast %434 : vector<1xf32> to vector<1x1xf32>
    %436 = arith.maximumf %414, %421 : vector<1x1xf32>
    %437 = arith.maximumf %436, %428 : vector<1x1xf32>
    %438 = arith.maximumf %437, %435 : vector<1x1xf32>
    %439 = arith.subf %414, %438 : vector<1x1xf32>
    %440 = math.exp %439 : vector<1x1xf32>
    %441 = arith.subf %421, %438 : vector<1x1xf32>
    %442 = math.exp %441 : vector<1x1xf32>
    %443 = arith.subf %428, %438 : vector<1x1xf32>
    %444 = math.exp %443 : vector<1x1xf32>
    %445 = arith.subf %435, %438 : vector<1x1xf32>
    %446 = math.exp %445 : vector<1x1xf32>
    %447 = arith.addf %440, %442 : vector<1x1xf32>
    %448 = arith.addf %447, %444 : vector<1x1xf32>
    %449 = arith.addf %448, %446 : vector<1x1xf32>
    %450 = tpu.reciprocal %449 : vector<1x1xf32> -> vector<1x1xf32>
    %451 = arith.mulf %440, %450 : vector<1x1xf32>
    %c0_273 = arith.constant 0 : index
    %c64_274 = arith.constant 64 : index
    %c0_275 = arith.constant 0 : index
    %452 = vector.load %arg7[%c0_273, %c64_274, %c0_275] : memref<4x96x64xbf16, #tpu.memory_space<vmem>>, vector<1x32x64xbf16>
    %453 = vector.shape_cast %452 : vector<1x32x64xbf16> to vector<32x64xbf16>
    %454 = arith.extf %453 : vector<32x64xbf16> to vector<32x64xf32>
    %455 = vector.broadcast %451 : vector<1x1xf32> to vector<32x64xf32>
    %456 = arith.mulf %455, %454 : vector<32x64xf32>
    %457 = arith.mulf %442, %450 : vector<1x1xf32>
    %c1_276 = arith.constant 1 : index
    %c64_277 = arith.constant 64 : index
    %c0_278 = arith.constant 0 : index
    %458 = vector.load %arg7[%c1_276, %c64_277, %c0_278] : memref<4x96x64xbf16, #tpu.memory_space<vmem>>, vector<1x32x64xbf16>
    %459 = vector.shape_cast %458 : vector<1x32x64xbf16> to vector<32x64xbf16>
    %460 = arith.extf %459 : vector<32x64xbf16> to vector<32x64xf32>
    %461 = vector.broadcast %457 : vector<1x1xf32> to vector<32x64xf32>
    %462 = arith.mulf %461, %460 : vector<32x64xf32>
    %463 = arith.addf %456, %462 : vector<32x64xf32>
    %464 = arith.mulf %444, %450 : vector<1x1xf32>
    %c2_279 = arith.constant 2 : index
    %c64_280 = arith.constant 64 : index
    %c0_281 = arith.constant 0 : index
    %465 = vector.load %arg7[%c2_279, %c64_280, %c0_281] : memref<4x96x64xbf16, #tpu.memory_space<vmem>>, vector<1x32x64xbf16>
    %466 = vector.shape_cast %465 : vector<1x32x64xbf16> to vector<32x64xbf16>
    %467 = arith.extf %466 : vector<32x64xbf16> to vector<32x64xf32>
    %468 = vector.broadcast %464 : vector<1x1xf32> to vector<32x64xf32>
    %469 = arith.mulf %468, %467 : vector<32x64xf32>
    %470 = arith.addf %463, %469 : vector<32x64xf32>
    %471 = arith.mulf %446, %450 : vector<1x1xf32>
    %c3_282 = arith.constant 3 : index
    %c64_283 = arith.constant 64 : index
    %c0_284 = arith.constant 0 : index
    %472 = vector.load %arg7[%c3_282, %c64_283, %c0_284] : memref<4x96x64xbf16, #tpu.memory_space<vmem>>, vector<1x32x64xbf16>
    %473 = vector.shape_cast %472 : vector<1x32x64xbf16> to vector<32x64xbf16>
    %474 = arith.extf %473 : vector<32x64xbf16> to vector<32x64xf32>
    %475 = vector.broadcast %471 : vector<1x1xf32> to vector<32x64xf32>
    %476 = arith.mulf %475, %474 : vector<32x64xf32>
    %477 = arith.addf %470, %476 : vector<32x64xf32>
    %c0_285 = arith.constant 0 : index
    %c2_286 = arith.constant 2 : index
    %c0_287 = arith.constant 0 : index
    %c0_288 = arith.constant 0 : index
    %478 = vector.load %arg6[%c0_285, %c2_286, %c0_287, %c0_288] : memref<1x4x32x64xf32, #tpu.memory_space<vmem>>, vector<1x1x32x64xf32>
    %479 = vector.shape_cast %478 : vector<1x1x32x64xf32> to vector<32x64xf32>
    %480 = vector.shape_cast %477 : vector<32x64xf32> to vector<1x1x32x64xf32>
    tpu.vector_store %arg6[%c0_285, %c2_286, %c0_287, %c0_288], %480 {strides = array<i32>} : memref<1x4x32x64xf32, #tpu.memory_space<vmem>>, vector<1x1x32x64xf32>,
    %c3_289 = arith.constant 3 : index
    %c0_290 = arith.constant 0 : index
    %c0_291 = arith.constant 0 : index
    %481 = vector.load %arg10[%c3_289, %c0_290, %c0_291] : memref<4x64x64xf32, #tpu.memory_space<vmem>>, vector<1x32x64xf32>
    %482 = vector.shape_cast %481 : vector<1x32x64xf32> to vector<32x64xf32>
    %c0_292 = arith.constant 0 : index
    %c32_293 = arith.constant 32 : index
    %c0_294 = arith.constant 0 : index
    %483 = vector.load %arg10[%c0_292, %c32_293, %c0_294] : memref<4x64x64xf32, #tpu.memory_space<vmem>>, vector<1x32x64xf32>
    %484 = vector.shape_cast %483 : vector<1x32x64xf32> to vector<32x64xf32>
    %485 = arith.mulf %482, %484 : vector<32x64xf32>
    %cst_295 = arith.constant dense<0.000000e+00> : vector<32xf32>
    %486 = vector.multi_reduction <add>, %485, %cst_295 [1] : vector<32x64xf32> to vector<32xf32>
    %487 = vector.shape_cast %486 : vector<32xf32> to vector<32x1xf32>
    %cst_296 = arith.constant dense<0.000000e+00> : vector<1xf32>
    %488 = vector.multi_reduction <add>, %487, %cst_296 [0] : vector<32x1xf32> to vector<1xf32>
    %489 = vector.shape_cast %488 : vector<1xf32> to vector<1x1xf32>
    %c1_297 = arith.constant 1 : index
    %c32_298 = arith.constant 32 : index
    %c0_299 = arith.constant 0 : index
    %490 = vector.load %arg10[%c1_297, %c32_298, %c0_299] : memref<4x64x64xf32, #tpu.memory_space<vmem>>, vector<1x32x64xf32>
    %491 = vector.shape_cast %490 : vector<1x32x64xf32> to vector<32x64xf32>
    %492 = arith.mulf %482, %491 : vector<32x64xf32>
    %cst_300 = arith.constant dense<0.000000e+00> : vector<32xf32>
    %493 = vector.multi_reduction <add>, %492, %cst_300 [1] : vector<32x64xf32> to vector<32xf32>
    %494 = vector.shape_cast %493 : vector<32xf32> to vector<32x1xf32>
    %cst_301 = arith.constant dense<0.000000e+00> : vector<1xf32>
    %495 = vector.multi_reduction <add>, %494, %cst_301 [0] : vector<32x1xf32> to vector<1xf32>
    %496 = vector.shape_cast %495 : vector<1xf32> to vector<1x1xf32>
    %c2_302 = arith.constant 2 : index
    %c32_303 = arith.constant 32 : index
    %c0_304 = arith.constant 0 : index
    %497 = vector.load %arg10[%c2_302, %c32_303, %c0_304] : memref<4x64x64xf32, #tpu.memory_space<vmem>>, vector<1x32x64xf32>
    %498 = vector.shape_cast %497 : vector<1x32x64xf32> to vector<32x64xf32>
    %499 = arith.mulf %482, %498 : vector<32x64xf32>
    %cst_305 = arith.constant dense<0.000000e+00> : vector<32xf32>
    %500 = vector.multi_reduction <add>, %499, %cst_305 [1] : vector<32x64xf32> to vector<32xf32>
    %501 = vector.shape_cast %500 : vector<32xf32> to vector<32x1xf32>
    %cst_306 = arith.constant dense<0.000000e+00> : vector<1xf32>
    %502 = vector.multi_reduction <add>, %501, %cst_306 [0] : vector<32x1xf32> to vector<1xf32>
    %503 = vector.shape_cast %502 : vector<1xf32> to vector<1x1xf32>
    %c3_307 = arith.constant 3 : index
    %c32_308 = arith.constant 32 : index
    %c0_309 = arith.constant 0 : index
    %504 = vector.load %arg10[%c3_307, %c32_308, %c0_309] : memref<4x64x64xf32, #tpu.memory_space<vmem>>, vector<1x32x64xf32>
    %505 = vector.shape_cast %504 : vector<1x32x64xf32> to vector<32x64xf32>
    %506 = arith.mulf %482, %505 : vector<32x64xf32>
    %cst_310 = arith.constant dense<0.000000e+00> : vector<32xf32>
    %507 = vector.multi_reduction <add>, %506, %cst_310 [1] : vector<32x64xf32> to vector<32xf32>
    %508 = vector.shape_cast %507 : vector<32xf32> to vector<32x1xf32>
    %cst_311 = arith.constant dense<0.000000e+00> : vector<1xf32>
    %509 = vector.multi_reduction <add>, %508, %cst_311 [0] : vector<32x1xf32> to vector<1xf32>
    %510 = vector.shape_cast %509 : vector<1xf32> to vector<1x1xf32>
    %511 = arith.maximumf %489, %496 : vector<1x1xf32>
    %512 = arith.maximumf %511, %503 : vector<1x1xf32>
    %513 = arith.maximumf %512, %510 : vector<1x1xf32>
    %514 = arith.subf %489, %513 : vector<1x1xf32>
    %515 = math.exp %514 : vector<1x1xf32>
    %516 = arith.subf %496, %513 : vector<1x1xf32>
    %517 = math.exp %516 : vector<1x1xf32>
    %518 = arith.subf %503, %513 : vector<1x1xf32>
    %519 = math.exp %518 : vector<1x1xf32>
    %520 = arith.subf %510, %513 : vector<1x1xf32>
    %521 = math.exp %520 : vector<1x1xf32>
    %522 = arith.addf %515, %517 : vector<1x1xf32>
    %523 = arith.addf %522, %519 : vector<1x1xf32>
    %524 = arith.addf %523, %521 : vector<1x1xf32>
    %525 = tpu.reciprocal %524 : vector<1x1xf32> -> vector<1x1xf32>
    %526 = arith.mulf %515, %525 : vector<1x1xf32>
    %c0_312 = arith.constant 0 : index
    %c64_313 = arith.constant 64 : index
    %c0_314 = arith.constant 0 : index
    %527 = vector.load %arg7[%c0_312, %c64_313, %c0_314] : memref<4x96x64xbf16, #tpu.memory_space<vmem>>, vector<1x32x64xbf16>
    %528 = vector.shape_cast %527 : vector<1x32x64xbf16> to vector<32x64xbf16>
    %529 = arith.extf %528 : vector<32x64xbf16> to vector<32x64xf32>
    %530 = vector.broadcast %526 : vector<1x1xf32> to vector<32x64xf32>
    %531 = arith.mulf %530, %529 : vector<32x64xf32>
    %532 = arith.mulf %517, %525 : vector<1x1xf32>
    %c1_315 = arith.constant 1 : index
    %c64_316 = arith.constant 64 : index
    %c0_317 = arith.constant 0 : index
    %533 = vector.load %arg7[%c1_315, %c64_316, %c0_317] : memref<4x96x64xbf16, #tpu.memory_space<vmem>>, vector<1x32x64xbf16>
    %534 = vector.shape_cast %533 : vector<1x32x64xbf16> to vector<32x64xbf16>
    %535 = arith.extf %534 : vector<32x64xbf16> to vector<32x64xf32>
    %536 = vector.broadcast %532 : vector<1x1xf32> to vector<32x64xf32>
    %537 = arith.mulf %536, %535 : vector<32x64xf32>
    %538 = arith.addf %531, %537 : vector<32x64xf32>
    %539 = arith.mulf %519, %525 : vector<1x1xf32>
    %c2_318 = arith.constant 2 : index
    %c64_319 = arith.constant 64 : index
    %c0_320 = arith.constant 0 : index
    %540 = vector.load %arg7[%c2_318, %c64_319, %c0_320] : memref<4x96x64xbf16, #tpu.memory_space<vmem>>, vector<1x32x64xbf16>
    %541 = vector.shape_cast %540 : vector<1x32x64xbf16> to vector<32x64xbf16>
    %542 = arith.extf %541 : vector<32x64xbf16> to vector<32x64xf32>
    %543 = vector.broadcast %539 : vector<1x1xf32> to vector<32x64xf32>
    %544 = arith.mulf %543, %542 : vector<32x64xf32>
    %545 = arith.addf %538, %544 : vector<32x64xf32>
    %546 = arith.mulf %521, %525 : vector<1x1xf32>
    %c3_321 = arith.constant 3 : index
    %c64_322 = arith.constant 64 : index
    %c0_323 = arith.constant 0 : index
    %547 = vector.load %arg7[%c3_321, %c64_322, %c0_323] : memref<4x96x64xbf16, #tpu.memory_space<vmem>>, vector<1x32x64xbf16>
    %548 = vector.shape_cast %547 : vector<1x32x64xbf16> to vector<32x64xbf16>
    %549 = arith.extf %548 : vector<32x64xbf16> to vector<32x64xf32>
    %550 = vector.broadcast %546 : vector<1x1xf32> to vector<32x64xf32>
    %551 = arith.mulf %550, %549 : vector<32x64xf32>
    %552 = arith.addf %545, %551 : vector<32x64xf32>
    %c0_324 = arith.constant 0 : index
    %c3_325 = arith.constant 3 : index
    %c0_326 = arith.constant 0 : index
    %c0_327 = arith.constant 0 : index
    %553 = vector.load %arg6[%c0_324, %c3_325, %c0_326, %c0_327] : memref<1x4x32x64xf32, #tpu.memory_space<vmem>>, vector<1x1x32x64xf32>
    %554 = vector.shape_cast %553 : vector<1x1x32x64xf32> to vector<32x64xf32>
    %555 = vector.shape_cast %552 : vector<32x64xf32> to vector<1x1x32x64xf32>
    tpu.vector_store %arg6[%c0_324, %c3_325, %c0_326, %c0_327], %555 {strides = array<i32>} : memref<1x4x32x64xf32, #tpu.memory_space<vmem>>, vector<1x1x32x64xf32>,
    return
  }
  func.func @transform_0(%arg0: i32) -> (i32, i32, i32, i32) {
    %c0_i32 = arith.constant 0 : i32
    %c0_i32_0 = arith.constant 0 : i32
    %c0_i32_1 = arith.constant 0 : i32
    %c0_i32_2 = arith.constant 0 : i32
    return %arg0, %c0_i32, %c0_i32_0, %c0_i32_1 : i32, i32, i32, i32
  }
  func.func @transform_1(%arg0: i32) -> (i32, i32) {
    %c0_i32 = arith.constant 0 : i32
    %c0_i32_0 = arith.constant 0 : i32
    %c0_i32_1 = arith.constant 0 : i32
    return %c0_i32, %c0_i32_0 : i32, i32
  }
  func.func @transform_2(%arg0: i32) -> (i32, i32) {
    %c0_i32 = arith.constant 0 : i32
    %c0_i32_0 = arith.constant 0 : i32
    %c0_i32_1 = arith.constant 0 : i32
    return %c0_i32, %c0_i32_0 : i32, i32
  }
  func.func @transform_3(%arg0: i32) -> (i32, i32) {
    %c0_i32 = arith.constant 0 : i32
    %c0_i32_0 = arith.constant 0 : i32
    %c0_i32_1 = arith.constant 0 : i32
    return %c0_i32, %c0_i32_0 : i32, i32
  }
  func.func @transform_4(%arg0: i32) -> (i32, i32) {
    %c0_i32 = arith.constant 0 : i32
    %c0_i32_0 = arith.constant 0 : i32
    %c0_i32_1 = arith.constant 0 : i32
    return %c0_i32, %c0_i32_0 : i32, i32
  }
  func.func @transform_5(%arg0: i32) -> (i32, i32, i32, i32) {
    %c0_i32 = arith.constant 0 : i32
    %c0_i32_0 = arith.constant 0 : i32
    %c0_i32_1 = arith.constant 0 : i32
    %c0_i32_2 = arith.constant 0 : i32
    return %arg0, %c0_i32, %c0_i32_0, %c0_i32_1 : i32, i32, i32, i32
  }
}

</mosaic_0001>

<llo_original>
// kernel: tpu_custom_call.1
$region0: #{tpu_custom_call.1}
  #allocation0 [shape = 'u32[]', space=smem, size = 0x4, offset = 0x4, fixed_abs, tag = 'smem constant byte address 0x4 - core index']
  #allocation1 [shape = 'u32[144,128]{1,0:T(1,128)}', space=vmem, size = 0x12000, scoped, tag = 'internal scratch']
  #allocation2 [shape = 'bf16[4,96,64]{2,1,0:T(16,128)(2,1)}', space=vmem, size = 0x18000, scoped, tag = 'scratch operand']
  #allocation3 [shape = 'bf16[32,256]{1,0:T(16,128)(2,1)}', space=vmem, size = 0x4000, scoped, tag = 'scratch operand']
  #allocation4 [shape = 'f32[192,256]{1,0:T(8,128)}', space=vmem, size = 0x30000, scoped, tag = 'scratch operand']
  #allocation5 [shape = 'f32[4,64,64]{2,1,0:T(8,128)}', space=vmem, size = 0x20000, scoped, tag = 'scratch operand']
  %s0 = inlined_call_operand.vmem [shape: f32[2,4,32,64], index: 0, kind: input, shape index: {}]
  %s1 = inlined_call_operand.vmem [shape: bf16[96,32], index: 1, kind: input, shape index: {}]
  %s2 = inlined_call_operand.vmem [shape: f32[96,1], index: 2, kind: input, shape index: {}]
  %s3 = inlined_call_operand.vmem [shape: bf16[192,32], index: 3, kind: input, shape index: {}]
  %s4 = inlined_call_operand.vmem [shape: f32[64,1], index: 4, kind: input, shape index: {}]
  %s5 = inlined_call_operand.hbm [shape: f32[2,4,32,64], index: 5, kind: output, shape index: {}]
  %s6 = sld [smem:[#allocation0]]
  $region53: #{tpu_custom_call.1} parent=0
    _
  %s8 = ssub.s32 1, %s6
  %s9 = scalar_select 0, %s8, %s6
  $region1: #{tpu_custom_call.1} parent=0
    #allocation6 [shape = 'u8[131072]{0}', space=vmem, size = 0x20000, scoped, tag = 'output window, operand 0']
    #allocation7 [shape = 's32[2]{0}', space=sflag, size = 0x8, scoped, tag = 'scoped memory for tpu_custom_call.1']
    %10 = vsyncpa [#allocation7], 0
    %s11 = scalar_lea.sflag [#allocation7], 1
    %12 = vsyncpa %s11, 0
    loop: start=0, step=1, limit=4
    $region2: #{tpu_custom_call.1} parent=1 // loop_pre_header
      _
    $region3: #{tpu_custom_call.1} parent=1 // loop_header
      %s14 = sphi 0, %s18
      %p15 = scmp.ge.s32.totalorder %s14, 4
      %s24 = sphi 0, %s26
      %s27 = sphi 0, %s24
      %s28 = sphi 0, %s27
      %s44 = sphi 0, %s28
      %s48 = sphi 0, %s48
      %s50 = sphi 0, %s48
      %s51 = sphi 0, %s50
      %s65 = sphi 0, %s51
      %s69 = sphi 0, %s69
      %s71 = sphi 0, %s69
      %s72 = sphi 0, %s71
      %s86 = sphi 0, %s72
      %s90 = sphi 0, %s90
      %s92 = sphi 0, %s90
      %s93 = sphi 0, %s92
      %s107 = sphi 0, %s93
      %s111 = sphi 0, %s111
      %s113 = sphi 0, %s111
      %s114 = sphi 0, %s113
      %s128 = sphi 0, %s114
      %s134 = sphi 0, %s136
      %s137 = sphi 0, %s134
      %s138 = sphi 0, %s137
      %s154 = sphi 0, %s138
    $region4: #{tpu_custom_call.1} parent=1 // loop_header_branch
      %17 = sbr.rel (%p15) target = $region8
    $region5: #{tpu_custom_call.1} parent=1 // loop_body
      %s19 = ssub.s32 %s14, 1
      %s20 = ssub.s32 %s14, 2
      %s21 = sadd.s32 %s14, 1
      %s22 = ssub.s32 %s14, %s21
      %p23 = scmp.eq.s32.totalorder %s22, 0
      %s25 = sadd.s32 %s24, 1
      %s26 = scalar_select %p23, %s24, %s25
      %p29 = pneg %p23
      %p30 = scmp.eq.s32.totalorder %s14, 1
      %p31 = por %p29, %p30
      %p32 = scmp.ne.s32.totalorder %s24, %s27
      %p33 = scmp.eq.s32.totalorder %s14, 0
      %p34 = por %p32, %p33
      %p35 = scmp.ne.s32.totalorder %s24, %s27
      %p36 = scmp.eq.s32.totalorder %s19, 1
      %p37 = por %p35, %p36
      %p38 = scmp.ne.s32.totalorder %s27, %s28
      %p39 = scmp.eq.s32.totalorder %s19, 0
      %p40 = por %p38, %p39
      %p41 = scmp.ne.s32.totalorder %s27, %s28
      %p42 = scmp.eq.s32.totalorder %s20, 1
      %p43 = por %p41, %p42
      %p45 = scmp.ne.s32.totalorder %s28, %s44
      %p46 = scmp.eq.s32.totalorder %s20, 0
      %p47 = por %p45, %p46
      %s49 = sadd.s32 %s48, 1
      %p52 = scmp.eq.s32.totalorder %s14, 1
      %p53 = scmp.ne.s32.totalorder %s48, %s50
      %p54 = scmp.eq.s32.totalorder %s14, 0
      %p55 = por %p53, %p54
      %p56 = scmp.ne.s32.totalorder %s48, %s50
      %p57 = scmp.eq.s32.totalorder %s19, 1
      %p58 = por %p56, %p57
      %p59 = scmp.ne.s32.totalorder %s50, %s51
      %p60 = scmp.eq.s32.totalorder %s19, 0
      %p61 = por %p59, %p60
      %p62 = scmp.ne.s32.totalorder %s50, %s51
      %p63 = scmp.eq.s32.totalorder %s20, 1
      %p64 = por %p62, %p63
      %p66 = scmp.ne.s32.totalorder %s51, %s65
      %p67 = scmp.eq.s32.totalorder %s20, 0
      %p68 = por %p66, %p67
      %s70 = sadd.s32 %s69, 1
      %p73 = scmp.eq.s32.totalorder %s14, 1
      %p74 = scmp.ne.s32.totalorder %s69, %s71
      %p75 = scmp.eq.s32.totalorder %s14, 0
      %p76 = por %p74, %p75
      %p77 = scmp.ne.s32.totalorder %s69, %s71
      %p78 = scmp.eq.s32.totalorder %s19, 1
      %p79 = por %p77, %p78
      %p80 = scmp.ne.s32.totalorder %s71, %s72
      %p81 = scmp.eq.s32.totalorder %s19, 0
      %p82 = por %p80, %p81
      %p83 = scmp.ne.s32.totalorder %s71, %s72
      %p84 = scmp.eq.s32.totalorder %s20, 1
      %p85 = por %p83, %p84
      %p87 = scmp.ne.s32.totalorder %s72, %s86
      %p88 = scmp.eq.s32.totalorder %s20, 0
      %p89 = por %p87, %p88
      %s91 = sadd.s32 %s90, 1
      %p94 = scmp.eq.s32.totalorder %s14, 1
      %p95 = scmp.ne.s32.totalorder %s90, %s92
      %p96 = scmp.eq.s32.totalorder %s14, 0
      %p97 = por %p95, %p96
      %p98 = scmp.ne.s32.totalorder %s90, %s92
      %p99 = scmp.eq.s32.totalorder %s19, 1
      %p100 = por %p98, %p99
      %p101 = scmp.ne.s32.totalorder %s92, %s93
      %p102 = scmp.eq.s32.totalorder %s19, 0
      %p103 = por %p101, %p102
      %p104 = scmp.ne.s32.totalorder %s92, %s93
      %p105 = scmp.eq.s32.totalorder %s20, 1
      %p106 = por %p104, %p105
      %p108 = scmp.ne.s32.totalorder %s93, %s107
      %p109 = scmp.eq.s32.totalorder %s20, 0
      %p110 = por %p108, %p109
      %s112 = sadd.s32 %s111, 1
      %p115 = scmp.eq.s32.totalorder %s14, 1
      %p116 = scmp.ne.s32.totalorder %s111, %s113
      %p117 = scmp.eq.s32.totalorder %s14, 0
      %p118 = por %p116, %p117
      %p119 = scmp.ne.s32.totalorder %s111, %s113
      %p120 = scmp.eq.s32.totalorder %s19, 1
      %p121 = por %p119, %p120
      %p122 = scmp.ne.s32.totalorder %s113, %s114
      %p123 = scmp.eq.s32.totalorder %s19, 0
      %p124 = por %p122, %p123
      %p125 = scmp.ne.s32.totalorder %s113, %s114
      %p126 = scmp.eq.s32.totalorder %s20, 1
      %p127 = por %p125, %p126
      %p129 = scmp.ne.s32.totalorder %s114, %s128
      %p130 = scmp.eq.s32.totalorder %s20, 0
      %p131 = por %p129, %p130
      %s132 = ssub.s32 %s14, %s21
      %p133 = scmp.eq.s32.totalorder %s132, 0
      %s135 = sadd.s32 %s134, 1
      %s136 = scalar_select %p133, %s134, %s135
      %p139 = pneg %p133
      %p140 = scmp.eq.s32.totalorder %s14, 1
      %p141 = por %p139, %p140
      %p142 = scmp.ne.s32.totalorder %s134, %s137
      %p143 = scmp.eq.s32.totalorder %s14, 0
      %p144 = por %p142, %p143
      %p145 = scmp.ne.s32.totalorder %s134, %s137
      %p146 = scmp.eq.s32.totalorder %s19, 1
      %p147 = por %p145, %p146
      %p148 = scmp.ne.s32.totalorder %s137, %s138
      %p149 = scmp.eq.s32.totalorder %s19, 0
      %p150 = por %p148, %p149
      %p151 = scmp.ne.s32.totalorder %s137, %s138
      %p152 = scmp.eq.s32.totalorder %s20, 1
      %p153 = por %p151, %p152
      %p155 = scmp.ne.s32.totalorder %s138, %s154
      %p156 = scmp.eq.s32.totalorder %s20, 0
      %p157 = por %p155, %p156
      %p158 = scmp.le.s32.totalorder 1, %s14
      %p159 = scmp.lt.s32.totalorder %s14, 3
      %p160 = pnand %p158, %p159
      %p161 = pneg %p160
      // Predicated region
      $region9: #{tpu_custom_call.1} parent=5 // pred_check
        _
      $region10: #{tpu_custom_call.1} parent=5 // pred_check_branch
        %163 = sbr.rel (%p160) target = $region12
      $region11: #{tpu_custom_call.1} parent=5 // pred_region
        %s164 = ssub.s32 %s14, 1
        // Predicated region
        $region13: #{tpu_custom_call.1} parent=11 // pred_check
          %p165 = pneg %p61
        $region14: #{tpu_custom_call.1} parent=11 // pred_check_branch
          %167 = sbr.rel (%p165) target = $region16
        $region15: #{tpu_custom_call.1} parent=11 // pred_region
          _
        $region16: #{tpu_custom_call.1} parent=11 // pred_fallthru
          _
        // Predicated region
        $region17: #{tpu_custom_call.1} parent=11 // pred_check
          %p168 = pneg %p82
        $region18: #{tpu_custom_call.1} parent=11 // pred_check_branch
          %170 = sbr.rel (%p168) target = $region20
        $region19: #{tpu_custom_call.1} parent=11 // pred_region
          _
        $region20: #{tpu_custom_call.1} parent=11 // pred_fallthru
          _
        // Predicated region
        $region21: #{tpu_custom_call.1} parent=11 // pred_check
          %p171 = pneg %p103
        $region22: #{tpu_custom_call.1} parent=11 // pred_check_branch
          %173 = sbr.rel (%p171) target = $region24
        $region23: #{tpu_custom_call.1} parent=11 // pred_region
          _
        $region24: #{tpu_custom_call.1} parent=11 // pred_fallthru
          _
        // Predicated region
        $region25: #{tpu_custom_call.1} parent=11 // pred_check
          %p174 = pneg %p124
        $region26: #{tpu_custom_call.1} parent=11 // pred_check_branch
          %176 = sbr.rel (%p174) target = $region28
        $region27: #{tpu_custom_call.1} parent=11 // pred_region
          _
        $region28: #{tpu_custom_call.1} parent=11 // pred_fallthru
          _
      $region12: #{tpu_custom_call.1} parent=5 // pred_fallthru
        _
      %p177 = scmp.lt.s32.totalorder %s14, 2
      // Predicated region
      $region29: #{tpu_custom_call.1} parent=5 // pred_check
        %p178 = pneg %p177
      $region30: #{tpu_custom_call.1} parent=5 // pred_check_branch
        %180 = sbr.rel (%p178) target = $region32
      $region31: #{tpu_custom_call.1} parent=5 // pred_region
        // Predicated region
        $region33: #{tpu_custom_call.1} parent=31 // pred_check
          %p181 = pneg %p34
        $region34: #{tpu_custom_call.1} parent=31 // pred_check_branch
          %183 = sbr.rel (%p181) target = $region36
        $region35: #{tpu_custom_call.1} parent=31 // pred_region
          %p184 = scmp.lt.s32.totalorder %s14, 1
          %s185 = scalar_select %p184, %s14, 1
          %s186 = smul.addr %s185, 16
          %s187 = smul.addr %s186, 8
          %s188 = scalar_lea.vmem %s0, %s187
        $region36: #{tpu_custom_call.1} parent=31 // pred_fallthru
          _
      $region32: #{tpu_custom_call.1} parent=5 // pred_fallthru
        _
      %p189 = scmp.le.s32.totalorder 1, %s14
      %p190 = scmp.lt.s32.totalorder %s14, 3
      %p191 = pnand %p189, %p190
      %p192 = pneg %p191
      // Predicated region
      $region37: #{tpu_custom_call.1} parent=5 // pred_check
        _
      $region38: #{tpu_custom_call.1} parent=5 // pred_check_branch
        %194 = sbr.rel (%p191) target = $region40
      $region39: #{tpu_custom_call.1} parent=5 // pred_region
        %s195 = ssub.s32 %s14, 1
        %p196 = scmp.lt.s32.totalorder %s19, 1
        %s197 = scalar_select %p196, %s19, 1
        %s198 = smul.addr %s197, 16
        %s199 = smul.addr %s198, 8
        %s200 = scalar_lea.vmem %s0, %s199
        %p201 = pneg %p40
        %p202 = pneg %p37
        %p203 = pneg %p61
        %p204 = pneg %p58
        %p205 = pneg %p82
        %p206 = pneg %p79
        %p207 = pneg %p103
        %p208 = pneg %p100
        %p209 = pneg %p124
        %p210 = pneg %p121
        %p211 = pneg %p150
        %p212 = pneg %p147
        %s213 = sand.u32 %s137, 1
        %s214 = scalar_lea.sflag [#allocation7], %s213
        %s215 = sand.u32 %s137, 1
        %s216 = smul.addr %s215, 128
        %s217 = scalar_lea.vmem [#allocation6], %s216
        %p218 = scmp.lt.s32.totalorder %s19, 1
        %s219 = scalar_select %p218, %s19, 1
        %s220 = smul.addr %s219, 16
        %s221 = smul.addr %s220, 8
        %s222 = scalar_lea.vmem %s0, %s221
        %v224 = vld [vmem:[%s222] sm:$0xff]
        %v225 = vld [vmem:[%s222 + $0x8] sm:$0xff]
        %v226 = vld [vmem:[%s222 + $0x10] sm:$0xff]
        %v227 = vld [vmem:[%s222 + $0x18] sm:$0xff]
        %v228 = vpack.c.bf16 %v225, %v224
        %v229 = vpack.c.bf16 %v227, %v226
        %v230 = vld [vmem:[%s1] sm:$0xf]
        %v231 = vld [vmem:[%s1 + $0x4] sm:$0xf]
        %v232 = vld [vmem:[%s1 + $0x8] sm:$0xf]
        %v233 = vld [vmem:[%s1 + $0xc] sm:$0xf]
        %v234 = vld [vmem:[%s1 + $0x10] sm:$0xf]
        %v235 = vld [vmem:[%s1 + $0x14] sm:$0xf]
        %v236 = vld [vmem:[%s1 + $0x18] sm:$0xf]
        %v237 = vld [vmem:[%s1 + $0x1c] sm:$0xf]
        %v238 = vld [vmem:[%s1 + $0x20] sm:$0xf]
        %v239 = vld [vmem:[%s1 + $0x24] sm:$0xf]
        %v240 = vld [vmem:[%s1 + $0x28] sm:$0xf]
        %v241 = vld [vmem:[%s1 + $0x2c] sm:$0xf]
        %v242 = vld [vmem:[%s2] sm:$0xff]
        %v243 = vld [vmem:[%s2 + $0x8] sm:$0xff]
        %v244 = vld [vmem:[%s2 + $0x10] sm:$0xff]
        %v245 = vld [vmem:[%s2 + $0x18] sm:$0xff]
        %v246 = vld [vmem:[%s2 + $0x20] sm:$0xff]
        %v247 = vld [vmem:[%s2 + $0x28] sm:$0xff]
        %v248 = vld [vmem:[%s2 + $0x30] sm:$0xff]
        %v249 = vld [vmem:[%s2 + $0x38] sm:$0xff]
        %v250 = vld [vmem:[%s2 + $0x40] sm:$0xff]
        %v251 = vld [vmem:[%s2 + $0x48] sm:$0xff]
        %v252 = vld [vmem:[%s2 + $0x50] sm:$0xff]
        %v253 = vld [vmem:[%s2 + $0x58] sm:$0xff]
        %255 = vset.pattern.permute.xlu0 0
        %256 = vperm.xlu0 %255, %v242
        %v257 = vpop.permute.xlu0 %256
        %260 = vset.pattern.permute.xlu0 0
        %261 = vperm.xlu0 %260, %v243
        %v262 = vpop.permute.xlu0 %261
        %265 = vset.pattern.permute.xlu0 0
        %266 = vperm.xlu0 %265, %v244
        %v267 = vpop.permute.xlu0 %266
        %270 = vset.pattern.permute.xlu0 0
        %271 = vperm.xlu0 %270, %v245
        %v272 = vpop.permute.xlu0 %271
        %275 = vset.pattern.permute.xlu0 0
        %276 = vperm.xlu0 %275, %v246
        %v277 = vpop.permute.xlu0 %276
        %280 = vset.pattern.permute.xlu0 0
        %281 = vperm.xlu0 %280, %v247
        %v282 = vpop.permute.xlu0 %281
        %285 = vset.pattern.permute.xlu0 0
        %286 = vperm.xlu0 %285, %v248
        %v287 = vpop.permute.xlu0 %286
        %290 = vset.pattern.permute.xlu0 0
        %291 = vperm.xlu0 %290, %v249
        %v292 = vpop.permute.xlu0 %291
        %295 = vset.pattern.permute.xlu0 0
        %296 = vperm.xlu0 %295, %v250
        %v297 = vpop.permute.xlu0 %296
        %300 = vset.pattern.permute.xlu0 0
        %301 = vperm.xlu0 %300, %v251
        %v302 = vpop.permute.xlu0 %301
        %305 = vset.pattern.permute.xlu0 0
        %306 = vperm.xlu0 %305, %v252
        %v307 = vpop.permute.xlu0 %306
        %310 = vset.pattern.permute.xlu0 0
        %311 = vperm.xlu0 %310, %v253
        %v312 = vpop.permute.xlu0 %311
        %v326 = vunpack.c.l.b16 %v230
        %v327 = vunpack.c.l.b16 %v231
        %v328 = vunpack.c.l.b16 %v232
        %v329 = vunpack.c.l.b16 %v233
        %v330 = vunpack.c.l.b16 %v234
        %v331 = vunpack.c.l.b16 %v235
        %v332 = vunpack.c.l.b16 %v236
        %v333 = vunpack.c.l.b16 %v237
        %v334 = vunpack.c.l.b16 %v238
        %v335 = vunpack.c.l.b16 %v239
        %v336 = vunpack.c.l.b16 %v240
        %v337 = vunpack.c.l.b16 %v241
        %v338 = vpack.c.b16 %v327, %v326
        %v339 = vpack.c.b16 %v329, %v328
        %v340 = vpack.c.b16 %v331, %v330
        %v341 = vpack.c.b16 %v333, %v332
        %v342 = vpack.c.b16 %v335, %v334
        %v343 = vpack.c.b16 %v337, %v336
        %vm344 = vcmask 261120
        %v346 = vsel %vm344, %v338, 0
        %v349 = vsel %vm344, %v339, 0
        %v352 = vsel %vm344, %v340, 0
        %v355 = vsel %vm344, %v341, 0
        %v358 = vsel %vm344, %v342, 0
        %v361 = vsel %vm344, %v343, 0
        %363 = vmatprep.subr.bf16.mxu0 0
        %364 = vmatpush1.bf16.msra.mxu0 %v228
        %365 = vmatprep.subr.bf16.mxu0 0
        %366 = vmatpush1.bf16.msra.mxu0 %v229
        %367 = vmatprep.subr.bf16.mxu0 0
        %368 = vmatpush1.bf16.msra.mxu0 0
        %369 = vmatprep.subr.bf16.mxu0 0
        %370 = vmatpush1.bf16.msra.mxu0 0
        %371 = vmatprep.subr.bf16.mxu0 0
        %372 = vmatpush1.bf16.msra.mxu0 0
        %373 = vmatprep.subr.bf16.mxu0 0
        %374 = vmatpush1.bf16.msra.mxu0 0
        %375 = vmatprep.subr.bf16.mxu0 0
        %376 = vmatpush1.bf16.msra.mxu0 0
        %377 = vmatprep.subr.bf16.mxu0 0
        %378 = vmatpush1.bf16.msra.mxu0 0
        %379 = vmatprep.subr.bf16.mxu0 0
        %380 = vmatpush1.bf16.msra.mxu0 0
        %381 = vmatprep.subr.bf16.mxu0 0
        %382 = vmatpush1.bf16.msra.mxu0 0
        %383 = vmatprep.subr.bf16.mxu0 0
        %384 = vmatpush1.bf16.msra.mxu0 0
        %385 = vmatprep.subr.bf16.mxu0 0
        %386 = vmatpush1.bf16.msra.mxu0 0
        %387 = vmatprep.subr.bf16.mxu0 0
        %388 = vmatpush1.bf16.msra.mxu0 0
        %389 = vmatprep.subr.bf16.mxu0 0
        %390 = vmatpush1.bf16.msra.mxu0 0
        %391 = vmatprep.subr.bf16.mxu0 0
        %392 = vmatpush1.bf16.msra.mxu0 0
        %393 = vmatprep.subr.bf16.mxu0 0
        %394 = vmatpush1.bf16.msra.mxu0 0
        %395 = vmatprep.mubr.bf16.mxu0 0
        %396 = vmatmul.mubr.bf16.gmra.mrb[0].mxu0 %v346
        %v397 = vpop.f32.mrb[0].mxu0
        %v398 = vadd.f32 %v257, %v397
        %v399 = vpop.f32.mrb[0].mxu0
        %v400 = vpop.f32.mrb[0].mxu0
        %v401 = vadd.f32 %v262, %v400
        %v402 = vpop.f32.mrb[0].mxu0
        %403 = vmatprep.mubr.bf16.mxu0 0
        %404 = vmatmul.mubr.bf16.gmra.mrb[0].mxu0 %v349
        %v405 = vpop.f32.mrb[0].mxu0
        %v406 = vadd.f32 %v267, %v405
        %v407 = vpop.f32.mrb[0].mxu0
        %v408 = vpop.f32.mrb[0].mxu0
        %v409 = vadd.f32 %v272, %v408
        %v410 = vpop.f32.mrb[0].mxu0
        %411 = vmatprep.mubr.bf16.mxu0 0
        %412 = vmatmul.mubr.bf16.gmra.mrb[0].mxu0 %v352
        %v413 = vpop.f32.mrb[0].mxu0
        %v414 = vadd.f32 %v277, %v413
        %v415 = vpop.f32.mrb[0].mxu0
        %v416 = vpop.f32.mrb[0].mxu0
        %v417 = vadd.f32 %v282, %v416
        %v418 = vpop.f32.mrb[0].mxu0
        %419 = vmatprep.mubr.bf16.mxu0 0
        %420 = vmatmul.mubr.bf16.gmra.mrb[0].mxu0 %v355
        %v421 = vpop.f32.mrb[0].mxu0
        %v422 = vadd.f32 %v287, %v421
        %v423 = vpop.f32.mrb[0].mxu0
        %v424 = vpop.f32.mrb[0].mxu0
        %v425 = vadd.f32 %v292, %v424
        %v426 = vpop.f32.mrb[0].mxu0
        %427 = vmatprep.mubr.bf16.mxu0 0
        %428 = vmatmul.mubr.bf16.gmra.mrb[0].mxu0 %v358
        %v429 = vpop.f32.mrb[0].mxu0
        %v430 = vadd.f32 %v297, %v429
        %v431 = vpop.f32.mrb[0].mxu0
        %v432 = vpop.f32.mrb[0].mxu0
        %v433 = vadd.f32 %v302, %v432
        %v434 = vpop.f32.mrb[0].mxu0
        %435 = vmatprep.mubr.bf16.mxu0 0
        %436 = vmatmul.mubr.bf16.gmra.mrb[0].mxu0 %v361
        %v437 = vpop.f32.mrb[0].mxu0
        %v438 = vadd.f32 %v307, %v437
        %v439 = vpop.f32.mrb[0].mxu0
        %v440 = vpop.f32.mrb[0].mxu0
        %v441 = vadd.f32 %v312, %v440
        %v442 = vpop.f32.mrb[0].mxu0
        %443 = vdwg.mxu0
        %v444 = vpack.c.bf16 %v401, %v398
        %v445 = vpack.c.bf16 %v409, %v406
        %v446 = vpack.c.bf16 %v417, %v414
        %v447 = vpack.c.bf16 %v425, %v422
        %v448 = vpack.c.bf16 %v433, %v430
        %v449 = vpack.c.bf16 %v441, %v438
        %vm450 = vcmask 523264
        %451 = vst.msk [vmem:[#allocation2] sm:$0xff] %vm450, %v444
        %452 = vst.msk [vmem:[#allocation2 + $0x8] sm:$0xff] %vm450, %v445
        %453 = vst.msk [vmem:[#allocation2 + $0x10] sm:$0xff] %vm450, %v446
        %454 = vst.msk [vmem:[#allocation2 + $0x18] sm:$0xff] %vm450, %v447
        %455 = vst.msk [vmem:[#allocation2 + $0x20] sm:$0xff] %vm450, %v448
        %456 = vst.msk [vmem:[#allocation2 + $0x28] sm:$0xff] %vm450, %v449
        %457 = vxpose.xlu0.b32.start [1/16] %v398, 128
        %458 = vxpose.xlu0.b32.cont [2/16] %v401, 128
        %459 = vxpose.xlu0.b32.cont [3/16] %v406, 128
        %460 = vxpose.xlu0.b32.cont [4/16] %v409, 128
        %461 = vxpose.xlu0.b32.cont [5/16] 0.0, 128
        %462 = vxpose.xlu0.b32.cont [6/16] 0.0, 128
        %463 = vxpose.xlu0.b32.cont [7/16] 0.0, 128
        %464 = vxpose.xlu0.b32.cont [8/16] 0.0, 128
        %465 = vxpose.xlu0.b32.cont [9/16] 0.0, 128
        %466 = vxpose.xlu0.b32.cont [10/16] 0.0, 128
        %467 = vxpose.xlu0.b32.cont [11/16] 0.0, 128
        %468 = vxpose.xlu0.b32.cont [12/16] 0.0, 128
        %469 = vxpose.xlu0.b32.cont [13/16] 0.0, 128
        %470 = vxpose.xlu0.b32.cont [14/16] 0.0, 128
        %471 = vxpose.xlu0.b32.cont [15/16] 0.0, 128
        %472 = vxpose.xlu0.b32.end [16/16] 0.0, 128
        %v473 = vpop.trf.xlu0
        %v474 = vpop.trf.xlu0
        %v475 = vpop.trf.xlu0
        %v476 = vpop.trf.xlu0
        %v477 = vpop.trf.xlu0
        %v478 = vpop.trf.xlu0
        %v479 = vpop.trf.xlu0
        %v480 = vpop.trf.xlu0
        %v481 = vpop.trf.xlu0
        %v482 = vpop.trf.xlu0
        %v483 = vpop.trf.xlu0
        %v484 = vpop.trf.xlu0
        %v485 = vpop.trf.xlu0
        %v486 = vpop.trf.xlu0
        %v487 = vpop.trf.xlu0
        %v488 = vpop.trf.xlu0
        %v489 = vpack.c.bf16 %v474, %v473
        %v490 = vpack.c.bf16 %v476, %v475
        %v491 = vpack.c.bf16 %v478, %v477
        %v492 = vpack.c.bf16 %v480, %v479
        %v493 = vld [vmem:[#allocation2 + $0x10] sm:$0xff]
        %v494 = vld [vmem:[#allocation2 + $0x18] sm:$0xff]
        %v495 = vld [vmem:[#allocation2 + $0x20] sm:$0xff]
        %v496 = vld [vmem:[#allocation2 + $0x28] sm:$0xff]
        %v498 = vsel %vm344, %v489, 0
        %v501 = vsel %vm344, %v490, 0
        %v504 = vsel %vm344, %v491, 0
        %v507 = vsel %vm344, %v492, 0
        %509 = vmatprep.subr.bf16.mxu0 0
        %510 = vmatpush1.bf16.msra.mxu0 %v493
        %511 = vmatprep.subr.bf16.mxu0 0
        %512 = vmatpush1.bf16.msra.mxu0 %v494
        %513 = vmatprep.subr.bf16.mxu0 0
        %514 = vmatpush1.bf16.msra.mxu0 0
        %515 = vmatprep.subr.bf16.mxu0 0
        %516 = vmatpush1.bf16.msra.mxu0 0
        %517 = vmatprep.subr.bf16.mxu0 0
        %518 = vmatpush1.bf16.msra.mxu0 0
        %519 = vmatprep.subr.bf16.mxu0 0
        %520 = vmatpush1.bf16.msra.mxu0 0
        %521 = vmatprep.subr.bf16.mxu0 0
        %522 = vmatpush1.bf16.msra.mxu0 0
        %523 = vmatprep.subr.bf16.mxu0 0
        %524 = vmatpush1.bf16.msra.mxu0 0
        %525 = vmatprep.subr.bf16.mxu0 0
        %526 = vmatpush1.bf16.msra.mxu0 0
        %527 = vmatprep.subr.bf16.mxu0 0
        %528 = vmatpush1.bf16.msra.mxu0 0
        %529 = vmatprep.subr.bf16.mxu0 0
        %530 = vmatpush1.bf16.msra.mxu0 0
        %531 = vmatprep.subr.bf16.mxu0 0
        %532 = vmatpush1.bf16.msra.mxu0 0
        %533 = vmatprep.subr.bf16.mxu0 0
        %534 = vmatpush1.bf16.msra.mxu0 0
        %535 = vmatprep.subr.bf16.mxu0 0
        %536 = vmatpush1.bf16.msra.mxu0 0
        %537 = vmatprep.subr.bf16.mxu0 0
        %538 = vmatpush1.bf16.msra.mxu0 0
        %539 = vmatprep.subr.bf16.mxu0 0
        %540 = vmatpush1.bf16.msra.mxu0 0
        %541 = vmatprep.mubr.bf16.mxu0 0
        %542 = vmatmul.mubr.bf16.gmra.mrb[0].mxu0 %v498
        %v543 = vpop.f32.mrb[0].mxu0
        %v544 = vadd.f32 0.0, %v543
        %v545 = vpop.f32.mrb[0].mxu0
        %v546 = vpop.f32.mrb[0].mxu0
        %v547 = vadd.f32 0.0, %v546
        %v548 = vpop.f32.mrb[0].mxu0
        %549 = vmatprep.mubr.bf16.mxu0 0
        %550 = vmatmul.mubr.bf16.gmra.mrb[0].mxu0 %v501
        %v551 = vpop.f32.mrb[0].mxu0
        %v552 = vadd.f32 0.0, %v551
        %v553 = vpop.f32.mrb[0].mxu0
        %v554 = vpop.f32.mrb[0].mxu0
        %v555 = vadd.f32 0.0, %v554
        %v556 = vpop.f32.mrb[0].mxu0
        %557 = vmatprep.mubr.bf16.mxu0 0
        %558 = vmatmul.mubr.bf16.gmra.mrb[0].mxu0 %v504
        %v559 = vpop.f32.mrb[0].mxu0
        %v560 = vadd.f32 0.0, %v559
        %v561 = vpop.f32.mrb[0].mxu0
        %v562 = vpop.f32.mrb[0].mxu0
        %v563 = vadd.f32 0.0, %v562
        %v564 = vpop.f32.mrb[0].mxu0
        %565 = vmatprep.mubr.bf16.mxu0 0
        %566 = vmatmul.mubr.bf16.gmra.mrb[0].mxu0 %v507
        %v567 = vpop.f32.mrb[0].mxu0
        %v568 = vadd.f32 0.0, %v567
        %v569 = vpop.f32.mrb[0].mxu0
        %v570 = vpop.f32.mrb[0].mxu0
        %v571 = vadd.f32 0.0, %v570
        %v572 = vpop.f32.mrb[0].mxu0
        %573 = vdwg.mxu0
        %v574 = vmul.f32 %v544, 0.17677669
        %v575 = vmul.f32 %v547, 0.17677669
        %v576 = vmul.f32 %v552, 0.17677669
        %v577 = vmul.f32 %v555, 0.17677669
        %v578 = vmul.f32 %v560, 0.17677669
        %v579 = vmul.f32 %v563, 0.17677669
        %v580 = vmul.f32 %v568, 0.17677669
        %v581 = vmul.f32 %v571, 0.17677669
        %v582 = vsel %vm450, %v574, -inf
        %583 = vmax.xlane.f32.xlu0 %v582
        %v584 = vpop.xlane.xlu0 %583
        %v585 = vsel %vm450, %v575, -inf
        %586 = vmax.xlane.f32.xlu0 %v585
        %v587 = vpop.xlane.xlu0 %586
        %v588 = vsel %vm450, %v576, -inf
        %589 = vmax.xlane.f32.xlu0 %v588
        %v590 = vpop.xlane.xlu0 %589
        %v591 = vsel %vm450, %v577, -inf
        %592 = vmax.xlane.f32.xlu0 %v591
        %v593 = vpop.xlane.xlu0 %592
        %v594 = vsel %vm450, %v578, -inf
        %595 = vmax.xlane.f32.xlu0 %v594
        %v596 = vpop.xlane.xlu0 %595
        %v597 = vsel %vm450, %v579, -inf
        %598 = vmax.xlane.f32.xlu0 %v597
        %v599 = vpop.xlane.xlu0 %598
        %v600 = vsel %vm450, %v580, -inf
        %601 = vmax.xlane.f32.xlu0 %v600
        %v602 = vpop.xlane.xlu0 %601
        %v603 = vsel %vm450, %v581, -inf
        %604 = vmax.xlane.f32.xlu0 %v603
        %v605 = vpop.xlane.xlu0 %604
        %v606 = vsub.f32 %v574, %v584
        %v607 = vsub.f32 %v575, %v587
        %v608 = vsub.f32 %v576, %v590
        %v609 = vsub.f32 %v577, %v593
        %v610 = vsub.f32 %v578, %v596
        %v611 = vsub.f32 %v579, %v599
        %v612 = vsub.f32 %v580, %v602
        %v613 = vsub.f32 %v581, %v605
        %v614 = vmul.f32 %v606, 1.442695
        %v615 = vpow.pop %v614
        %v616 = vmul.f32 %v607, 1.442695
        %v617 = vpow.pop %v616
        %v618 = vmul.f32 %v608, 1.442695
        %v619 = vpow.pop %v618
        %v620 = vmul.f32 %v609, 1.442695
        %v621 = vpow.pop %v620
        %v622 = vmul.f32 %v610, 1.442695
        %v623 = vpow.pop %v622
        %v624 = vmul.f32 %v611, 1.442695
        %v625 = vpow.pop %v624
        %v626 = vmul.f32 %v612, 1.442695
        %v627 = vpow.pop %v626
        %v628 = vmul.f32 %v613, 1.442695
        %v629 = vpow.pop %v628
        %v630 = vsel %vm450, %v615, 0.0
        %631 = vadd.xlane.f32.xlu0 %v630
        %v632 = vpop.xlane.xlu0 %631
        %v633 = vsel %vm450, %v617, 0.0
        %634 = vadd.xlane.f32.xlu0 %v633
        %v635 = vpop.xlane.xlu0 %634
        %v636 = vsel %vm450, %v619, 0.0
        %637 = vadd.xlane.f32.xlu0 %v636
        %v638 = vpop.xlane.xlu0 %637
        %v639 = vsel %vm450, %v621, 0.0
        %640 = vadd.xlane.f32.xlu0 %v639
        %v641 = vpop.xlane.xlu0 %640
        %v642 = vsel %vm450, %v623, 0.0
        %643 = vadd.xlane.f32.xlu0 %v642
        %v644 = vpop.xlane.xlu0 %643
        %v645 = vsel %vm450, %v625, 0.0
        %646 = vadd.xlane.f32.xlu0 %v645
        %v647 = vpop.xlane.xlu0 %646
        %v648 = vsel %vm450, %v627, 0.0
        %649 = vadd.xlane.f32.xlu0 %v648
        %v650 = vpop.xlane.xlu0 %649
        %v651 = vsel %vm450, %v629, 0.0
        %652 = vadd.xlane.f32.xlu0 %v651
        %v653 = vpop.xlane.xlu0 %652
        %v654 = vrcp.pop %v632
        %v655 = vrcp.pop %v635
        %v656 = vrcp.pop %v638
        %v657 = vrcp.pop %v641
        %v658 = vrcp.pop %v644
        %v659 = vrcp.pop %v647
        %v660 = vrcp.pop %v650
        %v661 = vrcp.pop %v653
        %v662 = vmul.f32 %v615, %v654
        %v663 = vmul.f32 %v617, %v655
        %v664 = vmul.f32 %v619, %v656
        %v665 = vmul.f32 %v621, %v657
        %v666 = vmul.f32 %v623, %v658
        %v667 = vmul.f32 %v625, %v659
        %v668 = vmul.f32 %v627, %v660
        %v669 = vmul.f32 %v629, %v661
        %v670 = vpack.c.bf16 %v663, %v662
        %v671 = vpack.c.bf16 %v665, %v664
        %v672 = vpack.c.bf16 %v667, %v666
        %v673 = vpack.c.bf16 %v669, %v668
        %v674 = vld [vmem:[#allocation2] sm:$0xff]
        %v675 = vld [vmem:[#allocation2 + $0x8] sm:$0xff]
        %v677 = vsel %vm450, %v674, 0
        %v680 = vsel %vm450, %v675, 0
        %v683 = vsel %vm450, %v493, 0
        %v686 = vsel %vm450, %v494, 0
        %688 = vmatprep.subr.bf16.mxu0 0
        %689 = vmatpush1.bf16.xpose.msra.mxu0 %v683
        %690 = vmatprep.subr.bf16.mxu0 0
        %691 = vmatpush1.bf16.xpose.msra.mxu0 %v686
        %692 = vmatprep.subr.bf16.mxu0 0
        %693 = vmatpush1.bf16.xpose.msra.mxu0 0
        %694 = vmatprep.subr.bf16.mxu0 0
        %695 = vmatpush1.bf16.xpose.msra.mxu0 0
        %696 = vmatprep.subr.bf16.mxu0 0
        %697 = vmatpush1.bf16.xpose.msra.mxu0 0
        %698 = vmatprep.subr.bf16.mxu0 0
        %699 = vmatpush1.bf16.xpose.msra.mxu0 0
        %700 = vmatprep.subr.bf16.mxu0 0
        %701 = vmatpush1.bf16.xpose.msra.mxu0 0
        %702 = vmatprep.subr.bf16.mxu0 0
        %703 = vmatpush1.bf16.xpose.msra.mxu0 0
        %704 = vmatprep.subr.bf16.mxu0 0
        %705 = vmatpush1.bf16.xpose.msra.mxu0 0
        %706 = vmatprep.subr.bf16.mxu0 0
        %707 = vmatpush1.bf16.xpose.msra.mxu0 0
        %708 = vmatprep.subr.bf16.mxu0 0
        %709 = vmatpush1.bf16.xpose.msra.mxu0 0
        %710 = vmatprep.subr.bf16.mxu0 0
        %711 = vmatpush1.bf16.xpose.msra.mxu0 0
        %712 = vmatprep.subr.bf16.mxu0 0
        %713 = vmatpush1.bf16.xpose.msra.mxu0 0
        %714 = vmatprep.subr.bf16.mxu0 0
        %715 = vmatpush1.bf16.xpose.msra.mxu0 0
        %716 = vmatprep.subr.bf16.mxu0 0
        %717 = vmatpush1.bf16.xpose.msra.mxu0 0
        %718 = vmatprep.subr.bf16.mxu0 0
        %719 = vmatpush1.bf16.xpose.msra.mxu0 0
        %720 = vmatprep.mubr.bf16.mxu0 0
        %721 = vmatmul.mubr.bf16.gmra.mrb[0].mxu0 %v677
        %v722 = vpop.f32.mrb[0].mxu0
        %v723 = vadd.f32 0.0, %v722
        %v724 = vpop.f32.mrb[0].mxu0
        %v725 = vpop.f32.mrb[0].mxu0
        %v726 = vadd.f32 0.0, %v725
        %v727 = vpop.f32.mrb[0].mxu0
        %728 = vmatprep.mubr.bf16.mxu0 0
        %729 = vmatmul.mubr.bf16.gmra.mrb[0].mxu0 %v680
        %v730 = vpop.f32.mrb[0].mxu0
        %v731 = vadd.f32 0.0, %v730
        %v732 = vpop.f32.mrb[0].mxu0
        %v733 = vpop.f32.mrb[0].mxu0
        %v734 = vadd.f32 0.0, %v733
        %v735 = vpop.f32.mrb[0].mxu0
        %736 = vdwg.mxu0
        %v737 = vmul.f32 %v723, 0.17677669
        %v738 = vmul.f32 %v726, 0.17677669
        %v739 = vmul.f32 %v731, 0.17677669
        %v740 = vmul.f32 %v734, 0.17677669
        %v741 = vsel %vm344, %v737, -inf
        %742 = vmax.xlane.f32.xlu0 %v741
        %v743 = vpop.xlane.xlu0 %742
        %v744 = vsel %vm344, %v738, -inf
        %745 = vmax.xlane.f32.xlu0 %v744
        %v746 = vpop.xlane.xlu0 %745
        %v747 = vsel %vm344, %v739, -inf
        %748 = vmax.xlane.f32.xlu0 %v747
        %v749 = vpop.xlane.xlu0 %748
        %v750 = vsel %vm344, %v740, -inf
        %751 = vmax.xlane.f32.xlu0 %v750
        %v752 = vpop.xlane.xlu0 %751
        %v753 = vsub.f32 %v737, %v743
        %v754 = vsub.f32 %v738, %v746
        %v755 = vsub.f32 %v739, %v749
        %v756 = vsub.f32 %v740, %v752
        %v757 = vmul.f32 %v753, 1.442695
        %v758 = vpow.pop %v757
        %v759 = vmul.f32 %v754, 1.442695
        %v760 = vpow.pop %v759
        %v761 = vmul.f32 %v755, 1.442695
        %v762 = vpow.pop %v761
        %v763 = vmul.f32 %v756, 1.442695
        %v764 = vpow.pop %v763
        %v765 = vsel %vm344, %v758, 0.0
        %766 = vadd.xlane.f32.xlu0 %v765
        %v767 = vpop.xlane.xlu0 %766
        %v768 = vsel %vm344, %v760, 0.0
        %769 = vadd.xlane.f32.xlu0 %v768
        %v770 = vpop.xlane.xlu0 %769
        %v771 = vsel %vm344, %v762, 0.0
        %772 = vadd.xlane.f32.xlu0 %v771
        %v773 = vpop.xlane.xlu0 %772
        %v774 = vsel %vm344, %v764, 0.0
        %775 = vadd.xlane.f32.xlu0 %v774
        %v776 = vpop.xlane.xlu0 %775
        %v777 = vrcp.pop %v767
        %v778 = vrcp.pop %v770
        %v779 = vrcp.pop %v773
        %v780 = vrcp.pop %v776
        %v781 = vmul.f32 %v758, %v777
        %v782 = vmul.f32 %v760, %v778
        %v783 = vmul.f32 %v762, %v779
        %v784 = vmul.f32 %v764, %v780
        %v785 = vpack.c.bf16 %v782, %v781
        %v786 = vpack.c.bf16 %v784, %v783
        %v788 = vsel %vm344, %v785, 0
        %v791 = vsel %vm344, %v786, 0
        %793 = vmatprep.subr.bf16.mxu0 0
        %794 = vmatpush1.bf16.msra.mxu0 %v495
        %795 = vmatprep.subr.bf16.mxu0 0
        %796 = vmatpush1.bf16.msra.mxu0 %v496
        %797 = vmatprep.subr.bf16.mxu0 0
        %798 = vmatpush1.bf16.msra.mxu0 0
        %799 = vmatprep.subr.bf16.mxu0 0
        %800 = vmatpush1.bf16.msra.mxu0 0
        %801 = vmatprep.subr.bf16.mxu0 0
        %802 = vmatpush1.bf16.msra.mxu0 0
        %803 = vmatprep.subr.bf16.mxu0 0
        %804 = vmatpush1.bf16.msra.mxu0 0
        %805 = vmatprep.subr.bf16.mxu0 0
        %806 = vmatpush1.bf16.msra.mxu0 0
        %807 = vmatprep.subr.bf16.mxu0 0
        %808 = vmatpush1.bf16.msra.mxu0 0
        %809 = vmatprep.subr.bf16.mxu0 0
        %810 = vmatpush1.bf16.msra.mxu0 0
        %811 = vmatprep.subr.bf16.mxu0 0
        %812 = vmatpush1.bf16.msra.mxu0 0
        %813 = vmatprep.subr.bf16.mxu0 0
        %814 = vmatpush1.bf16.msra.mxu0 0
        %815 = vmatprep.subr.bf16.mxu0 0
        %816 = vmatpush1.bf16.msra.mxu0 0
        %817 = vmatprep.subr.bf16.mxu0 0
        %818 = vmatpush1.bf16.msra.mxu0 0
        %819 = vmatprep.subr.bf16.mxu0 0
        %820 = vmatpush1.bf16.msra.mxu0 0
        %821 = vmatprep.subr.bf16.mxu0 0
        %822 = vmatpush1.bf16.msra.mxu0 0
        %823 = vmatprep.subr.bf16.mxu0 0
        %824 = vmatpush1.bf16.msra.mxu0 0
        %825 = vmatprep.mubr.bf16.mxu0 0
        %826 = vmatmul.mubr.bf16.gmra.mrb[0].mxu0 %v788
        %v827 = vpop.f32.mrb[0].mxu0
        %v828 = vadd.f32 0.0, %v827
        %v829 = vpop.f32.mrb[0].mxu0
        %v830 = vpop.f32.mrb[0].mxu0
        %v831 = vadd.f32 0.0, %v830
        %v832 = vpop.f32.mrb[0].mxu0
        %833 = vmatprep.mubr.bf16.mxu0 0
        %834 = vmatmul.mubr.bf16.gmra.mrb[0].mxu0 %v791
        %v835 = vpop.f32.mrb[0].mxu0
        %v836 = vadd.f32 0.0, %v835
        %v837 = vpop.f32.mrb[0].mxu0
        %v838 = vpop.f32.mrb[0].mxu0
        %v839 = vadd.f32 0.0, %v838
        %v840 = vpop.f32.mrb[0].mxu0
        %841 = vdwg.mxu0
        %v843 = vsel %vm450, %v495, 0
        %v846 = vsel %vm450, %v496, 0
        %v849 = vsel %vm450, %v670, 0
        %v852 = vsel %vm450, %v671, 0
        %v855 = vsel %vm450, %v672, 0
        %v858 = vsel %vm450, %v673, 0
        %860 = vmatprep.subr.bf16.mxu0 0
        %861 = vmatpush1.bf16.xpose.msra.mxu0 %v849
        %862 = vmatprep.subr.bf16.mxu0 0
        %863 = vmatpush1.bf16.xpose.msra.mxu0 %v852
        %864 = vmatprep.subr.bf16.mxu0 0
        %865 = vmatpush1.bf16.xpose.msra.mxu0 %v855
        %866 = vmatprep.subr.bf16.mxu0 0
        %867 = vmatpush1.bf16.xpose.msra.mxu0 %v858
        %868 = vmatprep.subr.bf16.mxu0 0
        %869 = vmatpush1.bf16.xpose.msra.mxu0 0
        %870 = vmatprep.subr.bf16.mxu0 0
        %871 = vmatpush1.bf16.xpose.msra.mxu0 0
        %872 = vmatprep.subr.bf16.mxu0 0
        %873 = vmatpush1.bf16.xpose.msra.mxu0 0
        %874 = vmatprep.subr.bf16.mxu0 0
        %875 = vmatpush1.bf16.xpose.msra.mxu0 0
        %876 = vmatprep.subr.bf16.mxu0 0
        %877 = vmatpush1.bf16.xpose.msra.mxu0 0
        %878 = vmatprep.subr.bf16.mxu0 0
        %879 = vmatpush1.bf16.xpose.msra.mxu0 0
        %880 = vmatprep.subr.bf16.mxu0 0
        %881 = vmatpush1.bf16.xpose.msra.mxu0 0
        %882 = vmatprep.subr.bf16.mxu0 0
        %883 = vmatpush1.bf16.xpose.msra.mxu0 0
        %884 = vmatprep.subr.bf16.mxu0 0
        %885 = vmatpush1.bf16.xpose.msra.mxu0 0
        %886 = vmatprep.subr.bf16.mxu0 0
        %887 = vmatpush1.bf16.xpose.msra.mxu0 0
        %888 = vmatprep.subr.bf16.mxu0 0
        %889 = vmatpush1.bf16.xpose.msra.mxu0 0
        %890 = vmatprep.subr.bf16.mxu0 0
        %891 = vmatpush1.bf16.xpose.msra.mxu0 0
        %892 = vmatprep.mubr.bf16.mxu0 0
        %893 = vmatmul.mubr.bf16.gmra.mrb[0].mxu0 %v843
        %v894 = vpop.f32.mrb[0].mxu0
        %v895 = vadd.f32 %v828, %v894
        %v896 = vpop.f32.mrb[0].mxu0
        %v897 = vpop.f32.mrb[0].mxu0
        %v898 = vadd.f32 %v831, %v897
        %v899 = vpop.f32.mrb[0].mxu0
        %900 = vmatprep.mubr.bf16.mxu0 0
        %901 = vmatmul.mubr.bf16.gmra.mrb[0].mxu0 %v846
        %v902 = vpop.f32.mrb[0].mxu0
        %v903 = vadd.f32 %v836, %v902
        %v904 = vpop.f32.mrb[0].mxu0
        %v905 = vpop.f32.mrb[0].mxu0
        %v906 = vadd.f32 %v839, %v905
        %v907 = vpop.f32.mrb[0].mxu0
        %908 = vdwg.mxu0
        %v909 = vpack.c.bf16 %v898, %v895
        %v910 = vpack.c.bf16 %v906, %v903
        %911 = vst.msk [vmem:[#allocation3] sm:$0xff] %vm450, %v909
        %912 = vst.msk [vmem:[#allocation3 + $0x10] sm:$0xff] %vm450, %v910
        %s913 = scalar_lea.vmem %s222, 32
        %v914 = vld [vmem:[%s913] sm:$0xff]
        %v915 = vld [vmem:[%s913 + $0x8] sm:$0xff]
        %v916 = vld [vmem:[%s913 + $0x10] sm:$0xff]
        %v917 = vld [vmem:[%s913 + $0x18] sm:$0xff]
        %v918 = vpack.c.bf16 %v915, %v914
        %v919 = vpack.c.bf16 %v917, %v916
        %v920 = vld [vmem:[%s1] sm:$0xf]
        %v921 = vld [vmem:[%s1 + $0x4] sm:$0xf]
        %v922 = vld [vmem:[%s1 + $0x8] sm:$0xf]
        %v923 = vld [vmem:[%s1 + $0xc] sm:$0xf]
        %v924 = vld [vmem:[%s1 + $0x10] sm:$0xf]
        %v925 = vld [vmem:[%s1 + $0x14] sm:$0xf]
        %v926 = vld [vmem:[%s1 + $0x18] sm:$0xf]
        %v927 = vld [vmem:[%s1 + $0x1c] sm:$0xf]
        %v928 = vld [vmem:[%s1 + $0x20] sm:$0xf]
        %v929 = vld [vmem:[%s1 + $0x24] sm:$0xf]
        %v930 = vld [vmem:[%s1 + $0x28] sm:$0xf]
        %v931 = vld [vmem:[%s1 + $0x2c] sm:$0xf]
        %v932 = vld [vmem:[%s2] sm:$0xff]
        %v933 = vld [vmem:[%s2 + $0x8] sm:$0xff]
        %v934 = vld [vmem:[%s2 + $0x10] sm:$0xff]
        %v935 = vld [vmem:[%s2 + $0x18] sm:$0xff]
        %v936 = vld [vmem:[%s2 + $0x20] sm:$0xff]
        %v937 = vld [vmem:[%s2 + $0x28] sm:$0xff]
        %v938 = vld [vmem:[%s2 + $0x30] sm:$0xff]
        %v939 = vld [vmem:[%s2 + $0x38] sm:$0xff]
        %v940 = vld [vmem:[%s2 + $0x40] sm:$0xff]
        %v941 = vld [vmem:[%s2 + $0x48] sm:$0xff]
        %v942 = vld [vmem:[%s2 + $0x50] sm:$0xff]
        %v943 = vld [vmem:[%s2 + $0x58] sm:$0xff]
        %945 = vset.pattern.permute.xlu0 0
        %946 = vperm.xlu0 %945, %v932
        %v947 = vpop.permute.xlu0 %946
        %950 = vset.pattern.permute.xlu0 0
        %951 = vperm.xlu0 %950, %v933
        %v952 = vpop.permute.xlu0 %951
        %955 = vset.pattern.permute.xlu0 0
        %956 = vperm.xlu0 %955, %v934
        %v957 = vpop.permute.xlu0 %956
        %960 = vset.pattern.permute.xlu0 0
        %961 = vperm.xlu0 %960, %v935
        %v962 = vpop.permute.xlu0 %961
        %965 = vset.pattern.permute.xlu0 0
        %966 = vperm.xlu0 %965, %v936
        %v967 = vpop.permute.xlu0 %966
        %970 = vset.pattern.permute.xlu0 0
        %971 = vperm.xlu0 %970, %v937
        %v972 = vpop.permute.xlu0 %971
        %975 = vset.pattern.permute.xlu0 0
        %976 = vperm.xlu0 %975, %v938
        %v977 = vpop.permute.xlu0 %976
        %980 = vset.pattern.permute.xlu0 0
        %981 = vperm.xlu0 %980, %v939
        %v982 = vpop.permute.xlu0 %981
        %985 = vset.pattern.permute.xlu0 0
        %986 = vperm.xlu0 %985, %v940
        %v987 = vpop.permute.xlu0 %986
        %990 = vset.pattern.permute.xlu0 0
        %991 = vperm.xlu0 %990, %v941
        %v992 = vpop.permute.xlu0 %991
        %995 = vset.pattern.permute.xlu0 0
        %996 = vperm.xlu0 %995, %v942
        %v997 = vpop.permute.xlu0 %996
        %1000 = vset.pattern.permute.xlu0 0
        %1001 = vperm.xlu0 %1000, %v943
        %v1002 = vpop.permute.xlu0 %1001
        %v1016 = vunpack.c.l.b16 %v920
        %v1017 = vunpack.c.l.b16 %v921
        %v1018 = vunpack.c.l.b16 %v922
        %v1019 = vunpack.c.l.b16 %v923
        %v1020 = vunpack.c.l.b16 %v924
        %v1021 = vunpack.c.l.b16 %v925
        %v1022 = vunpack.c.l.b16 %v926
        %v1023 = vunpack.c.l.b16 %v927
        %v1024 = vunpack.c.l.b16 %v928
        %v1025 = vunpack.c.l.b16 %v929
        %v1026 = vunpack.c.l.b16 %v930
        %v1027 = vunpack.c.l.b16 %v931
        %v1028 = vpack.c.b16 %v1017, %v1016
        %v1029 = vpack.c.b16 %v1019, %v1018
        %v1030 = vpack.c.b16 %v1021, %v1020
        %v1031 = vpack.c.b16 %v1023, %v1022
        %v1032 = vpack.c.b16 %v1025, %v1024
        %v1033 = vpack.c.b16 %v1027, %v1026
        %v1035 = vsel %vm344, %v1028, 0
        %v1038 = vsel %vm344, %v1029, 0
        %v1041 = vsel %vm344, %v1030, 0
        %v1044 = vsel %vm344, %v1031, 0
        %v1047 = vsel %vm344, %v1032, 0
        %v1050 = vsel %vm344, %v1033, 0
        %1052 = vmatprep.subr.bf16.mxu0 0
        %1053 = vmatpush1.bf16.msra.mxu0 %v918
        %1054 = vmatprep.subr.bf16.mxu0 0
        %1055 = vmatpush1.bf16.msra.mxu0 %v919
        %1056 = vmatprep.subr.bf16.mxu0 0
        %1057 = vmatpush1.bf16.msra.mxu0 0
        %1058 = vmatprep.subr.bf16.mxu0 0
        %1059 = vmatpush1.bf16.msra.mxu0 0
        %1060 = vmatprep.subr.bf16.mxu0 0
        %1061 = vmatpush1.bf16.msra.mxu0 0
        %1062 = vmatprep.subr.bf16.mxu0 0
        %1063 = vmatpush1.bf16.msra.mxu0 0
        %1064 = vmatprep.subr.bf16.mxu0 0
        %1065 = vmatpush1.bf16.msra.mxu0 0
        %1066 = vmatprep.subr.bf16.mxu0 0
        %1067 = vmatpush1.bf16.msra.mxu0 0
        %1068 = vmatprep.subr.bf16.mxu0 0
        %1069 = vmatpush1.bf16.msra.mxu0 0
        %1070 = vmatprep.subr.bf16.mxu0 0
        %1071 = vmatpush1.bf16.msra.mxu0 0
        %1072 = vmatprep.subr.bf16.mxu0 0
        %1073 = vmatpush1.bf16.msra.mxu0 0
        %1074 = vmatprep.subr.bf16.mxu0 0
        %1075 = vmatpush1.bf16.msra.mxu0 0
        %1076 = vmatprep.subr.bf16.mxu0 0
        %1077 = vmatpush1.bf16.msra.mxu0 0
        %1078 = vmatprep.subr.bf16.mxu0 0
        %1079 = vmatpush1.bf16.msra.mxu0 0
        %1080 = vmatprep.subr.bf16.mxu0 0
        %1081 = vmatpush1.bf16.msra.mxu0 0
        %1082 = vmatprep.subr.bf16.mxu0 0
        %1083 = vmatpush1.bf16.msra.mxu0 0
        %1084 = vmatprep.mubr.bf16.mxu0 0
        %1085 = vmatmul.mubr.bf16.gmra.mrb[0].mxu0 %v1035
        %v1086 = vpop.f32.mrb[0].mxu0
        %v1087 = vadd.f32 %v947, %v1086
        %v1088 = vpop.f32.mrb[0].mxu0
        %v1089 = vpop.f32.mrb[0].mxu0
        %v1090 = vadd.f32 %v952, %v1089
        %v1091 = vpop.f32.mrb[0].mxu0
        %1092 = vmatprep.mubr.bf16.mxu0 0
        %1093 = vmatmul.mubr.bf16.gmra.mrb[0].mxu0 %v1038
        %v1094 = vpop.f32.mrb[0].mxu0
        %v1095 = vadd.f32 %v957, %v1094
        %v1096 = vpop.f32.mrb[0].mxu0
        %v1097 = vpop.f32.mrb[0].mxu0
        %v1098 = vadd.f32 %v962, %v1097
        %v1099 = vpop.f32.mrb[0].mxu0
        %1100 = vmatprep.mubr.bf16.mxu0 0
        %1101 = vmatmul.mubr.bf16.gmra.mrb[0].mxu0 %v1041
        %v1102 = vpop.f32.mrb[0].mxu0
        %v1103 = vadd.f32 %v967, %v1102
        %v1104 = vpop.f32.mrb[0].mxu0
        %v1105 = vpop.f32.mrb[0].mxu0
        %v1106 = vadd.f32 %v972, %v1105
        %v1107 = vpop.f32.mrb[0].mxu0
        %1108 = vmatprep.mubr.bf16.mxu0 0
        %1109 = vmatmul.mubr.bf16.gmra.mrb[0].mxu0 %v1044
        %v1110 = vpop.f32.mrb[0].mxu0
        %v1111 = vadd.f32 %v977, %v1110
        %v1112 = vpop.f32.mrb[0].mxu0
        %v1113 = vpop.f32.mrb[0].mxu0
        %v1114 = vadd.f32 %v982, %v1113
        %v1115 = vpop.f32.mrb[0].mxu0
        %1116 = vmatprep.mubr.bf16.mxu0 0
        %1117 = vmatmul.mubr.bf16.gmra.mrb[0].mxu0 %v1047
        %v1118 = vpop.f32.mrb[0].mxu0
        %v1119 = vadd.f32 %v987, %v1118
        %v1120 = vpop.f32.mrb[0].mxu0
        %v1121 = vpop.f32.mrb[0].mxu0
        %v1122 = vadd.f32 %v992, %v1121
        %v1123 = vpop.f32.mrb[0].mxu0
        %1124 = vmatprep.mubr.bf16.mxu0 0
        %1125 = vmatmul.mubr.bf16.gmra.mrb[0].mxu0 %v1050
        %v1126 = vpop.f32.mrb[0].mxu0
        %v1127 = vadd.f32 %v997, %v1126
        %v1128 = vpop.f32.mrb[0].mxu0
        %v1129 = vpop.f32.mrb[0].mxu0
        %v1130 = vadd.f32 %v1002, %v1129
        %v1131 = vpop.f32.mrb[0].mxu0
        %1132 = vdwg.mxu0
        %v1133 = vpack.c.bf16 %v1090, %v1087
        %v1134 = vpack.c.bf16 %v1098, %v1095
        %v1135 = vpack.c.bf16 %v1106, %v1103
        %v1136 = vpack.c.bf16 %v1114, %v1111
        %v1137 = vpack.c.bf16 %v1122, %v1119
        %v1138 = vpack.c.bf16 %v1130, %v1127
        %s1139 = scalar_lea.vmem [#allocation2], 48
        %1140 = vst.msk [vmem:[%s1139] sm:$0xff] %vm450, %v1133
        %1141 = vst.msk [vmem:[%s1139 + $0x8] sm:$0xff] %vm450, %v1134
        %1142 = vst.msk [vmem:[%s1139 + $0x10] sm:$0xff] %vm450, %v1135
        %1143 = vst.msk [vmem:[%s1139 + $0x18] sm:$0xff] %vm450, %v1136
        %1144 = vst.msk [vmem:[%s1139 + $0x20] sm:$0xff] %vm450, %v1137
        %1145 = vst.msk [vmem:[%s1139 + $0x28] sm:$0xff] %vm450, %v1138
        %1146 = vxpose.xlu0.b32.start [1/16] %v1087, 128
        %1147 = vxpose.xlu0.b32.cont [2/16] %v1090, 128
        %1148 = vxpose.xlu0.b32.cont [3/16] %v1095, 128
        %1149 = vxpose.xlu0.b32.cont [4/16] %v1098, 128
        %1150 = vxpose.xlu0.b32.cont [5/16] 0.0, 128
        %1151 = vxpose.xlu0.b32.cont [6/16] 0.0, 128
        %1152 = vxpose.xlu0.b32.cont [7/16] 0.0, 128
        %1153 = vxpose.xlu0.b32.cont [8/16] 0.0, 128
        %1154 = vxpose.xlu0.b32.cont [9/16] 0.0, 128
        %1155 = vxpose.xlu0.b32.cont [10/16] 0.0, 128
        %1156 = vxpose.xlu0.b32.cont [11/16] 0.0, 128
        %1157 = vxpose.xlu0.b32.cont [12/16] 0.0, 128
        %1158 = vxpose.xlu0.b32.cont [13/16] 0.0, 128
        %1159 = vxpose.xlu0.b32.cont [14/16] 0.0, 128
        %1160 = vxpose.xlu0.b32.cont [15/16] 0.0, 128
        %1161 = vxpose.xlu0.b32.end [16/16] 0.0, 128
        %v1162 = vpop.trf.xlu0
        %v1163 = vpop.trf.xlu0
        %v1164 = vpop.trf.xlu0
        %v1165 = vpop.trf.xlu0
        %v1166 = vpop.trf.xlu0
        %v1167 = vpop.trf.xlu0
        %v1168 = vpop.trf.xlu0
        %v1169 = vpop.trf.xlu0
        %v1170 = vpop.trf.xlu0
        %v1171 = vpop.trf.xlu0
        %v1172 = vpop.trf.xlu0
        %v1173 = vpop.trf.xlu0
        %v1174 = vpop.trf.xlu0
        %v1175 = vpop.trf.xlu0
        %v1176 = vpop.trf.xlu0
        %v1177 = vpop.trf.xlu0
        %v1178 = vpack.c.bf16 %v1163, %v1162
        %v1179 = vpack.c.bf16 %v1165, %v1164
        %v1180 = vpack.c.bf16 %v1167, %v1166
        %v1181 = vpack.c.bf16 %v1169, %v1168
        %v1182 = vld [vmem:[%s1139 + $0x10] sm:$0xff]
        %v1183 = vld [vmem:[%s1139 + $0x18] sm:$0xff]
        %v1184 = vld [vmem:[%s1139 + $0x20] sm:$0xff]
        %v1185 = vld [vmem:[%s1139 + $0x28] sm:$0xff]
        %v1187 = vsel %vm344, %v1178, 0
        %v1190 = vsel %vm344, %v1179, 0
        %v1193 = vsel %vm344, %v1180, 0
        %v1196 = vsel %vm344, %v1181, 0
        %1198 = vmatprep.subr.bf16.mxu0 0
        %1199 = vmatpush1.bf16.msra.mxu0 %v1182
        %1200 = vmatprep.subr.bf16.mxu0 0
        %1201 = vmatpush1.bf16.msra.mxu0 %v1183
        %1202 = vmatprep.subr.bf16.mxu0 0
        %1203 = vmatpush1.bf16.msra.mxu0 0
        %1204 = vmatprep.subr.bf16.mxu0 0
        %1205 = vmatpush1.bf16.msra.mxu0 0
        %1206 = vmatprep.subr.bf16.mxu0 0
        %1207 = vmatpush1.bf16.msra.mxu0 0
        %1208 = vmatprep.subr.bf16.mxu0 0
        %1209 = vmatpush1.bf16.msra.mxu0 0
        %1210 = vmatprep.subr.bf16.mxu0 0
        %1211 = vmatpush1.bf16.msra.mxu0 0
        %1212 = vmatprep.subr.bf16.mxu0 0
        %1213 = vmatpush1.bf16.msra.mxu0 0
        %1214 = vmatprep.subr.bf16.mxu0 0
        %1215 = vmatpush1.bf16.msra.mxu0 0
        %1216 = vmatprep.subr.bf16.mxu0 0
        %1217 = vmatpush1.bf16.msra.mxu0 0
        %1218 = vmatprep.subr.bf16.mxu0 0
        %1219 = vmatpush1.bf16.msra.mxu0 0
        %1220 = vmatprep.subr.bf16.mxu0 0
        %1221 = vmatpush1.bf16.msra.mxu0 0
        %1222 = vmatprep.subr.bf16.mxu0 0
        %1223 = vmatpush1.bf16.msra.mxu0 0
        %1224 = vmatprep.subr.bf16.mxu0 0
        %1225 = vmatpush1.bf16.msra.mxu0 0
        %1226 = vmatprep.subr.bf16.mxu0 0
        %1227 = vmatpush1.bf16.msra.mxu0 0
        %1228 = vmatprep.subr.bf16.mxu0 0
        %1229 = vmatpush1.bf16.msra.mxu0 0
        %1230 = vmatprep.mubr.bf16.mxu0 0
        %1231 = vmatmul.mubr.bf16.gmra.mrb[0].mxu0 %v1187
        %v1232 = vpop.f32.mrb[0].mxu0
        %v1233 = vadd.f32 0.0, %v1232
        %v1234 = vpop.f32.mrb[0].mxu0
        %v1235 = vpop.f32.mrb[0].mxu0
        %v1236 = vadd.f32 0.0, %v1235
        %v1237 = vpop.f32.mrb[0].mxu0
        %1238 = vmatprep.mubr.bf16.mxu0 0
        %1239 = vmatmul.mubr.bf16.gmra.mrb[0].mxu0 %v1190
        %v1240 = vpop.f32.mrb[0].mxu0
        %v1241 = vadd.f32 0.0, %v1240
        %v1242 = vpop.f32.mrb[0].mxu0
        %v1243 = vpop.f32.mrb[0].mxu0
        %v1244 = vadd.f32 0.0, %v1243
        %v1245 = vpop.f32.mrb[0].mxu0
        %1246 = vmatprep.mubr.bf16.mxu0 0
        %1247 = vmatmul.mubr.bf16.gmra.mrb[0].mxu0 %v1193
        %v1248 = vpop.f32.mrb[0].mxu0
        %v1249 = vadd.f32 0.0, %v1248
        %v1250 = vpop.f32.mrb[0].mxu0
        %v1251 = vpop.f32.mrb[0].mxu0
        %v1252 = vadd.f32 0.0, %v1251
        %v1253 = vpop.f32.mrb[0].mxu0
        %1254 = vmatprep.mubr.bf16.mxu0 0
        %1255 = vmatmul.mubr.bf16.gmra.mrb[0].mxu0 %v1196
        %v1256 = vpop.f32.mrb[0].mxu0
        %v1257 = vadd.f32 0.0, %v1256
        %v1258 = vpop.f32.mrb[0].mxu0
        %v1259 = vpop.f32.mrb[0].mxu0
        %v1260 = vadd.f32 0.0, %v1259
        %v1261 = vpop.f32.mrb[0].mxu0
        %1262 = vdwg.mxu0
        %v1263 = vmul.f32 %v1233, 0.17677669
        %v1264 = vmul.f32 %v1236, 0.17677669
        %v1265 = vmul.f32 %v1241, 0.17677669
        %v1266 = vmul.f32 %v1244, 0.17677669
        %v1267 = vmul.f32 %v1249, 0.17677669
        %v1268 = vmul.f32 %v1252, 0.17677669
        %v1269 = vmul.f32 %v1257, 0.17677669
        %v1270 = vmul.f32 %v1260, 0.17677669
        %v1271 = vsel %vm450, %v1263, -inf
        %1272 = vmax.xlane.f32.xlu0 %v1271
        %v1273 = vpop.xlane.xlu0 %1272
        %v1274 = vsel %vm450, %v1264, -inf
        %1275 = vmax.xlane.f32.xlu0 %v1274
        %v1276 = vpop.xlane.xlu0 %1275
        %v1277 = vsel %vm450, %v1265, -inf
        %1278 = vmax.xlane.f32.xlu0 %v1277
        %v1279 = vpop.xlane.xlu0 %1278
        %v1280 = vsel %vm450, %v1266, -inf
        %1281 = vmax.xlane.f32.xlu0 %v1280
        %v1282 = vpop.xlane.xlu0 %1281
        %v1283 = vsel %vm450, %v1267, -inf
        %1284 = vmax.xlane.f32.xlu0 %v1283
        %v1285 = vpop.xlane.xlu0 %1284
        %v1286 = vsel %vm450, %v1268, -inf
        %1287 = vmax.xlane.f32.xlu0 %v1286
        %v1288 = vpop.xlane.xlu0 %1287
        %v1289 = vsel %vm450, %v1269, -inf
        %1290 = vmax.xlane.f32.xlu0 %v1289
        %v1291 = vpop.xlane.xlu0 %1290
        %v1292 = vsel %vm450, %v1270, -inf
        %1293 = vmax.xlane.f32.xlu0 %v1292
        %v1294 = vpop.xlane.xlu0 %1293
        %v1295 = vsub.f32 %v1263, %v1273
        %v1296 = vsub.f32 %v1264, %v1276
        %v1297 = vsub.f32 %v1265, %v1279
        %v1298 = vsub.f32 %v1266, %v1282
        %v1299 = vsub.f32 %v1267, %v1285
        %v1300 = vsub.f32 %v1268, %v1288
        %v1301 = vsub.f32 %v1269, %v1291
        %v1302 = vsub.f32 %v1270, %v1294
        %v1303 = vmul.f32 %v1295, 1.442695
        %v1304 = vpow.pop %v1303
        %v1305 = vmul.f32 %v1296, 1.442695
        %v1306 = vpow.pop %v1305
        %v1307 = vmul.f32 %v1297, 1.442695
        %v1308 = vpow.pop %v1307
        %v1309 = vmul.f32 %v1298, 1.442695
        %v1310 = vpow.pop %v1309
        %v1311 = vmul.f32 %v1299, 1.442695
        %v1312 = vpow.pop %v1311
        %v1313 = vmul.f32 %v1300, 1.442695
        %v1314 = vpow.pop %v1313
        %v1315 = vmul.f32 %v1301, 1.442695
        %v1316 = vpow.pop %v1315
        %v1317 = vmul.f32 %v1302, 1.442695
        %v1318 = vpow.pop %v1317
        %v1319 = vsel %vm450, %v1304, 0.0
        %1320 = vadd.xlane.f32.xlu0 %v1319
        %v1321 = vpop.xlane.xlu0 %1320
        %v1322 = vsel %vm450, %v1306, 0.0
        %1323 = vadd.xlane.f32.xlu0 %v1322
        %v1324 = vpop.xlane.xlu0 %1323
        %v1325 = vsel %vm450, %v1308, 0.0
        %1326 = vadd.xlane.f32.xlu0 %v1325
        %v1327 = vpop.xlane.xlu0 %1326
        %v1328 = vsel %vm450, %v1310, 0.0
        %1329 = vadd.xlane.f32.xlu0 %v1328
        %v1330 = vpop.xlane.xlu0 %1329
        %v1331 = vsel %vm450, %v1312, 0.0
        %1332 = vadd.xlane.f32.xlu0 %v1331
        %v1333 = vpop.xlane.xlu0 %1332
        %v1334 = vsel %vm450, %v1314, 0.0
        %1335 = vadd.xlane.f32.xlu0 %v1334
        %v1336 = vpop.xlane.xlu0 %1335
        %v1337 = vsel %vm450, %v1316, 0.0
        %1338 = vadd.xlane.f32.xlu0 %v1337
        %v1339 = vpop.xlane.xlu0 %1338
        %v1340 = vsel %vm450, %v1318, 0.0
        %1341 = vadd.xlane.f32.xlu0 %v1340
        %v1342 = vpop.xlane.xlu0 %1341
        %v1343 = vrcp.pop %v1321
        %v1344 = vrcp.pop %v1324
        %v1345 = vrcp.pop %v1327
        %v1346 = vrcp.pop %v1330
        %v1347 = vrcp.pop %v1333
        %v1348 = vrcp.pop %v1336
        %v1349 = vrcp.pop %v1339
        %v1350 = vrcp.pop %v1342
        %v1351 = vmul.f32 %v1304, %v1343
        %v1352 = vmul.f32 %v1306, %v1344
        %v1353 = vmul.f32 %v1308, %v1345
        %v1354 = vmul.f32 %v1310, %v1346
        %v1355 = vmul.f32 %v1312, %v1347
        %v1356 = vmul.f32 %v1314, %v1348
        %v1357 = vmul.f32 %v1316, %v1349
        %v1358 = vmul.f32 %v1318, %v1350
        %v1359 = vpack.c.bf16 %v1352, %v1351
        %v1360 = vpack.c.bf16 %v1354, %v1353
        %v1361 = vpack.c.bf16 %v1356, %v1355
        %v1362 = vpack.c.bf16 %v1358, %v1357
        %v1363 = vld [vmem:[%s1139] sm:$0xff]
        %v1364 = vld [vmem:[%s1139 + $0x8] sm:$0xff]
        %v1366 = vsel %vm450, %v1363, 0
        %v1369 = vsel %vm450, %v1364, 0
        %v1372 = vsel %vm450, %v1182, 0
        %v1375 = vsel %vm450, %v1183, 0
        %1377 = vmatprep.subr.bf16.mxu0 0
        %1378 = vmatpush1.bf16.xpose.msra.mxu0 %v1372
        %1379 = vmatprep.subr.bf16.mxu0 0
        %1380 = vmatpush1.bf16.xpose.msra.mxu0 %v1375
        %1381 = vmatprep.subr.bf16.mxu0 0
        %1382 = vmatpush1.bf16.xpose.msra.mxu0 0
        %1383 = vmatprep.subr.bf16.mxu0 0
        %1384 = vmatpush1.bf16.xpose.msra.mxu0 0
        %1385 = vmatprep.subr.bf16.mxu0 0
        %1386 = vmatpush1.bf16.xpose.msra.mxu0 0
        %1387 = vmatprep.subr.bf16.mxu0 0
        %1388 = vmatpush1.bf16.xpose.msra.mxu0 0
        %1389 = vmatprep.subr.bf16.mxu0 0
        %1390 = vmatpush1.bf16.xpose.msra.mxu0 0
        %1391 = vmatprep.subr.bf16.mxu0 0
        %1392 = vmatpush1.bf16.xpose.msra.mxu0 0
        %1393 = vmatprep.subr.bf16.mxu0 0
        %1394 = vmatpush1.bf16.xpose.msra.mxu0 0
        %1395 = vmatprep.subr.bf16.mxu0 0
        %1396 = vmatpush1.bf16.xpose.msra.mxu0 0
        %1397 = vmatprep.subr.bf16.mxu0 0
        %1398 = vmatpush1.bf16.xpose.msra.mxu0 0
        %1399 = vmatprep.subr.bf16.mxu0 0
        %1400 = vmatpush1.bf16.xpose.msra.mxu0 0
        %1401 = vmatprep.subr.bf16.mxu0 0
        %1402 = vmatpush1.bf16.xpose.msra.mxu0 0
        %1403 = vmatprep.subr.bf16.mxu0 0
        %1404 = vmatpush1.bf16.xpose.msra.mxu0 0
        %1405 = vmatprep.subr.bf16.mxu0 0
        %1406 = vmatpush1.bf16.xpose.msra.mxu0 0
        %1407 = vmatprep.subr.bf16.mxu0 0
        %1408 = vmatpush1.bf16.xpose.msra.mxu0 0
        %1409 = vmatprep.mubr.bf16.mxu0 0
        %1410 = vmatmul.mubr.bf16.gmra.mrb[0].mxu0 %v1366
        %v1411 = vpop.f32.mrb[0].mxu0
        %v1412 = vadd.f32 0.0, %v1411
        %v1413 = vpop.f32.mrb[0].mxu0
        %v1414 = vpop.f32.mrb[0].mxu0
        %v1415 = vadd.f32 0.0, %v1414
        %v1416 = vpop.f32.mrb[0].mxu0
        %1417 = vmatprep.mubr.bf16.mxu0 0
        %1418 = vmatmul.mubr.bf16.gmra.mrb[0].mxu0 %v1369
        %v1419 = vpop.f32.mrb[0].mxu0
        %v1420 = vadd.f32 0.0, %v1419
        %v1421 = vpop.f32.mrb[0].mxu0
        %v1422 = vpop.f32.mrb[0].mxu0
        %v1423 = vadd.f32 0.0, %v1422
        %v1424 = vpop.f32.mrb[0].mxu0
        %1425 = vdwg.mxu0
        %v1426 = vmul.f32 %v1412, 0.17677669
        %v1427 = vmul.f32 %v1415, 0.17677669
        %v1428 = vmul.f32 %v1420, 0.17677669
        %v1429 = vmul.f32 %v1423, 0.17677669
        %v1430 = vsel %vm344, %v1426, -inf
        %1431 = vmax.xlane.f32.xlu0 %v1430
        %v1432 = vpop.xlane.xlu0 %1431
        %v1433 = vsel %vm344, %v1427, -inf
        %1434 = vmax.xlane.f32.xlu0 %v1433
        %v1435 = vpop.xlane.xlu0 %1434
        %v1436 = vsel %vm344, %v1428, -inf
        %1437 = vmax.xlane.f32.xlu0 %v1436
        %v1438 = vpop.xlane.xlu0 %1437
        %v1439 = vsel %vm344, %v1429, -inf
        %1440 = vmax.xlane.f32.xlu0 %v1439
        %v1441 = vpop.xlane.xlu0 %1440
        %v1442 = vsub.f32 %v1426, %v1432
        %v1443 = vsub.f32 %v1427, %v1435
        %v1444 = vsub.f32 %v1428, %v1438
        %v1445 = vsub.f32 %v1429, %v1441
        %v1446 = vmul.f32 %v1442, 1.442695
        %v1447 = vpow.pop %v1446
        %v1448 = vmul.f32 %v1443, 1.442695
        %v1449 = vpow.pop %v1448
        %v1450 = vmul.f32 %v1444, 1.442695
        %v1451 = vpow.pop %v1450
        %v1452 = vmul.f32 %v1445, 1.442695
        %v1453 = vpow.pop %v1452
        %v1454 = vsel %vm344, %v1447, 0.0
        %1455 = vadd.xlane.f32.xlu0 %v1454
        %v1456 = vpop.xlane.xlu0 %1455
        %v1457 = vsel %vm344, %v1449, 0.0
        %1458 = vadd.xlane.f32.xlu0 %v1457
        %v1459 = vpop.xlane.xlu0 %1458
        %v1460 = vsel %vm344, %v1451, 0.0
        %1461 = vadd.xlane.f32.xlu0 %v1460
        %v1462 = vpop.xlane.xlu0 %1461
        %v1463 = vsel %vm344, %v1453, 0.0
        %1464 = vadd.xlane.f32.xlu0 %v1463
        %v1465 = vpop.xlane.xlu0 %1464
        %v1466 = vrcp.pop %v1456
        %v1467 = vrcp.pop %v1459
        %v1468 = vrcp.pop %v1462
        %v1469 = vrcp.pop %v1465
        %v1470 = vmul.f32 %v1447, %v1466
        %v1471 = vmul.f32 %v1449, %v1467
        %v1472 = vmul.f32 %v1451, %v1468
        %v1473 = vmul.f32 %v1453, %v1469
        %v1474 = vpack.c.bf16 %v1471, %v1470
        %v1475 = vpack.c.bf16 %v1473, %v1472
        %v1477 = vsel %vm344, %v1474, 0
        %v1480 = vsel %vm344, %v1475, 0
        %1482 = vmatprep.subr.bf16.mxu0 0
        %1483 = vmatpush1.bf16.msra.mxu0 %v1184
        %1484 = vmatprep.subr.bf16.mxu0 0
        %1485 = vmatpush1.bf16.msra.mxu0 %v1185
        %1486 = vmatprep.subr.bf16.mxu0 0
        %1487 = vmatpush1.bf16.msra.mxu0 0
        %1488 = vmatprep.subr.bf16.mxu0 0
        %1489 = vmatpush1.bf16.msra.mxu0 0
        %1490 = vmatprep.subr.bf16.mxu0 0
        %1491 = vmatpush1.bf16.msra.mxu0 0
        %1492 = vmatprep.subr.bf16.mxu0 0
        %1493 = vmatpush1.bf16.msra.mxu0 0
        %1494 = vmatprep.subr.bf16.mxu0 0
        %1495 = vmatpush1.bf16.msra.mxu0 0
        %1496 = vmatprep.subr.bf16.mxu0 0
        %1497 = vmatpush1.bf16.msra.mxu0 0
        %1498 = vmatprep.subr.bf16.mxu0 0
        %1499 = vmatpush1.bf16.msra.mxu0 0
        %1500 = vmatprep.subr.bf16.mxu0 0
        %1501 = vmatpush1.bf16.msra.mxu0 0
        %1502 = vmatprep.subr.bf16.mxu0 0
        %1503 = vmatpush1.bf16.msra.mxu0 0
        %1504 = vmatprep.subr.bf16.mxu0 0
        %1505 = vmatpush1.bf16.msra.mxu0 0
        %1506 = vmatprep.subr.bf16.mxu0 0
        %1507 = vmatpush1.bf16.msra.mxu0 0
        %1508 = vmatprep.subr.bf16.mxu0 0
        %1509 = vmatpush1.bf16.msra.mxu0 0
        %1510 = vmatprep.subr.bf16.mxu0 0
        %1511 = vmatpush1.bf16.msra.mxu0 0
        %1512 = vmatprep.subr.bf16.mxu0 0
        %1513 = vmatpush1.bf16.msra.mxu0 0
        %1514 = vmatprep.mubr.bf16.mxu0 0
        %1515 = vmatmul.mubr.bf16.gmra.mrb[0].mxu0 %v1477
        %v1516 = vpop.f32.mrb[0].mxu0
        %v1517 = vadd.f32 0.0, %v1516
        %v1518 = vpop.f32.mrb[0].mxu0
        %v1519 = vpop.f32.mrb[0].mxu0
        %v1520 = vadd.f32 0.0, %v1519
        %v1521 = vpop.f32.mrb[0].mxu0
        %1522 = vmatprep.mubr.bf16.mxu0 0
        %1523 = vmatmul.mubr.bf16.gmra.mrb[0].mxu0 %v1480
        %v1524 = vpop.f32.mrb[0].mxu0
        %v1525 = vadd.f32 0.0, %v1524
        %v1526 = vpop.f32.mrb[0].mxu0
        %v1527 = vpop.f32.mrb[0].mxu0
        %v1528 = vadd.f32 0.0, %v1527
        %v1529 = vpop.f32.mrb[0].mxu0
        %1530 = vdwg.mxu0
        %v1532 = vsel %vm450, %v1184, 0
        %v1535 = vsel %vm450, %v1185, 0
        %v1538 = vsel %vm450, %v1359, 0
        %v1541 = vsel %vm450, %v1360, 0
        %v1544 = vsel %vm450, %v1361, 0
        %v1547 = vsel %vm450, %v1362, 0
        %1549 = vmatprep.subr.bf16.mxu0 0
        %1550 = vmatpush1.bf16.xpose.msra.mxu0 %v1538
        %1551 = vmatprep.subr.bf16.mxu0 0
        %1552 = vmatpush1.bf16.xpose.msra.mxu0 %v1541
        %1553 = vmatprep.subr.bf16.mxu0 0
        %1554 = vmatpush1.bf16.xpose.msra.mxu0 %v1544
        %1555 = vmatprep.subr.bf16.mxu0 0
        %1556 = vmatpush1.bf16.xpose.msra.mxu0 %v1547
        %1557 = vmatprep.subr.bf16.mxu0 0
        %1558 = vmatpush1.bf16.xpose.msra.mxu0 0
        %1559 = vmatprep.subr.bf16.mxu0 0
        %1560 = vmatpush1.bf16.xpose.msra.mxu0 0
        %1561 = vmatprep.subr.bf16.mxu0 0
        %1562 = vmatpush1.bf16.xpose.msra.mxu0 0
        %1563 = vmatprep.subr.bf16.mxu0 0
        %1564 = vmatpush1.bf16.xpose.msra.mxu0 0
        %1565 = vmatprep.subr.bf16.mxu0 0
        %1566 = vmatpush1.bf16.xpose.msra.mxu0 0
        %1567 = vmatprep.subr.bf16.mxu0 0
        %1568 = vmatpush1.bf16.xpose.msra.mxu0 0
        %1569 = vmatprep.subr.bf16.mxu0 0
        %1570 = vmatpush1.bf16.xpose.msra.mxu0 0
        %1571 = vmatprep.subr.bf16.mxu0 0
        %1572 = vmatpush1.bf16.xpose.msra.mxu0 0
        %1573 = vmatprep.subr.bf16.mxu0 0
        %1574 = vmatpush1.bf16.xpose.msra.mxu0 0
        %1575 = vmatprep.subr.bf16.mxu0 0
        %1576 = vmatpush1.bf16.xpose.msra.mxu0 0
        %1577 = vmatprep.subr.bf16.mxu0 0
        %1578 = vmatpush1.bf16.xpose.msra.mxu0 0
        %1579 = vmatprep.subr.bf16.mxu0 0
        %1580 = vmatpush1.bf16.xpose.msra.mxu0 0
        %1581 = vmatprep.mubr.bf16.mxu0 0
        %1582 = vmatmul.mubr.bf16.gmra.mrb[0].mxu0 %v1532
        %v1583 = vpop.f32.mrb[0].mxu0
        %v1584 = vadd.f32 %v1517, %v1583
        %v1585 = vpop.f32.mrb[0].mxu0
        %v1586 = vpop.f32.mrb[0].mxu0
        %v1587 = vadd.f32 %v1520, %v1586
        %v1588 = vpop.f32.mrb[0].mxu0
        %1589 = vmatprep.mubr.bf16.mxu0 0
        %1590 = vmatmul.mubr.bf16.gmra.mrb[0].mxu0 %v1535
        %v1591 = vpop.f32.mrb[0].mxu0
        %v1592 = vadd.f32 %v1525, %v1591
        %v1593 = vpop.f32.mrb[0].mxu0
        %v1594 = vpop.f32.mrb[0].mxu0
        %v1595 = vadd.f32 %v1528, %v1594
        %v1596 = vpop.f32.mrb[0].mxu0
        %1597 = vdwg.mxu0
        %v1598 = vpack.c.bf16 %v1587, %v1584
        %v1599 = vpack.c.bf16 %v1595, %v1592
        %1602 = vrot.lane.b32.xlu0 %v1598, 64
        %v1603 = vpop.permute.xlu0 %1602
        %1604 = vrot.lane.b32.xlu0 %v1599, 64
        %v1605 = vpop.permute.xlu0 %1604
        %vm1608 = vcmask 1048064
        %1609 = vst.msk [vmem:[#allocation3] sm:$0xff] %vm1608, %v1603
        %1610 = vst.msk [vmem:[#allocation3 + $0x10] sm:$0xff] %vm1608, %v1605
        %s1611 = scalar_lea.vmem %s222, 64
        %v1612 = vld [vmem:[%s1611] sm:$0xff]
        %v1613 = vld [vmem:[%s1611 + $0x8] sm:$0xff]
        %v1614 = vld [vmem:[%s1611 + $0x10] sm:$0xff]
        %v1615 = vld [vmem:[%s1611 + $0x18] sm:$0xff]
        %v1616 = vpack.c.bf16 %v1613, %v1612
        %v1617 = vpack.c.bf16 %v1615, %v1614
        %v1618 = vld [vmem:[%s1] sm:$0xf]
        %v1619 = vld [vmem:[%s1 + $0x4] sm:$0xf]
        %v1620 = vld [vmem:[%s1 + $0x8] sm:$0xf]
        %v1621 = vld [vmem:[%s1 + $0xc] sm:$0xf]
        %v1622 = vld [vmem:[%s1 + $0x10] sm:$0xf]
        %v1623 = vld [vmem:[%s1 + $0x14] sm:$0xf]
        %v1624 = vld [vmem:[%s1 + $0x18] sm:$0xf]
        %v1625 = vld [vmem:[%s1 + $0x1c] sm:$0xf]
        %v1626 = vld [vmem:[%s1 + $0x20] sm:$0xf]
        %v1627 = vld [vmem:[%s1 + $0x24] sm:$0xf]
        %v1628 = vld [vmem:[%s1 + $0x28] sm:$0xf]
        %v1629 = vld [vmem:[%s1 + $0x2c] sm:$0xf]
        %v1630 = vld [vmem:[%s2] sm:$0xff]
        %v1631 = vld [vmem:[%s2 + $0x8] sm:$0xff]
        %v1632 = vld [vmem:[%s2 + $0x10] sm:$0xff]
        %v1633 = vld [vmem:[%s2 + $0x18] sm:$0xff]
        %v1634 = vld [vmem:[%s2 + $0x20] sm:$0xff]
        %v1635 = vld [vmem:[%s2 + $0x28] sm:$0xff]
        %v1636 = vld [vmem:[%s2 + $0x30] sm:$0xff]
        %v1637 = vld [vmem:[%s2 + $0x38] sm:$0xff]
        %v1638 = vld [vmem:[%s2 + $0x40] sm:$0xff]
        %v1639 = vld [vmem:[%s2 + $0x48] sm:$0xff]
        %v1640 = vld [vmem:[%s2 + $0x50] sm:$0xff]
        %v1641 = vld [vmem:[%s2 + $0x58] sm:$0xff]
        %1643 = vset.pattern.permute.xlu0 0
        %1644 = vperm.xlu0 %1643, %v1630
        %v1645 = vpop.permute.xlu0 %1644
        %1648 = vset.pattern.permute.xlu0 0
        %1649 = vperm.xlu0 %1648, %v1631
        %v1650 = vpop.permute.xlu0 %1649
        %1653 = vset.pattern.permute.xlu0 0
        %1654 = vperm.xlu0 %1653, %v1632
        %v1655 = vpop.permute.xlu0 %1654
        %1658 = vset.pattern.permute.xlu0 0
        %1659 = vperm.xlu0 %1658, %v1633
        %v1660 = vpop.permute.xlu0 %1659
        %1663 = vset.pattern.permute.xlu0 0
        %1664 = vperm.xlu0 %1663, %v1634
        %v1665 = vpop.permute.xlu0 %1664
        %1668 = vset.pattern.permute.xlu0 0
        %1669 = vperm.xlu0 %1668, %v1635
        %v1670 = vpop.permute.xlu0 %1669
        %1673 = vset.pattern.permute.xlu0 0
        %1674 = vperm.xlu0 %1673, %v1636
        %v1675 = vpop.permute.xlu0 %1674
        %1678 = vset.pattern.permute.xlu0 0
        %1679 = vperm.xlu0 %1678, %v1637
        %v1680 = vpop.permute.xlu0 %1679
        %1683 = vset.pattern.permute.xlu0 0
        %1684 = vperm.xlu0 %1683, %v1638
        %v1685 = vpop.permute.xlu0 %1684
        %1688 = vset.pattern.permute.xlu0 0
        %1689 = vperm.xlu0 %1688, %v1639
        %v1690 = vpop.permute.xlu0 %1689
        %1693 = vset.pattern.permute.xlu0 0
        %1694 = vperm.xlu0 %1693, %v1640
        %v1695 = vpop.permute.xlu0 %1694
        %1698 = vset.pattern.permute.xlu0 0
        %1699 = vperm.xlu0 %1698, %v1641
        %v1700 = vpop.permute.xlu0 %1699
        %v1714 = vunpack.c.l.b16 %v1618
        %v1715 = vunpack.c.l.b16 %v1619
        %v1716 = vunpack.c.l.b16 %v1620
        %v1717 = vunpack.c.l.b16 %v1621
        %v1718 = vunpack.c.l.b16 %v1622
        %v1719 = vunpack.c.l.b16 %v1623
        %v1720 = vunpack.c.l.b16 %v1624
        %v1721 = vunpack.c.l.b16 %v1625
        %v1722 = vunpack.c.l.b16 %v1626
        %v1723 = vunpack.c.l.b16 %v1627
        %v1724 = vunpack.c.l.b16 %v1628
        %v1725 = vunpack.c.l.b16 %v1629
        %v1726 = vpack.c.b16 %v1715, %v1714
        %v1727 = vpack.c.b16 %v1717, %v1716
        %v1728 = vpack.c.b16 %v1719, %v1718
        %v1729 = vpack.c.b16 %v1721, %v1720
        %v1730 = vpack.c.b16 %v1723, %v1722
        %v1731 = vpack.c.b16 %v1725, %v1724
        %v1733 = vsel %vm344, %v1726, 0
        %v1736 = vsel %vm344, %v1727, 0
        %v1739 = vsel %vm344, %v1728, 0
        %v1742 = vsel %vm344, %v1729, 0
        %v1745 = vsel %vm344, %v1730, 0
        %v1748 = vsel %vm344, %v1731, 0
        %1750 = vmatprep.subr.bf16.mxu0 0
        %1751 = vmatpush1.bf16.msra.mxu0 %v1616
        %1752 = vmatprep.subr.bf16.mxu0 0
        %1753 = vmatpush1.bf16.msra.mxu0 %v1617
        %1754 = vmatprep.subr.bf16.mxu0 0
        %1755 = vmatpush1.bf16.msra.mxu0 0
        %1756 = vmatprep.subr.bf16.mxu0 0
        %1757 = vmatpush1.bf16.msra.mxu0 0
        %1758 = vmatprep.subr.bf16.mxu0 0
        %1759 = vmatpush1.bf16.msra.mxu0 0
        %1760 = vmatprep.subr.bf16.mxu0 0
        %1761 = vmatpush1.bf16.msra.mxu0 0
        %1762 = vmatprep.subr.bf16.mxu0 0
        %1763 = vmatpush1.bf16.msra.mxu0 0
        %1764 = vmatprep.subr.bf16.mxu0 0
        %1765 = vmatpush1.bf16.msra.mxu0 0
        %1766 = vmatprep.subr.bf16.mxu0 0
        %1767 = vmatpush1.bf16.msra.mxu0 0
        %1768 = vmatprep.subr.bf16.mxu0 0
        %1769 = vmatpush1.bf16.msra.mxu0 0
        %1770 = vmatprep.subr.bf16.mxu0 0
        %1771 = vmatpush1.bf16.msra.mxu0 0
        %1772 = vmatprep.subr.bf16.mxu0 0
        %1773 = vmatpush1.bf16.msra.mxu0 0
        %1774 = vmatprep.subr.bf16.mxu0 0
        %1775 = vmatpush1.bf16.msra.mxu0 0
        %1776 = vmatprep.subr.bf16.mxu0 0
        %1777 = vmatpush1.bf16.msra.mxu0 0
        %1778 = vmatprep.subr.bf16.mxu0 0
        %1779 = vmatpush1.bf16.msra.mxu0 0
        %1780 = vmatprep.subr.bf16.mxu0 0
        %1781 = vmatpush1.bf16.msra.mxu0 0
        %1782 = vmatprep.mubr.bf16.mxu0 0
        %1783 = vmatmul.mubr.bf16.gmra.mrb[0].mxu0 %v1733
        %v1784 = vpop.f32.mrb[0].mxu0
        %v1785 = vadd.f32 %v1645, %v1784
        %v1786 = vpop.f32.mrb[0].mxu0
        %v1787 = vpop.f32.mrb[0].mxu0
        %v1788 = vadd.f32 %v1650, %v1787
        %v1789 = vpop.f32.mrb[0].mxu0
        %1790 = vmatprep.mubr.bf16.mxu0 0
        %1791 = vmatmul.mubr.bf16.gmra.mrb[0].mxu0 %v1736
        %v1792 = vpop.f32.mrb[0].mxu0
        %v1793 = vadd.f32 %v1655, %v1792
        %v1794 = vpop.f32.mrb[0].mxu0
        %v1795 = vpop.f32.mrb[0].mxu0
        %v1796 = vadd.f32 %v1660, %v1795
        %v1797 = vpop.f32.mrb[0].mxu0
        %1798 = vmatprep.mubr.bf16.mxu0 0
        %1799 = vmatmul.mubr.bf16.gmra.mrb[0].mxu0 %v1739
        %v1800 = vpop.f32.mrb[0].mxu0
        %v1801 = vadd.f32 %v1665, %v1800
        %v1802 = vpop.f32.mrb[0].mxu0
        %v1803 = vpop.f32.mrb[0].mxu0
        %v1804 = vadd.f32 %v1670, %v1803
        %v1805 = vpop.f32.mrb[0].mxu0
        %1806 = vmatprep.mubr.bf16.mxu0 0
        %1807 = vmatmul.mubr.bf16.gmra.mrb[0].mxu0 %v1742
        %v1808 = vpop.f32.mrb[0].mxu0
        %v1809 = vadd.f32 %v1675, %v1808
        %v1810 = vpop.f32.mrb[0].mxu0
        %v1811 = vpop.f32.mrb[0].mxu0
        %v1812 = vadd.f32 %v1680, %v1811
        %v1813 = vpop.f32.mrb[0].mxu0
        %1814 = vmatprep.mubr.bf16.mxu0 0
        %1815 = vmatmul.mubr.bf16.gmra.mrb[0].mxu0 %v1745
        %v1816 = vpop.f32.mrb[0].mxu0
        %v1817 = vadd.f32 %v1685, %v1816
        %v1818 = vpop.f32.mrb[0].mxu0
        %v1819 = vpop.f32.mrb[0].mxu0
        %v1820 = vadd.f32 %v1690, %v1819
        %v1821 = vpop.f32.mrb[0].mxu0
        %1822 = vmatprep.mubr.bf16.mxu0 0
        %1823 = vmatmul.mubr.bf16.gmra.mrb[0].mxu0 %v1748
        %v1824 = vpop.f32.mrb[0].mxu0
        %v1825 = vadd.f32 %v1695, %v1824
        %v1826 = vpop.f32.mrb[0].mxu0
        %v1827 = vpop.f32.mrb[0].mxu0
        %v1828 = vadd.f32 %v1700, %v1827
        %v1829 = vpop.f32.mrb[0].mxu0
        %1830 = vdwg.mxu0
        %v1831 = vpack.c.bf16 %v1788, %v1785
        %v1832 = vpack.c.bf16 %v1796, %v1793
        %v1833 = vpack.c.bf16 %v1804, %v1801
        %v1834 = vpack.c.bf16 %v1812, %v1809
        %v1835 = vpack.c.bf16 %v1820, %v1817
        %v1836 = vpack.c.bf16 %v1828, %v1825
        %s1837 = scalar_lea.vmem [#allocation2], 96
        %1838 = vst.msk [vmem:[%s1837] sm:$0xff] %vm450, %v1831
        %1839 = vst.msk [vmem:[%s1837 + $0x8] sm:$0xff] %vm450, %v1832
        %1840 = vst.msk [vmem:[%s1837 + $0x10] sm:$0xff] %vm450, %v1833
        %1841 = vst.msk [vmem:[%s1837 + $0x18] sm:$0xff] %vm450, %v1834
        %1842 = vst.msk [vmem:[%s1837 + $0x20] sm:$0xff] %vm450, %v1835
        %1843 = vst.msk [vmem:[%s1837 + $0x28] sm:$0xff] %vm450, %v1836
        %1844 = vxpose.xlu0.b32.start [1/16] %v1785, 128
        %1845 = vxpose.xlu0.b32.cont [2/16] %v1788, 128
        %1846 = vxpose.xlu0.b32.cont [3/16] %v1793, 128
        %1847 = vxpose.xlu0.b32.cont [4/16] %v1796, 128
        %1848 = vxpose.xlu0.b32.cont [5/16] 0.0, 128
        %1849 = vxpose.xlu0.b32.cont [6/16] 0.0, 128
        %1850 = vxpose.xlu0.b32.cont [7/16] 0.0, 128
        %1851 = vxpose.xlu0.b32.cont [8/16] 0.0, 128
        %1852 = vxpose.xlu0.b32.cont [9/16] 0.0, 128
        %1853 = vxpose.xlu0.b32.cont [10/16] 0.0, 128
        %1854 = vxpose.xlu0.b32.cont [11/16] 0.0, 128
        %1855 = vxpose.xlu0.b32.cont [12/16] 0.0, 128
        %1856 = vxpose.xlu0.b32.cont [13/16] 0.0, 128
        %1857 = vxpose.xlu0.b32.cont [14/16] 0.0, 128
        %1858 = vxpose.xlu0.b32.cont [15/16] 0.0, 128
        %1859 = vxpose.xlu0.b32.end [16/16] 0.0, 128
        %v1860 = vpop.trf.xlu0
        %v1861 = vpop.trf.xlu0
        %v1862 = vpop.trf.xlu0
        %v1863 = vpop.trf.xlu0
        %v1864 = vpop.trf.xlu0
        %v1865 = vpop.trf.xlu0
        %v1866 = vpop.trf.xlu0
        %v1867 = vpop.trf.xlu0
        %v1868 = vpop.trf.xlu0
        %v1869 = vpop.trf.xlu0
        %v1870 = vpop.trf.xlu0
        %v1871 = vpop.trf.xlu0
        %v1872 = vpop.trf.xlu0
        %v1873 = vpop.trf.xlu0
        %v1874 = vpop.trf.xlu0
        %v1875 = vpop.trf.xlu0
        %v1876 = vpack.c.bf16 %v1861, %v1860
        %v1877 = vpack.c.bf16 %v1863, %v1862
        %v1878 = vpack.c.bf16 %v1865, %v1864
        %v1879 = vpack.c.bf16 %v1867, %v1866
        %v1880 = vld [vmem:[%s1837 + $0x10] sm:$0xff]
        %v1881 = vld [vmem:[%s1837 + $0x18] sm:$0xff]
        %v1882 = vld [vmem:[%s1837 + $0x20] sm:$0xff]
        %v1883 = vld [vmem:[%s1837 + $0x28] sm:$0xff]
        %v1885 = vsel %vm344, %v1876, 0
        %v1888 = vsel %vm344, %v1877, 0
        %v1891 = vsel %vm344, %v1878, 0
        %v1894 = vsel %vm344, %v1879, 0
        %1896 = vmatprep.subr.bf16.mxu0 0
        %1897 = vmatpush1.bf16.msra.mxu0 %v1880
        %1898 = vmatprep.subr.bf16.mxu0 0
        %1899 = vmatpush1.bf16.msra.mxu0 %v1881
        %1900 = vmatprep.subr.bf16.mxu0 0
        %1901 = vmatpush1.bf16.msra.mxu0 0
        %1902 = vmatprep.subr.bf16.mxu0 0
        %1903 = vmatpush1.bf16.msra.mxu0 0
        %1904 = vmatprep.subr.bf16.mxu0 0
        %1905 = vmatpush1.bf16.msra.mxu0 0
        %1906 = vmatprep.subr.bf16.mxu0 0
        %1907 = vmatpush1.bf16.msra.mxu0 0
        %1908 = vmatprep.subr.bf16.mxu0 0
        %1909 = vmatpush1.bf16.msra.mxu0 0
        %1910 = vmatprep.subr.bf16.mxu0 0
        %1911 = vmatpush1.bf16.msra.mxu0 0
        %1912 = vmatprep.subr.bf16.mxu0 0
        %1913 = vmatpush1.bf16.msra.mxu0 0
        %1914 = vmatprep.subr.bf16.mxu0 0
        %1915 = vmatpush1.bf16.msra.mxu0 0
        %1916 = vmatprep.subr.bf16.mxu0 0
        %1917 = vmatpush1.bf16.msra.mxu0 0
        %1918 = vmatprep.subr.bf16.mxu0 0
        %1919 = vmatpush1.bf16.msra.mxu0 0
        %1920 = vmatprep.subr.bf16.mxu0 0
        %1921 = vmatpush1.bf16.msra.mxu0 0
        %1922 = vmatprep.subr.bf16.mxu0 0
        %1923 = vmatpush1.bf16.msra.mxu0 0
        %1924 = vmatprep.subr.bf16.mxu0 0
        %1925 = vmatpush1.bf16.msra.mxu0 0
        %1926 = vmatprep.subr.bf16.mxu0 0
        %1927 = vmatpush1.bf16.msra.mxu0 0
        %1928 = vmatprep.mubr.bf16.mxu0 0
        %1929 = vmatmul.mubr.bf16.gmra.mrb[0].mxu0 %v1885
        %v1930 = vpop.f32.mrb[0].mxu0
        %v1931 = vadd.f32 0.0, %v1930
        %v1932 = vpop.f32.mrb[0].mxu0
        %v1933 = vpop.f32.mrb[0].mxu0
        %v1934 = vadd.f32 0.0, %v1933
        %v1935 = vpop.f32.mrb[0].mxu0
        %1936 = vmatprep.mubr.bf16.mxu0 0
        %1937 = vmatmul.mubr.bf16.gmra.mrb[0].mxu0 %v1888
        %v1938 = vpop.f32.mrb[0].mxu0
        %v1939 = vadd.f32 0.0, %v1938
        %v1940 = vpop.f32.mrb[0].mxu0
        %v1941 = vpop.f32.mrb[0].mxu0
        %v1942 = vadd.f32 0.0, %v1941
        %v1943 = vpop.f32.mrb[0].mxu0
        %1944 = vmatprep.mubr.bf16.mxu0 0
        %1945 = vmatmul.mubr.bf16.gmra.mrb[0].mxu0 %v1891
        %v1946 = vpop.f32.mrb[0].mxu0
        %v1947 = vadd.f32 0.0, %v1946
        %v1948 = vpop.f32.mrb[0].mxu0
        %v1949 = vpop.f32.mrb[0].mxu0
        %v1950 = vadd.f32 0.0, %v1949
        %v1951 = vpop.f32.mrb[0].mxu0
        %1952 = vmatprep.mubr.bf16.mxu0 0
        %1953 = vmatmul.mubr.bf16.gmra.mrb[0].mxu0 %v1894
        %v1954 = vpop.f32.mrb[0].mxu0
        %v1955 = vadd.f32 0.0, %v1954
        %v1956 = vpop.f32.mrb[0].mxu0
        %v1957 = vpop.f32.mrb[0].mxu0
        %v1958 = vadd.f32 0.0, %v1957
        %v1959 = vpop.f32.mrb[0].mxu0
        %1960 = vdwg.mxu0
        %v1961 = vmul.f32 %v1931, 0.17677669
        %v1962 = vmul.f32 %v1934, 0.17677669
        %v1963 = vmul.f32 %v1939, 0.17677669
        %v1964 = vmul.f32 %v1942, 0.17677669
        %v1965 = vmul.f32 %v1947, 0.17677669
        %v1966 = vmul.f32 %v1950, 0.17677669
        %v1967 = vmul.f32 %v1955, 0.17677669
        %v1968 = vmul.f32 %v1958, 0.17677669
        %v1969 = vsel %vm450, %v1961, -inf
        %1970 = vmax.xlane.f32.xlu0 %v1969
        %v1971 = vpop.xlane.xlu0 %1970
        %v1972 = vsel %vm450, %v1962, -inf
        %1973 = vmax.xlane.f32.xlu0 %v1972
        %v1974 = vpop.xlane.xlu0 %1973
        %v1975 = vsel %vm450, %v1963, -inf
        %1976 = vmax.xlane.f32.xlu0 %v1975
        %v1977 = vpop.xlane.xlu0 %1976
        %v1978 = vsel %vm450, %v1964, -inf
        %1979 = vmax.xlane.f32.xlu0 %v1978
        %v1980 = vpop.xlane.xlu0 %1979
        %v1981 = vsel %vm450, %v1965, -inf
        %1982 = vmax.xlane.f32.xlu0 %v1981
        %v1983 = vpop.xlane.xlu0 %1982
        %v1984 = vsel %vm450, %v1966, -inf
        %1985 = vmax.xlane.f32.xlu0 %v1984
        %v1986 = vpop.xlane.xlu0 %1985
        %v1987 = vsel %vm450, %v1967, -inf
        %1988 = vmax.xlane.f32.xlu0 %v1987
        %v1989 = vpop.xlane.xlu0 %1988
        %v1990 = vsel %vm450, %v1968, -inf
        %1991 = vmax.xlane.f32.xlu0 %v1990
        %v1992 = vpop.xlane.xlu0 %1991
        %v1993 = vsub.f32 %v1961, %v1971
        %v1994 = vsub.f32 %v1962, %v1974
        %v1995 = vsub.f32 %v1963, %v1977
        %v1996 = vsub.f32 %v1964, %v1980
        %v1997 = vsub.f32 %v1965, %v1983
        %v1998 = vsub.f32 %v1966, %v1986
        %v1999 = vsub.f32 %v1967, %v1989
        %v2000 = vsub.f32 %v1968, %v1992
        %v2001 = vmul.f32 %v1993, 1.442695
        %v2002 = vpow.pop %v2001
        %v2003 = vmul.f32 %v1994, 1.442695
        %v2004 = vpow.pop %v2003
        %v2005 = vmul.f32 %v1995, 1.442695
        %v2006 = vpow.pop %v2005
        %v2007 = vmul.f32 %v1996, 1.442695
        %v2008 = vpow.pop %v2007
        %v2009 = vmul.f32 %v1997, 1.442695
        %v2010 = vpow.pop %v2009
        %v2011 = vmul.f32 %v1998, 1.442695
        %v2012 = vpow.pop %v2011
        %v2013 = vmul.f32 %v1999, 1.442695
        %v2014 = vpow.pop %v2013
        %v2015 = vmul.f32 %v2000, 1.442695
        %v2016 = vpow.pop %v2015
        %v2017 = vsel %vm450, %v2002, 0.0
        %2018 = vadd.xlane.f32.xlu0 %v2017
        %v2019 = vpop.xlane.xlu0 %2018
        %v2020 = vsel %vm450, %v2004, 0.0
        %2021 = vadd.xlane.f32.xlu0 %v2020
        %v2022 = vpop.xlane.xlu0 %2021
        %v2023 = vsel %vm450, %v2006, 0.0
        %2024 = vadd.xlane.f32.xlu0 %v2023
        %v2025 = vpop.xlane.xlu0 %2024
        %v2026 = vsel %vm450, %v2008, 0.0
        %2027 = vadd.xlane.f32.xlu0 %v2026
        %v2028 = vpop.xlane.xlu0 %2027
        %v2029 = vsel %vm450, %v2010, 0.0
        %2030 = vadd.xlane.f32.xlu0 %v2029
        %v2031 = vpop.xlane.xlu0 %2030
        %v2032 = vsel %vm450, %v2012, 0.0
        %2033 = vadd.xlane.f32.xlu0 %v2032
        %v2034 = vpop.xlane.xlu0 %2033
        %v2035 = vsel %vm450, %v2014, 0.0
        %2036 = vadd.xlane.f32.xlu0 %v2035
        %v2037 = vpop.xlane.xlu0 %2036
        %v2038 = vsel %vm450, %v2016, 0.0
        %2039 = vadd.xlane.f32.xlu0 %v2038
        %v2040 = vpop.xlane.xlu0 %2039
        %v2041 = vrcp.pop %v2019
        %v2042 = vrcp.pop %v2022
        %v2043 = vrcp.pop %v2025
        %v2044 = vrcp.pop %v2028
        %v2045 = vrcp.pop %v2031
        %v2046 = vrcp.pop %v2034
        %v2047 = vrcp.pop %v2037
        %v2048 = vrcp.pop %v2040
        %v2049 = vmul.f32 %v2002, %v2041
        %v2050 = vmul.f32 %v2004, %v2042
        %v2051 = vmul.f32 %v2006, %v2043
        %v2052 = vmul.f32 %v2008, %v2044
        %v2053 = vmul.f32 %v2010, %v2045
        %v2054 = vmul.f32 %v2012, %v2046
        %v2055 = vmul.f32 %v2014, %v2047
        %v2056 = vmul.f32 %v2016, %v2048
        %v2057 = vpack.c.bf16 %v2050, %v2049
        %v2058 = vpack.c.bf16 %v2052, %v2051
        %v2059 = vpack.c.bf16 %v2054, %v2053
        %v2060 = vpack.c.bf16 %v2056, %v2055
        %v2061 = vld [vmem:[%s1837] sm:$0xff]
        %v2062 = vld [vmem:[%s1837 + $0x8] sm:$0xff]
        %v2064 = vsel %vm450, %v2061, 0
        %v2067 = vsel %vm450, %v2062, 0
        %v2070 = vsel %vm450, %v1880, 0
        %v2073 = vsel %vm450, %v1881, 0
        %2075 = vmatprep.subr.bf16.mxu0 0
        %2076 = vmatpush1.bf16.xpose.msra.mxu0 %v2070
        %2077 = vmatprep.subr.bf16.mxu0 0
        %2078 = vmatpush1.bf16.xpose.msra.mxu0 %v2073
        %2079 = vmatprep.subr.bf16.mxu0 0
        %2080 = vmatpush1.bf16.xpose.msra.mxu0 0
        %2081 = vmatprep.subr.bf16.mxu0 0
        %2082 = vmatpush1.bf16.xpose.msra.mxu0 0
        %2083 = vmatprep.subr.bf16.mxu0 0
        %2084 = vmatpush1.bf16.xpose.msra.mxu0 0
        %2085 = vmatprep.subr.bf16.mxu0 0
        %2086 = vmatpush1.bf16.xpose.msra.mxu0 0
        %2087 = vmatprep.subr.bf16.mxu0 0
        %2088 = vmatpush1.bf16.xpose.msra.mxu0 0
        %2089 = vmatprep.subr.bf16.mxu0 0
        %2090 = vmatpush1.bf16.xpose.msra.mxu0 0
        %2091 = vmatprep.subr.bf16.mxu0 0
        %2092 = vmatpush1.bf16.xpose.msra.mxu0 0
        %2093 = vmatprep.subr.bf16.mxu0 0
        %2094 = vmatpush1.bf16.xpose.msra.mxu0 0
        %2095 = vmatprep.subr.bf16.mxu0 0
        %2096 = vmatpush1.bf16.xpose.msra.mxu0 0
        %2097 = vmatprep.subr.bf16.mxu0 0
        %2098 = vmatpush1.bf16.xpose.msra.mxu0 0
        %2099 = vmatprep.subr.bf16.mxu0 0
        %2100 = vmatpush1.bf16.xpose.msra.mxu0 0
        %2101 = vmatprep.subr.bf16.mxu0 0
        %2102 = vmatpush1.bf16.xpose.msra.mxu0 0
        %2103 = vmatprep.subr.bf16.mxu0 0
        %2104 = vmatpush1.bf16.xpose.msra.mxu0 0
        %2105 = vmatprep.subr.bf16.mxu0 0
        %2106 = vmatpush1.bf16.xpose.msra.mxu0 0
        %2107 = vmatprep.mubr.bf16.mxu0 0
        %2108 = vmatmul.mubr.bf16.gmra.mrb[0].mxu0 %v2064
        %v2109 = vpop.f32.mrb[0].mxu0
        %v2110 = vadd.f32 0.0, %v2109
        %v2111 = vpop.f32.mrb[0].mxu0
        %v2112 = vpop.f32.mrb[0].mxu0
        %v2113 = vadd.f32 0.0, %v2112
        %v2114 = vpop.f32.mrb[0].mxu0
        %2115 = vmatprep.mubr.bf16.mxu0 0
        %2116 = vmatmul.mubr.bf16.gmra.mrb[0].mxu0 %v2067
        %v2117 = vpop.f32.mrb[0].mxu0
        %v2118 = vadd.f32 0.0, %v2117
        %v2119 = vpop.f32.mrb[0].mxu0
        %v2120 = vpop.f32.mrb[0].mxu0
        %v2121 = vadd.f32 0.0, %v2120
        %v2122 = vpop.f32.mrb[0].mxu0
        %2123 = vdwg.mxu0
        %v2124 = vmul.f32 %v2110, 0.17677669
        %v2125 = vmul.f32 %v2113, 0.17677669
        %v2126 = vmul.f32 %v2118, 0.17677669
        %v2127 = vmul.f32 %v2121, 0.17677669
        %v2128 = vsel %vm344, %v2124, -inf
        %2129 = vmax.xlane.f32.xlu0 %v2128
        %v2130 = vpop.xlane.xlu0 %2129
        %v2131 = vsel %vm344, %v2125, -inf
        %2132 = vmax.xlane.f32.xlu0 %v2131
        %v2133 = vpop.xlane.xlu0 %2132
        %v2134 = vsel %vm344, %v2126, -inf
        %2135 = vmax.xlane.f32.xlu0 %v2134
        %v2136 = vpop.xlane.xlu0 %2135
        %v2137 = vsel %vm344, %v2127, -inf
        %2138 = vmax.xlane.f32.xlu0 %v2137
        %v2139 = vpop.xlane.xlu0 %2138
        %v2140 = vsub.f32 %v2124, %v2130
        %v2141 = vsub.f32 %v2125, %v2133
        %v2142 = vsub.f32 %v2126, %v2136
        %v2143 = vsub.f32 %v2127, %v2139
        %v2144 = vmul.f32 %v2140, 1.442695
        %v2145 = vpow.pop %v2144
        %v2146 = vmul.f32 %v2141, 1.442695
        %v2147 = vpow.pop %v2146
        %v2148 = vmul.f32 %v2142, 1.442695
        %v2149 = vpow.pop %v2148
        %v2150 = vmul.f32 %v2143, 1.442695
        %v2151 = vpow.pop %v2150
        %v2152 = vsel %vm344, %v2145, 0.0
        %2153 = vadd.xlane.f32.xlu0 %v2152
        %v2154 = vpop.xlane.xlu0 %2153
        %v2155 = vsel %vm344, %v2147, 0.0
        %2156 = vadd.xlane.f32.xlu0 %v2155
        %v2157 = vpop.xlane.xlu0 %2156
        %v2158 = vsel %vm344, %v2149, 0.0
        %2159 = vadd.xlane.f32.xlu0 %v2158
        %v2160 = vpop.xlane.xlu0 %2159
        %v2161 = vsel %vm344, %v2151, 0.0
        %2162 = vadd.xlane.f32.xlu0 %v2161
        %v2163 = vpop.xlane.xlu0 %2162
        %v2164 = vrcp.pop %v2154
        %v2165 = vrcp.pop %v2157
        %v2166 = vrcp.pop %v2160
        %v2167 = vrcp.pop %v2163
        %v2168 = vmul.f32 %v2145, %v2164
        %v2169 = vmul.f32 %v2147, %v2165
        %v2170 = vmul.f32 %v2149, %v2166
        %v2171 = vmul.f32 %v2151, %v2167
        %v2172 = vpack.c.bf16 %v2169, %v2168
        %v2173 = vpack.c.bf16 %v2171, %v2170
        %v2175 = vsel %vm344, %v2172, 0
        %v2178 = vsel %vm344, %v2173, 0
        %2180 = vmatprep.subr.bf16.mxu0 0
        %2181 = vmatpush1.bf16.msra.mxu0 %v1882
        %2182 = vmatprep.subr.bf16.mxu0 0
        %2183 = vmatpush1.bf16.msra.mxu0 %v1883
        %2184 = vmatprep.subr.bf16.mxu0 0
        %2185 = vmatpush1.bf16.msra.mxu0 0
        %2186 = vmatprep.subr.bf16.mxu0 0
        %2187 = vmatpush1.bf16.msra.mxu0 0
        %2188 = vmatprep.subr.bf16.mxu0 0
        %2189 = vmatpush1.bf16.msra.mxu0 0
        %2190 = vmatprep.subr.bf16.mxu0 0
        %2191 = vmatpush1.bf16.msra.mxu0 0
        %2192 = vmatprep.subr.bf16.mxu0 0
        %2193 = vmatpush1.bf16.msra.mxu0 0
        %2194 = vmatprep.subr.bf16.mxu0 0
        %2195 = vmatpush1.bf16.msra.mxu0 0
        %2196 = vmatprep.subr.bf16.mxu0 0
        %2197 = vmatpush1.bf16.msra.mxu0 0
        %2198 = vmatprep.subr.bf16.mxu0 0
        %2199 = vmatpush1.bf16.msra.mxu0 0
        %2200 = vmatprep.subr.bf16.mxu0 0
        %2201 = vmatpush1.bf16.msra.mxu0 0
        %2202 = vmatprep.subr.bf16.mxu0 0
        %2203 = vmatpush1.bf16.msra.mxu0 0
        %2204 = vmatprep.subr.bf16.mxu0 0
        %2205 = vmatpush1.bf16.msra.mxu0 0
        %2206 = vmatprep.subr.bf16.mxu0 0
        %2207 = vmatpush1.bf16.msra.mxu0 0
        %2208 = vmatprep.subr.bf16.mxu0 0
        %2209 = vmatpush1.bf16.msra.mxu0 0
        %2210 = vmatprep.subr.bf16.mxu0 0
        %2211 = vmatpush1.bf16.msra.mxu0 0
        %2212 = vmatprep.mubr.bf16.mxu0 0
        %2213 = vmatmul.mubr.bf16.gmra.mrb[0].mxu0 %v2175
        %v2214 = vpop.f32.mrb[0].mxu0
        %v2215 = vadd.f32 0.0, %v2214
        %v2216 = vpop.f32.mrb[0].mxu0
        %v2217 = vpop.f32.mrb[0].mxu0
        %v2218 = vadd.f32 0.0, %v2217
        %v2219 = vpop.f32.mrb[0].mxu0
        %2220 = vmatprep.mubr.bf16.mxu0 0
        %2221 = vmatmul.mubr.bf16.gmra.mrb[0].mxu0 %v2178
        %v2222 = vpop.f32.mrb[0].mxu0
        %v2223 = vadd.f32 0.0, %v2222
        %v2224 = vpop.f32.mrb[0].mxu0
        %v2225 = vpop.f32.mrb[0].mxu0
        %v2226 = vadd.f32 0.0, %v2225
        %v2227 = vpop.f32.mrb[0].mxu0
        %2228 = vdwg.mxu0
        %v2230 = vsel %vm450, %v1882, 0
        %v2233 = vsel %vm450, %v1883, 0
        %v2236 = vsel %vm450, %v2057, 0
        %v2239 = vsel %vm450, %v2058, 0
        %v2242 = vsel %vm450, %v2059, 0
        %v2245 = vsel %vm450, %v2060, 0
        %2247 = vmatprep.subr.bf16.mxu0 0
        %2248 = vmatpush1.bf16.xpose.msra.mxu0 %v2236
        %2249 = vmatprep.subr.bf16.mxu0 0
        %2250 = vmatpush1.bf16.xpose.msra.mxu0 %v2239
        %2251 = vmatprep.subr.bf16.mxu0 0
        %2252 = vmatpush1.bf16.xpose.msra.mxu0 %v2242
        %2253 = vmatprep.subr.bf16.mxu0 0
        %2254 = vmatpush1.bf16.xpose.msra.mxu0 %v2245
        %2255 = vmatprep.subr.bf16.mxu0 0
        %2256 = vmatpush1.bf16.xpose.msra.mxu0 0
        %2257 = vmatprep.subr.bf16.mxu0 0
        %2258 = vmatpush1.bf16.xpose.msra.mxu0 0
        %2259 = vmatprep.subr.bf16.mxu0 0
        %2260 = vmatpush1.bf16.xpose.msra.mxu0 0
        %2261 = vmatprep.subr.bf16.mxu0 0
        %2262 = vmatpush1.bf16.xpose.msra.mxu0 0
        %2263 = vmatprep.subr.bf16.mxu0 0
        %2264 = vmatpush1.bf16.xpose.msra.mxu0 0
        %2265 = vmatprep.subr.bf16.mxu0 0
        %2266 = vmatpush1.bf16.xpose.msra.mxu0 0
        %2267 = vmatprep.subr.bf16.mxu0 0
        %2268 = vmatpush1.bf16.xpose.msra.mxu0 0
        %2269 = vmatprep.subr.bf16.mxu0 0
        %2270 = vmatpush1.bf16.xpose.msra.mxu0 0
        %2271 = vmatprep.subr.bf16.mxu0 0
        %2272 = vmatpush1.bf16.xpose.msra.mxu0 0
        %2273 = vmatprep.subr.bf16.mxu0 0
        %2274 = vmatpush1.bf16.xpose.msra.mxu0 0
        %2275 = vmatprep.subr.bf16.mxu0 0
        %2276 = vmatpush1.bf16.xpose.msra.mxu0 0
        %2277 = vmatprep.subr.bf16.mxu0 0
        %2278 = vmatpush1.bf16.xpose.msra.mxu0 0
        %2279 = vmatprep.mubr.bf16.mxu0 0
        %2280 = vmatmul.mubr.bf16.gmra.mrb[0].mxu0 %v2230
        %v2281 = vpop.f32.mrb[0].mxu0
        %v2282 = vadd.f32 %v2215, %v2281
        %v2283 = vpop.f32.mrb[0].mxu0
        %v2284 = vpop.f32.mrb[0].mxu0
        %v2285 = vadd.f32 %v2218, %v2284
        %v2286 = vpop.f32.mrb[0].mxu0
        %2287 = vmatprep.mubr.bf16.mxu0 0
        %2288 = vmatmul.mubr.bf16.gmra.mrb[0].mxu0 %v2233
        %v2289 = vpop.f32.mrb[0].mxu0
        %v2290 = vadd.f32 %v2223, %v2289
        %v2291 = vpop.f32.mrb[0].mxu0
        %v2292 = vpop.f32.mrb[0].mxu0
        %v2293 = vadd.f32 %v2226, %v2292
        %v2294 = vpop.f32.mrb[0].mxu0
        %2295 = vdwg.mxu0
        %v2296 = vpack.c.bf16 %v2285, %v2282
        %v2297 = vpack.c.bf16 %v2293, %v2290
        %2298 = vst.msk [vmem:[#allocation3 + $0x8] sm:$0xff] %vm450, %v2296
        %2299 = vst.msk [vmem:[#allocation3 + $0x18] sm:$0xff] %vm450, %v2297
        %s2300 = scalar_lea.vmem %s222, 96
        %v2301 = vld [vmem:[%s2300] sm:$0xff]
        %v2302 = vld [vmem:[%s2300 + $0x8] sm:$0xff]
        %v2303 = vld [vmem:[%s2300 + $0x10] sm:$0xff]
        %v2304 = vld [vmem:[%s2300 + $0x18] sm:$0xff]
        %v2305 = vpack.c.bf16 %v2302, %v2301
        %v2306 = vpack.c.bf16 %v2304, %v2303
        %v2307 = vld [vmem:[%s1] sm:$0xf]
        %v2308 = vld [vmem:[%s1 + $0x4] sm:$0xf]
        %v2309 = vld [vmem:[%s1 + $0x8] sm:$0xf]
        %v2310 = vld [vmem:[%s1 + $0xc] sm:$0xf]
        %v2311 = vld [vmem:[%s1 + $0x10] sm:$0xf]
        %v2312 = vld [vmem:[%s1 + $0x14] sm:$0xf]
        %v2313 = vld [vmem:[%s1 + $0x18] sm:$0xf]
        %v2314 = vld [vmem:[%s1 + $0x1c] sm:$0xf]
        %v2315 = vld [vmem:[%s1 + $0x20] sm:$0xf]
        %v2316 = vld [vmem:[%s1 + $0x24] sm:$0xf]
        %v2317 = vld [vmem:[%s1 + $0x28] sm:$0xf]
        %v2318 = vld [vmem:[%s1 + $0x2c] sm:$0xf]
        %v2319 = vld [vmem:[%s2] sm:$0xff]
        %v2320 = vld [vmem:[%s2 + $0x8] sm:$0xff]
        %v2321 = vld [vmem:[%s2 + $0x10] sm:$0xff]
        %v2322 = vld [vmem:[%s2 + $0x18] sm:$0xff]
        %v2323 = vld [vmem:[%s2 + $0x20] sm:$0xff]
        %v2324 = vld [vmem:[%s2 + $0x28] sm:$0xff]
        %v2325 = vld [vmem:[%s2 + $0x30] sm:$0xff]
        %v2326 = vld [vmem:[%s2 + $0x38] sm:$0xff]
        %v2327 = vld [vmem:[%s2 + $0x40] sm:$0xff]
        %v2328 = vld [vmem:[%s2 + $0x48] sm:$0xff]
        %v2329 = vld [vmem:[%s2 + $0x50] sm:$0xff]
        %v2330 = vld [vmem:[%s2 + $0x58] sm:$0xff]
        %2332 = vset.pattern.permute.xlu0 0
        %2333 = vperm.xlu0 %2332, %v2319
        %v2334 = vpop.permute.xlu0 %2333
        %2337 = vset.pattern.permute.xlu0 0
        %2338 = vperm.xlu0 %2337, %v2320
        %v2339 = vpop.permute.xlu0 %2338
        %2342 = vset.pattern.permute.xlu0 0
        %2343 = vperm.xlu0 %2342, %v2321
        %v2344 = vpop.permute.xlu0 %2343
        %2347 = vset.pattern.permute.xlu0 0
        %2348 = vperm.xlu0 %2347, %v2322
        %v2349 = vpop.permute.xlu0 %2348
        %2352 = vset.pattern.permute.xlu0 0
        %2353 = vperm.xlu0 %2352, %v2323
        %v2354 = vpop.permute.xlu0 %2353
        %2357 = vset.pattern.permute.xlu0 0
        %2358 = vperm.xlu0 %2357, %v2324
        %v2359 = vpop.permute.xlu0 %2358
        %2362 = vset.pattern.permute.xlu0 0
        %2363 = vperm.xlu0 %2362, %v2325
        %v2364 = vpop.permute.xlu0 %2363
        %2367 = vset.pattern.permute.xlu0 0
        %2368 = vperm.xlu0 %2367, %v2326
        %v2369 = vpop.permute.xlu0 %2368
        %2372 = vset.pattern.permute.xlu0 0
        %2373 = vperm.xlu0 %2372, %v2327
        %v2374 = vpop.permute.xlu0 %2373
        %2377 = vset.pattern.permute.xlu0 0
        %2378 = vperm.xlu0 %2377, %v2328
        %v2379 = vpop.permute.xlu0 %2378
        %2382 = vset.pattern.permute.xlu0 0
        %2383 = vperm.xlu0 %2382, %v2329
        %v2384 = vpop.permute.xlu0 %2383
        %2387 = vset.pattern.permute.xlu0 0
        %2388 = vperm.xlu0 %2387, %v2330
        %v2389 = vpop.permute.xlu0 %2388
        %v2403 = vunpack.c.l.b16 %v2307
        %v2404 = vunpack.c.l.b16 %v2308
        %v2405 = vunpack.c.l.b16 %v2309
        %v2406 = vunpack.c.l.b16 %v2310
        %v2407 = vunpack.c.l.b16 %v2311
        %v2408 = vunpack.c.l.b16 %v2312
        %v2409 = vunpack.c.l.b16 %v2313
        %v2410 = vunpack.c.l.b16 %v2314
        %v2411 = vunpack.c.l.b16 %v2315
        %v2412 = vunpack.c.l.b16 %v2316
        %v2413 = vunpack.c.l.b16 %v2317
        %v2414 = vunpack.c.l.b16 %v2318
        %v2415 = vpack.c.b16 %v2404, %v2403
        %v2416 = vpack.c.b16 %v2406, %v2405
        %v2417 = vpack.c.b16 %v2408, %v2407
        %v2418 = vpack.c.b16 %v2410, %v2409
        %v2419 = vpack.c.b16 %v2412, %v2411
        %v2420 = vpack.c.b16 %v2414, %v2413
        %v2422 = vsel %vm344, %v2415, 0
        %v2425 = vsel %vm344, %v2416, 0
        %v2428 = vsel %vm344, %v2417, 0
        %v2431 = vsel %vm344, %v2418, 0
        %v2434 = vsel %vm344, %v2419, 0
        %v2437 = vsel %vm344, %v2420, 0
        %2439 = vmatprep.subr.bf16.mxu0 0
        %2440 = vmatpush1.bf16.msra.mxu0 %v2305
        %2441 = vmatprep.subr.bf16.mxu0 0
        %2442 = vmatpush1.bf16.msra.mxu0 %v2306
        %2443 = vmatprep.subr.bf16.mxu0 0
        %2444 = vmatpush1.bf16.msra.mxu0 0
        %2445 = vmatprep.subr.bf16.mxu0 0
        %2446 = vmatpush1.bf16.msra.mxu0 0
        %2447 = vmatprep.subr.bf16.mxu0 0
        %2448 = vmatpush1.bf16.msra.mxu0 0
        %2449 = vmatprep.subr.bf16.mxu0 0
        %2450 = vmatpush1.bf16.msra.mxu0 0
        %2451 = vmatprep.subr.bf16.mxu0 0
        %2452 = vmatpush1.bf16.msra.mxu0 0
        %2453 = vmatprep.subr.bf16.mxu0 0
        %2454 = vmatpush1.bf16.msra.mxu0 0
        %2455 = vmatprep.subr.bf16.mxu0 0
        %2456 = vmatpush1.bf16.msra.mxu0 0
        %2457 = vmatprep.subr.bf16.mxu0 0
        %2458 = vmatpush1.bf16.msra.mxu0 0
        %2459 = vmatprep.subr.bf16.mxu0 0
        %2460 = vmatpush1.bf16.msra.mxu0 0
        %2461 = vmatprep.subr.bf16.mxu0 0
        %2462 = vmatpush1.bf16.msra.mxu0 0
        %2463 = vmatprep.subr.bf16.mxu0 0
        %2464 = vmatpush1.bf16.msra.mxu0 0
        %2465 = vmatprep.subr.bf16.mxu0 0
        %2466 = vmatpush1.bf16.msra.mxu0 0
        %2467 = vmatprep.subr.bf16.mxu0 0
        %2468 = vmatpush1.bf16.msra.mxu0 0
        %2469 = vmatprep.subr.bf16.mxu0 0
        %2470 = vmatpush1.bf16.msra.mxu0 0
        %2471 = vmatprep.mubr.bf16.mxu0 0
        %2472 = vmatmul.mubr.bf16.gmra.mrb[0].mxu0 %v2422
        %v2473 = vpop.f32.mrb[0].mxu0
        %v2474 = vadd.f32 %v2334, %v2473
        %v2475 = vpop.f32.mrb[0].mxu0
        %v2476 = vpop.f32.mrb[0].mxu0
        %v2477 = vadd.f32 %v2339, %v2476
        %v2478 = vpop.f32.mrb[0].mxu0
        %2479 = vmatprep.mubr.bf16.mxu0 0
        %2480 = vmatmul.mubr.bf16.gmra.mrb[0].mxu0 %v2425
        %v2481 = vpop.f32.mrb[0].mxu0
        %v2482 = vadd.f32 %v2344, %v2481
        %v2483 = vpop.f32.mrb[0].mxu0
        %v2484 = vpop.f32.mrb[0].mxu0
        %v2485 = vadd.f32 %v2349, %v2484
        %v2486 = vpop.f32.mrb[0].mxu0
        %2487 = vmatprep.mubr.bf16.mxu0 0
        %2488 = vmatmul.mubr.bf16.gmra.mrb[0].mxu0 %v2428
        %v2489 = vpop.f32.mrb[0].mxu0
        %v2490 = vadd.f32 %v2354, %v2489
        %v2491 = vpop.f32.mrb[0].mxu0
        %v2492 = vpop.f32.mrb[0].mxu0
        %v2493 = vadd.f32 %v2359, %v2492
        %v2494 = vpop.f32.mrb[0].mxu0
        %2495 = vmatprep.mubr.bf16.mxu0 0
        %2496 = vmatmul.mubr.bf16.gmra.mrb[0].mxu0 %v2431
        %v2497 = vpop.f32.mrb[0].mxu0
        %v2498 = vadd.f32 %v2364, %v2497
        %v2499 = vpop.f32.mrb[0].mxu0
        %v2500 = vpop.f32.mrb[0].mxu0
        %v2501 = vadd.f32 %v2369, %v2500
        %v2502 = vpop.f32.mrb[0].mxu0
        %2503 = vmatprep.mubr.bf16.mxu0 0
        %2504 = vmatmul.mubr.bf16.gmra.mrb[0].mxu0 %v2434
        %v2505 = vpop.f32.mrb[0].mxu0
        %v2506 = vadd.f32 %v2374, %v2505
        %v2507 = vpop.f32.mrb[0].mxu0
        %v2508 = vpop.f32.mrb[0].mxu0
        %v2509 = vadd.f32 %v2379, %v2508
        %v2510 = vpop.f32.mrb[0].mxu0
        %2511 = vmatprep.mubr.bf16.mxu0 0
        %2512 = vmatmul.mubr.bf16.gmra.mrb[0].mxu0 %v2437
        %v2513 = vpop.f32.mrb[0].mxu0
        %v2514 = vadd.f32 %v2384, %v2513
        %v2515 = vpop.f32.mrb[0].mxu0
        %v2516 = vpop.f32.mrb[0].mxu0
        %v2517 = vadd.f32 %v2389, %v2516
        %v2518 = vpop.f32.mrb[0].mxu0
        %2519 = vdwg.mxu0
        %v2520 = vpack.c.bf16 %v2477, %v2474
        %v2521 = vpack.c.bf16 %v2485, %v2482
        %v2522 = vpack.c.bf16 %v2493, %v2490
        %v2523 = vpack.c.bf16 %v2501, %v2498
        %v2524 = vpack.c.bf16 %v2509, %v2506
        %v2525 = vpack.c.bf16 %v2517, %v2514
        %s2526 = scalar_lea.vmem [#allocation2], 144
        %2527 = vst.msk [vmem:[%s2526] sm:$0xff] %vm450, %v2520
        %2528 = vst.msk [vmem:[%s2526 + $0x8] sm:$0xff] %vm450, %v2521
        %2529 = vst.msk [vmem:[%s2526 + $0x10] sm:$0xff] %vm450, %v2522
        %2530 = vst.msk [vmem:[%s2526 + $0x18] sm:$0xff] %vm450, %v2523
        %2531 = vst.msk [vmem:[%s2526 + $0x20] sm:$0xff] %vm450, %v2524
        %2532 = vst.msk [vmem:[%s2526 + $0x28] sm:$0xff] %vm450, %v2525
        %2533 = vxpose.xlu0.b32.start [1/16] %v2474, 128
        %2534 = vxpose.xlu0.b32.cont [2/16] %v2477, 128
        %2535 = vxpose.xlu0.b32.cont [3/16] %v2482, 128
        %2536 = vxpose.xlu0.b32.cont [4/16] %v2485, 128
        %2537 = vxpose.xlu0.b32.cont [5/16] 0.0, 128
        %2538 = vxpose.xlu0.b32.cont [6/16] 0.0, 128
        %2539 = vxpose.xlu0.b32.cont [7/16] 0.0, 128
        %2540 = vxpose.xlu0.b32.cont [8/16] 0.0, 128
        %2541 = vxpose.xlu0.b32.cont [9/16] 0.0, 128
        %2542 = vxpose.xlu0.b32.cont [10/16] 0.0, 128
        %2543 = vxpose.xlu0.b32.cont [11/16] 0.0, 128
        %2544 = vxpose.xlu0.b32.cont [12/16] 0.0, 128
        %2545 = vxpose.xlu0.b32.cont [13/16] 0.0, 128
        %2546 = vxpose.xlu0.b32.cont [14/16] 0.0, 128
        %2547 = vxpose.xlu0.b32.cont [15/16] 0.0, 128
        %2548 = vxpose.xlu0.b32.end [16/16] 0.0, 128
        %v2549 = vpop.trf.xlu0
        %v2550 = vpop.trf.xlu0
        %v2551 = vpop.trf.xlu0
        %v2552 = vpop.trf.xlu0
        %v2553 = vpop.trf.xlu0
        %v2554 = vpop.trf.xlu0
        %v2555 = vpop.trf.xlu0
        %v2556 = vpop.trf.xlu0
        %v2557 = vpop.trf.xlu0
        %v2558 = vpop.trf.xlu0
        %v2559 = vpop.trf.xlu0
        %v2560 = vpop.trf.xlu0
        %v2561 = vpop.trf.xlu0
        %v2562 = vpop.trf.xlu0
        %v2563 = vpop.trf.xlu0
        %v2564 = vpop.trf.xlu0
        %v2565 = vpack.c.bf16 %v2550, %v2549
        %v2566 = vpack.c.bf16 %v2552, %v2551
        %v2567 = vpack.c.bf16 %v2554, %v2553
        %v2568 = vpack.c.bf16 %v2556, %v2555
        %v2569 = vld [vmem:[%s2526 + $0x10] sm:$0xff]
        %v2570 = vld [vmem:[%s2526 + $0x18] sm:$0xff]
        %v2571 = vld [vmem:[%s2526 + $0x20] sm:$0xff]
        %v2572 = vld [vmem:[%s2526 + $0x28] sm:$0xff]
        %v2574 = vsel %vm344, %v2565, 0
        %v2577 = vsel %vm344, %v2566, 0
        %v2580 = vsel %vm344, %v2567, 0
        %v2583 = vsel %vm344, %v2568, 0
        %2585 = vmatprep.subr.bf16.mxu0 0
        %2586 = vmatpush1.bf16.msra.mxu0 %v2569
        %2587 = vmatprep.subr.bf16.mxu0 0
        %2588 = vmatpush1.bf16.msra.mxu0 %v2570
        %2589 = vmatprep.subr.bf16.mxu0 0
        %2590 = vmatpush1.bf16.msra.mxu0 0
        %2591 = vmatprep.subr.bf16.mxu0 0
        %2592 = vmatpush1.bf16.msra.mxu0 0
        %2593 = vmatprep.subr.bf16.mxu0 0
        %2594 = vmatpush1.bf16.msra.mxu0 0
        %2595 = vmatprep.subr.bf16.mxu0 0
        %2596 = vmatpush1.bf16.msra.mxu0 0
        %2597 = vmatprep.subr.bf16.mxu0 0
        %2598 = vmatpush1.bf16.msra.mxu0 0
        %2599 = vmatprep.subr.bf16.mxu0 0
        %2600 = vmatpush1.bf16.msra.mxu0 0
        %2601 = vmatprep.subr.bf16.mxu0 0
        %2602 = vmatpush1.bf16.msra.mxu0 0
        %2603 = vmatprep.subr.bf16.mxu0 0
        %2604 = vmatpush1.bf16.msra.mxu0 0
        %2605 = vmatprep.subr.bf16.mxu0 0
        %2606 = vmatpush1.bf16.msra.mxu0 0
        %2607 = vmatprep.subr.bf16.mxu0 0
        %2608 = vmatpush1.bf16.msra.mxu0 0
        %2609 = vmatprep.subr.bf16.mxu0 0
        %2610 = vmatpush1.bf16.msra.mxu0 0
        %2611 = vmatprep.subr.bf16.mxu0 0
        %2612 = vmatpush1.bf16.msra.mxu0 0
        %2613 = vmatprep.subr.bf16.mxu0 0
        %2614 = vmatpush1.bf16.msra.mxu0 0
        %2615 = vmatprep.subr.bf16.mxu0 0
        %2616 = vmatpush1.bf16.msra.mxu0 0
        %2617 = vmatprep.mubr.bf16.mxu0 0
        %2618 = vmatmul.mubr.bf16.gmra.mrb[0].mxu0 %v2574
        %v2619 = vpop.f32.mrb[0].mxu0
        %v2620 = vadd.f32 0.0, %v2619
        %v2621 = vpop.f32.mrb[0].mxu0
        %v2622 = vpop.f32.mrb[0].mxu0
        %v2623 = vadd.f32 0.0, %v2622
        %v2624 = vpop.f32.mrb[0].mxu0
        %2625 = vmatprep.mubr.bf16.mxu0 0
        %2626 = vmatmul.mubr.bf16.gmra.mrb[0].mxu0 %v2577
        %v2627 = vpop.f32.mrb[0].mxu0
        %v2628 = vadd.f32 0.0, %v2627
        %v2629 = vpop.f32.mrb[0].mxu0
        %v2630 = vpop.f32.mrb[0].mxu0
        %v2631 = vadd.f32 0.0, %v2630
        %v2632 = vpop.f32.mrb[0].mxu0
        %2633 = vmatprep.mubr.bf16.mxu0 0
        %2634 = vmatmul.mubr.bf16.gmra.mrb[0].mxu0 %v2580
        %v2635 = vpop.f32.mrb[0].mxu0
        %v2636 = vadd.f32 0.0, %v2635
        %v2637 = vpop.f32.mrb[0].mxu0
        %v2638 = vpop.f32.mrb[0].mxu0
        %v2639 = vadd.f32 0.0, %v2638
        %v2640 = vpop.f32.mrb[0].mxu0
        %2641 = vmatprep.mubr.bf16.mxu0 0
        %2642 = vmatmul.mubr.bf16.gmra.mrb[0].mxu0 %v2583
        %v2643 = vpop.f32.mrb[0].mxu0
        %v2644 = vadd.f32 0.0, %v2643
        %v2645 = vpop.f32.mrb[0].mxu0
        %v2646 = vpop.f32.mrb[0].mxu0
        %v2647 = vadd.f32 0.0, %v2646
        %v2648 = vpop.f32.mrb[0].mxu0
        %2649 = vdwg.mxu0
        %v2650 = vmul.f32 %v2620, 0.17677669
        %v2651 = vmul.f32 %v2623, 0.17677669
        %v2652 = vmul.f32 %v2628, 0.17677669
        %v2653 = vmul.f32 %v2631, 0.17677669
        %v2654 = vmul.f32 %v2636, 0.17677669
        %v2655 = vmul.f32 %v2639, 0.17677669
        %v2656 = vmul.f32 %v2644, 0.17677669
        %v2657 = vmul.f32 %v2647, 0.17677669
        %v2658 = vsel %vm450, %v2650, -inf
        %2659 = vmax.xlane.f32.xlu0 %v2658
        %v2660 = vpop.xlane.xlu0 %2659
        %v2661 = vsel %vm450, %v2651, -inf
        %2662 = vmax.xlane.f32.xlu0 %v2661
        %v2663 = vpop.xlane.xlu0 %2662
        %v2664 = vsel %vm450, %v2652, -inf
        %2665 = vmax.xlane.f32.xlu0 %v2664
        %v2666 = vpop.xlane.xlu0 %2665
        %v2667 = vsel %vm450, %v2653, -inf
        %2668 = vmax.xlane.f32.xlu0 %v2667
        %v2669 = vpop.xlane.xlu0 %2668
        %v2670 = vsel %vm450, %v2654, -inf
        %2671 = vmax.xlane.f32.xlu0 %v2670
        %v2672 = vpop.xlane.xlu0 %2671
        %v2673 = vsel %vm450, %v2655, -inf
        %2674 = vmax.xlane.f32.xlu0 %v2673
        %v2675 = vpop.xlane.xlu0 %2674
        %v2676 = vsel %vm450, %v2656, -inf
        %2677 = vmax.xlane.f32.xlu0 %v2676
        %v2678 = vpop.xlane.xlu0 %2677
        %v2679 = vsel %vm450, %v2657, -inf
        %2680 = vmax.xlane.f32.xlu0 %v2679
        %v2681 = vpop.xlane.xlu0 %2680
        %v2682 = vsub.f32 %v2650, %v2660
        %v2683 = vsub.f32 %v2651, %v2663
        %v2684 = vsub.f32 %v2652, %v2666
        %v2685 = vsub.f32 %v2653, %v2669
        %v2686 = vsub.f32 %v2654, %v2672
        %v2687 = vsub.f32 %v2655, %v2675
        %v2688 = vsub.f32 %v2656, %v2678
        %v2689 = vsub.f32 %v2657, %v2681
        %v2690 = vmul.f32 %v2682, 1.442695
        %v2691 = vpow.pop %v2690
        %v2692 = vmul.f32 %v2683, 1.442695
        %v2693 = vpow.pop %v2692
        %v2694 = vmul.f32 %v2684, 1.442695
        %v2695 = vpow.pop %v2694
        %v2696 = vmul.f32 %v2685, 1.442695
        %v2697 = vpow.pop %v2696
        %v2698 = vmul.f32 %v2686, 1.442695
        %v2699 = vpow.pop %v2698
        %v2700 = vmul.f32 %v2687, 1.442695
        %v2701 = vpow.pop %v2700
        %v2702 = vmul.f32 %v2688, 1.442695
        %v2703 = vpow.pop %v2702
        %v2704 = vmul.f32 %v2689, 1.442695
        %v2705 = vpow.pop %v2704
        %v2706 = vsel %vm450, %v2691, 0.0
        %2707 = vadd.xlane.f32.xlu0 %v2706
        %v2708 = vpop.xlane.xlu0 %2707
        %v2709 = vsel %vm450, %v2693, 0.0
        %2710 = vadd.xlane.f32.xlu0 %v2709
        %v2711 = vpop.xlane.xlu0 %2710
        %v2712 = vsel %vm450, %v2695, 0.0
        %2713 = vadd.xlane.f32.xlu0 %v2712
        %v2714 = vpop.xlane.xlu0 %2713
        %v2715 = vsel %vm450, %v2697, 0.0
        %2716 = vadd.xlane.f32.xlu0 %v2715
        %v2717 = vpop.xlane.xlu0 %2716
        %v2718 = vsel %vm450, %v2699, 0.0
        %2719 = vadd.xlane.f32.xlu0 %v2718
        %v2720 = vpop.xlane.xlu0 %2719
        %v2721 = vsel %vm450, %v2701, 0.0
        %2722 = vadd.xlane.f32.xlu0 %v2721
        %v2723 = vpop.xlane.xlu0 %2722
        %v2724 = vsel %vm450, %v2703, 0.0
        %2725 = vadd.xlane.f32.xlu0 %v2724
        %v2726 = vpop.xlane.xlu0 %2725
        %v2727 = vsel %vm450, %v2705, 0.0
        %2728 = vadd.xlane.f32.xlu0 %v2727
        %v2729 = vpop.xlane.xlu0 %2728
        %v2730 = vrcp.pop %v2708
        %v2731 = vrcp.pop %v2711
        %v2732 = vrcp.pop %v2714
        %v2733 = vrcp.pop %v2717
        %v2734 = vrcp.pop %v2720
        %v2735 = vrcp.pop %v2723
        %v2736 = vrcp.pop %v2726
        %v2737 = vrcp.pop %v2729
        %v2738 = vmul.f32 %v2691, %v2730
        %v2739 = vmul.f32 %v2693, %v2731
        %v2740 = vmul.f32 %v2695, %v2732
        %v2741 = vmul.f32 %v2697, %v2733
        %v2742 = vmul.f32 %v2699, %v2734
        %v2743 = vmul.f32 %v2701, %v2735
        %v2744 = vmul.f32 %v2703, %v2736
        %v2745 = vmul.f32 %v2705, %v2737
        %v2746 = vpack.c.bf16 %v2739, %v2738
        %v2747 = vpack.c.bf16 %v2741, %v2740
        %v2748 = vpack.c.bf16 %v2743, %v2742
        %v2749 = vpack.c.bf16 %v2745, %v2744
        %v2750 = vld [vmem:[%s2526] sm:$0xff]
        %v2751 = vld [vmem:[%s2526 + $0x8] sm:$0xff]
        %v2753 = vsel %vm450, %v2750, 0
        %v2756 = vsel %vm450, %v2751, 0
        %v2759 = vsel %vm450, %v2569, 0
        %v2762 = vsel %vm450, %v2570, 0
        %2764 = vmatprep.subr.bf16.mxu0 0
        %2765 = vmatpush1.bf16.xpose.msra.mxu0 %v2759
        %2766 = vmatprep.subr.bf16.mxu0 0
        %2767 = vmatpush1.bf16.xpose.msra.mxu0 %v2762
        %2768 = vmatprep.subr.bf16.mxu0 0
        %2769 = vmatpush1.bf16.xpose.msra.mxu0 0
        %2770 = vmatprep.subr.bf16.mxu0 0
        %2771 = vmatpush1.bf16.xpose.msra.mxu0 0
        %2772 = vmatprep.subr.bf16.mxu0 0
        %2773 = vmatpush1.bf16.xpose.msra.mxu0 0
        %2774 = vmatprep.subr.bf16.mxu0 0
        %2775 = vmatpush1.bf16.xpose.msra.mxu0 0
        %2776 = vmatprep.subr.bf16.mxu0 0
        %2777 = vmatpush1.bf16.xpose.msra.mxu0 0
        %2778 = vmatprep.subr.bf16.mxu0 0
        %2779 = vmatpush1.bf16.xpose.msra.mxu0 0
        %2780 = vmatprep.subr.bf16.mxu0 0
        %2781 = vmatpush1.bf16.xpose.msra.mxu0 0
        %2782 = vmatprep.subr.bf16.mxu0 0
        %2783 = vmatpush1.bf16.xpose.msra.mxu0 0
        %2784 = vmatprep.subr.bf16.mxu0 0
        %2785 = vmatpush1.bf16.xpose.msra.mxu0 0
        %2786 = vmatprep.subr.bf16.mxu0 0
        %2787 = vmatpush1.bf16.xpose.msra.mxu0 0
        %2788 = vmatprep.subr.bf16.mxu0 0
        %2789 = vmatpush1.bf16.xpose.msra.mxu0 0
        %2790 = vmatprep.subr.bf16.mxu0 0
        %2791 = vmatpush1.bf16.xpose.msra.mxu0 0
        %2792 = vmatprep.subr.bf16.mxu0 0
        %2793 = vmatpush1.bf16.xpose.msra.mxu0 0
        %2794 = vmatprep.subr.bf16.mxu0 0
        %2795 = vmatpush1.bf16.xpose.msra.mxu0 0
        %2796 = vmatprep.mubr.bf16.mxu0 0
        %2797 = vmatmul.mubr.bf16.gmra.mrb[0].mxu0 %v2753
        %v2798 = vpop.f32.mrb[0].mxu0
        %v2799 = vadd.f32 0.0, %v2798
        %v2800 = vpop.f32.mrb[0].mxu0
        %v2801 = vpop.f32.mrb[0].mxu0
        %v2802 = vadd.f32 0.0, %v2801
        %v2803 = vpop.f32.mrb[0].mxu0
        %2804 = vmatprep.mubr.bf16.mxu0 0
        %2805 = vmatmul.mubr.bf16.gmra.mrb[0].mxu0 %v2756
        %v2806 = vpop.f32.mrb[0].mxu0
        %v2807 = vadd.f32 0.0, %v2806
        %v2808 = vpop.f32.mrb[0].mxu0
        %v2809 = vpop.f32.mrb[0].mxu0
        %v2810 = vadd.f32 0.0, %v2809
        %v2811 = vpop.f32.mrb[0].mxu0
        %2812 = vdwg.mxu0
        %v2813 = vmul.f32 %v2799, 0.17677669
        %v2814 = vmul.f32 %v2802, 0.17677669
        %v2815 = vmul.f32 %v2807, 0.17677669
        %v2816 = vmul.f32 %v2810, 0.17677669
        %v2817 = vsel %vm344, %v2813, -inf
        %2818 = vmax.xlane.f32.xlu0 %v2817
        %v2819 = vpop.xlane.xlu0 %2818
        %v2820 = vsel %vm344, %v2814, -inf
        %2821 = vmax.xlane.f32.xlu0 %v2820
        %v2822 = vpop.xlane.xlu0 %2821
        %v2823 = vsel %vm344, %v2815, -inf
        %2824 = vmax.xlane.f32.xlu0 %v2823
        %v2825 = vpop.xlane.xlu0 %2824
        %v2826 = vsel %vm344, %v2816, -inf
        %2827 = vmax.xlane.f32.xlu0 %v2826
        %v2828 = vpop.xlane.xlu0 %2827
        %v2829 = vsub.f32 %v2813, %v2819
        %v2830 = vsub.f32 %v2814, %v2822
        %v2831 = vsub.f32 %v2815, %v2825
        %v2832 = vsub.f32 %v2816, %v2828
        %v2833 = vmul.f32 %v2829, 1.442695
        %v2834 = vpow.pop %v2833
        %v2835 = vmul.f32 %v2830, 1.442695
        %v2836 = vpow.pop %v2835
        %v2837 = vmul.f32 %v2831, 1.442695
        %v2838 = vpow.pop %v2837
        %v2839 = vmul.f32 %v2832, 1.442695
        %v2840 = vpow.pop %v2839
        %v2841 = vsel %vm344, %v2834, 0.0
        %2842 = vadd.xlane.f32.xlu0 %v2841
        %v2843 = vpop.xlane.xlu0 %2842
        %v2844 = vsel %vm344, %v2836, 0.0
        %2845 = vadd.xlane.f32.xlu0 %v2844
        %v2846 = vpop.xlane.xlu0 %2845
        %v2847 = vsel %vm344, %v2838, 0.0
        %2848 = vadd.xlane.f32.xlu0 %v2847
        %v2849 = vpop.xlane.xlu0 %2848
        %v2850 = vsel %vm344, %v2840, 0.0
        %2851 = vadd.xlane.f32.xlu0 %v2850
        %v2852 = vpop.xlane.xlu0 %2851
        %v2853 = vrcp.pop %v2843
        %v2854 = vrcp.pop %v2846
        %v2855 = vrcp.pop %v2849
        %v2856 = vrcp.pop %v2852
        %v2857 = vmul.f32 %v2834, %v2853
        %v2858 = vmul.f32 %v2836, %v2854
        %v2859 = vmul.f32 %v2838, %v2855
        %v2860 = vmul.f32 %v2840, %v2856
        %v2861 = vpack.c.bf16 %v2858, %v2857
        %v2862 = vpack.c.bf16 %v2860, %v2859
        %v2864 = vsel %vm344, %v2861, 0
        %v2867 = vsel %vm344, %v2862, 0
        %2869 = vmatprep.subr.bf16.mxu0 0
        %2870 = vmatpush1.bf16.msra.mxu0 %v2571
        %2871 = vmatprep.subr.bf16.mxu0 0
        %2872 = vmatpush1.bf16.msra.mxu0 %v2572
        %2873 = vmatprep.subr.bf16.mxu0 0
        %2874 = vmatpush1.bf16.msra.mxu0 0
        %2875 = vmatprep.subr.bf16.mxu0 0
        %2876 = vmatpush1.bf16.msra.mxu0 0
        %2877 = vmatprep.subr.bf16.mxu0 0
        %2878 = vmatpush1.bf16.msra.mxu0 0
        %2879 = vmatprep.subr.bf16.mxu0 0
        %2880 = vmatpush1.bf16.msra.mxu0 0
        %2881 = vmatprep.subr.bf16.mxu0 0
        %2882 = vmatpush1.bf16.msra.mxu0 0
        %2883 = vmatprep.subr.bf16.mxu0 0
        %2884 = vmatpush1.bf16.msra.mxu0 0
        %2885 = vmatprep.subr.bf16.mxu0 0
        %2886 = vmatpush1.bf16.msra.mxu0 0
        %2887 = vmatprep.subr.bf16.mxu0 0
        %2888 = vmatpush1.bf16.msra.mxu0 0
        %2889 = vmatprep.subr.bf16.mxu0 0
        %2890 = vmatpush1.bf16.msra.mxu0 0
        %2891 = vmatprep.subr.bf16.mxu0 0
        %2892 = vmatpush1.bf16.msra.mxu0 0
        %2893 = vmatprep.subr.bf16.mxu0 0
        %2894 = vmatpush1.bf16.msra.mxu0 0
        %2895 = vmatprep.subr.bf16.mxu0 0
        %2896 = vmatpush1.bf16.msra.mxu0 0
        %2897 = vmatprep.subr.bf16.mxu0 0
        %2898 = vmatpush1.bf16.msra.mxu0 0
        %2899 = vmatprep.subr.bf16.mxu0 0
        %2900 = vmatpush1.bf16.msra.mxu0 0
        %2901 = vmatprep.mubr.bf16.mxu0 0
        %2902 = vmatmul.mubr.bf16.gmra.mrb[0].mxu0 %v2864
        %v2903 = vpop.f32.mrb[0].mxu0
        %v2904 = vadd.f32 0.0, %v2903
        %v2905 = vpop.f32.mrb[0].mxu0
        %v2906 = vpop.f32.mrb[0].mxu0
        %v2907 = vadd.f32 0.0, %v2906
        %v2908 = vpop.f32.mrb[0].mxu0
        %2909 = vmatprep.mubr.bf16.mxu0 0
        %2910 = vmatmul.mubr.bf16.gmra.mrb[0].mxu0 %v2867
        %v2911 = vpop.f32.mrb[0].mxu0
        %v2912 = vadd.f32 0.0, %v2911
        %v2913 = vpop.f32.mrb[0].mxu0
        %v2914 = vpop.f32.mrb[0].mxu0
        %v2915 = vadd.f32 0.0, %v2914
        %v2916 = vpop.f32.mrb[0].mxu0
        %2917 = vdwg.mxu0
        %v2919 = vsel %vm450, %v2571, 0
        %v2922 = vsel %vm450, %v2572, 0
        %v2925 = vsel %vm450, %v2746, 0
        %v2928 = vsel %vm450, %v2747, 0
        %v2931 = vsel %vm450, %v2748, 0
        %v2934 = vsel %vm450, %v2749, 0
        %2936 = vmatprep.subr.bf16.mxu0 0
        %2937 = vmatpush1.bf16.xpose.msra.mxu0 %v2925
        %2938 = vmatprep.subr.bf16.mxu0 0
        %2939 = vmatpush1.bf16.xpose.msra.mxu0 %v2928
        %2940 = vmatprep.subr.bf16.mxu0 0
        %2941 = vmatpush1.bf16.xpose.msra.mxu0 %v2931
        %2942 = vmatprep.subr.bf16.mxu0 0
        %2943 = vmatpush1.bf16.xpose.msra.mxu0 %v2934
        %2944 = vmatprep.subr.bf16.mxu0 0
        %2945 = vmatpush1.bf16.xpose.msra.mxu0 0
        %2946 = vmatprep.subr.bf16.mxu0 0
        %2947 = vmatpush1.bf16.xpose.msra.mxu0 0
        %2948 = vmatprep.subr.bf16.mxu0 0
        %2949 = vmatpush1.bf16.xpose.msra.mxu0 0
        %2950 = vmatprep.subr.bf16.mxu0 0
        %2951 = vmatpush1.bf16.xpose.msra.mxu0 0
        %2952 = vmatprep.subr.bf16.mxu0 0
        %2953 = vmatpush1.bf16.xpose.msra.mxu0 0
        %2954 = vmatprep.subr.bf16.mxu0 0
        %2955 = vmatpush1.bf16.xpose.msra.mxu0 0
        %2956 = vmatprep.subr.bf16.mxu0 0
        %2957 = vmatpush1.bf16.xpose.msra.mxu0 0
        %2958 = vmatprep.subr.bf16.mxu0 0
        %2959 = vmatpush1.bf16.xpose.msra.mxu0 0
        %2960 = vmatprep.subr.bf16.mxu0 0
        %2961 = vmatpush1.bf16.xpose.msra.mxu0 0
        %2962 = vmatprep.subr.bf16.mxu0 0
        %2963 = vmatpush1.bf16.xpose.msra.mxu0 0
        %2964 = vmatprep.subr.bf16.mxu0 0
        %2965 = vmatpush1.bf16.xpose.msra.mxu0 0
        %2966 = vmatprep.subr.bf16.mxu0 0
        %2967 = vmatpush1.bf16.xpose.msra.mxu0 0
        %2968 = vmatprep.mubr.bf16.mxu0 0
        %2969 = vmatmul.mubr.bf16.gmra.mrb[0].mxu0 %v2919
        %v2970 = vpop.f32.mrb[0].mxu0
        %v2971 = vadd.f32 %v2904, %v2970
        %v2972 = vpop.f32.mrb[0].mxu0
        %v2973 = vpop.f32.mrb[0].mxu0
        %v2974 = vadd.f32 %v2907, %v2973
        %v2975 = vpop.f32.mrb[0].mxu0
        %2976 = vmatprep.mubr.bf16.mxu0 0
        %2977 = vmatmul.mubr.bf16.gmra.mrb[0].mxu0 %v2922
        %v2978 = vpop.f32.mrb[0].mxu0
        %v2979 = vadd.f32 %v2912, %v2978
        %v2980 = vpop.f32.mrb[0].mxu0
        %v2981 = vpop.f32.mrb[0].mxu0
        %v2982 = vadd.f32 %v2915, %v2981
        %v2983 = vpop.f32.mrb[0].mxu0
        %2984 = vdwg.mxu0
        %v2985 = vpack.c.bf16 %v2974, %v2971
        %v2986 = vpack.c.bf16 %v2982, %v2979
        %2989 = vrot.lane.b32.xlu0 %v2985, 64
        %v2990 = vpop.permute.xlu0 %2989
        %2991 = vrot.lane.b32.xlu0 %v2986, 64
        %v2992 = vpop.permute.xlu0 %2991
        %2995 = vst.msk [vmem:[#allocation3 + $0x8] sm:$0xff] %vm1608, %v2990
        %2996 = vst.msk [vmem:[#allocation3 + $0x18] sm:$0xff] %vm1608, %v2992
        %v2997 = vld [vmem:[#allocation3] sm:$0xff]
        %v2998 = vld [vmem:[#allocation3 + $0x8] sm:$0xff]
        %v2999 = vld [vmem:[#allocation3 + $0x10] sm:$0xff]
        %v3000 = vld [vmem:[#allocation3 + $0x18] sm:$0xff]
        %v3001 = vld [vmem:[%s3] sm:$0xf]
        %v3002 = vld [vmem:[%s3 + $0x4] sm:$0xf]
        %v3003 = vld [vmem:[%s3 + $0x8] sm:$0xf]
        %v3004 = vld [vmem:[%s3 + $0xc] sm:$0xf]
        %v3005 = vld [vmem:[%s3 + $0x10] sm:$0xf]
        %v3006 = vld [vmem:[%s3 + $0x14] sm:$0xf]
        %v3007 = vld [vmem:[%s3 + $0x18] sm:$0xf]
        %v3008 = vld [vmem:[%s3 + $0x1c] sm:$0xf]
        %v3009 = vld [vmem:[%s3 + $0x20] sm:$0xf]
        %v3010 = vld [vmem:[%s3 + $0x24] sm:$0xf]
        %v3011 = vld [vmem:[%s3 + $0x28] sm:$0xf]
        %v3012 = vld [vmem:[%s3 + $0x2c] sm:$0xf]
        %v3025 = vunpack.c.l.b16 %v3001
        %v3026 = vunpack.c.l.b16 %v3002
        %v3027 = vunpack.c.l.b16 %v3003
        %v3028 = vunpack.c.l.b16 %v3004
        %v3029 = vunpack.c.l.b16 %v3005
        %v3030 = vunpack.c.l.b16 %v3006
        %v3031 = vunpack.c.l.b16 %v3007
        %v3032 = vunpack.c.l.b16 %v3008
        %v3033 = vunpack.c.l.b16 %v3009
        %v3034 = vunpack.c.l.b16 %v3010
        %v3035 = vunpack.c.l.b16 %v3011
        %v3036 = vunpack.c.l.b16 %v3012
        %v3037 = vpack.c.b16 %v3026, %v3025
        %v3038 = vpack.c.b16 %v3028, %v3027
        %v3039 = vpack.c.b16 %v3030, %v3029
        %v3040 = vpack.c.b16 %v3032, %v3031
        %v3041 = vpack.c.b16 %v3034, %v3033
        %v3042 = vpack.c.b16 %v3036, %v3035
        %v3044 = vsel %vm344, %v3037, 0
        %v3047 = vsel %vm344, %v3038, 0
        %v3050 = vsel %vm344, %v3039, 0
        %v3053 = vsel %vm344, %v3040, 0
        %v3056 = vsel %vm344, %v3041, 0
        %v3059 = vsel %vm344, %v3042, 0
        %3061 = vmatprep.subr.bf16.mxu0 %v2998
        %3062 = vmatpush1.bf16.msra.mxu0 %v2997
        %3063 = vmatprep.subr.bf16.mxu0 %v3000
        %3064 = vmatpush1.bf16.msra.mxu0 %v2999
        %3065 = vmatprep.subr.bf16.mxu0 0
        %3066 = vmatpush1.bf16.msra.mxu0 0
        %3067 = vmatprep.subr.bf16.mxu0 0
        %3068 = vmatpush1.bf16.msra.mxu0 0
        %3069 = vmatprep.subr.bf16.mxu0 0
        %3070 = vmatpush1.bf16.msra.mxu0 0
        %3071 = vmatprep.subr.bf16.mxu0 0
        %3072 = vmatpush1.bf16.msra.mxu0 0
        %3073 = vmatprep.subr.bf16.mxu0 0
        %3074 = vmatpush1.bf16.msra.mxu0 0
        %3075 = vmatprep.subr.bf16.mxu0 0
        %3076 = vmatpush1.bf16.msra.mxu0 0
        %3077 = vmatprep.subr.bf16.mxu0 0
        %3078 = vmatpush1.bf16.msra.mxu0 0
        %3079 = vmatprep.subr.bf16.mxu0 0
        %3080 = vmatpush1.bf16.msra.mxu0 0
        %3081 = vmatprep.subr.bf16.mxu0 0
        %3082 = vmatpush1.bf16.msra.mxu0 0
        %3083 = vmatprep.subr.bf16.mxu0 0
        %3084 = vmatpush1.bf16.msra.mxu0 0
        %3085 = vmatprep.subr.bf16.mxu0 0
        %3086 = vmatpush1.bf16.msra.mxu0 0
        %3087 = vmatprep.subr.bf16.mxu0 0
        %3088 = vmatpush1.bf16.msra.mxu0 0
        %3089 = vmatprep.subr.bf16.mxu0 0
        %3090 = vmatpush1.bf16.msra.mxu0 0
        %3091 = vmatprep.subr.bf16.mxu0 0
        %3092 = vmatpush1.bf16.msra.mxu0 0
        %3093 = vmatprep.mubr.bf16.mxu0 0
        %3094 = vmatmul.mubr.bf16.gmra.mrb[0].mxu0 %v3044
        %v3095 = vpop.f32.mrb[0].mxu0
        %v3096 = vadd.f32 0.0, %v3095
        %v3097 = vpop.f32.mrb[0].mxu0
        %v3098 = vadd.f32 0.0, %v3097
        %v3099 = vpop.f32.mrb[0].mxu0
        %v3100 = vadd.f32 0.0, %v3099
        %v3101 = vpop.f32.mrb[0].mxu0
        %v3102 = vadd.f32 0.0, %v3101
        %3103 = vmatprep.mubr.bf16.mxu0 0
        %3104 = vmatmul.mubr.bf16.gmra.mrb[0].mxu0 %v3047
        %v3105 = vpop.f32.mrb[0].mxu0
        %v3106 = vadd.f32 0.0, %v3105
        %v3107 = vpop.f32.mrb[0].mxu0
        %v3108 = vadd.f32 0.0, %v3107
        %v3109 = vpop.f32.mrb[0].mxu0
        %v3110 = vadd.f32 0.0, %v3109
        %v3111 = vpop.f32.mrb[0].mxu0
        %v3112 = vadd.f32 0.0, %v3111
        %3113 = vmatprep.mubr.bf16.mxu0 0
        %3114 = vmatmul.mubr.bf16.gmra.mrb[0].mxu0 %v3050
        %v3115 = vpop.f32.mrb[0].mxu0
        %v3116 = vadd.f32 0.0, %v3115
        %v3117 = vpop.f32.mrb[0].mxu0
        %v3118 = vadd.f32 0.0, %v3117
        %v3119 = vpop.f32.mrb[0].mxu0
        %v3120 = vadd.f32 0.0, %v3119
        %v3121 = vpop.f32.mrb[0].mxu0
        %v3122 = vadd.f32 0.0, %v3121
        %3123 = vmatprep.mubr.bf16.mxu0 0
        %3124 = vmatmul.mubr.bf16.gmra.mrb[0].mxu0 %v3053
        %v3125 = vpop.f32.mrb[0].mxu0
        %v3126 = vadd.f32 0.0, %v3125
        %v3127 = vpop.f32.mrb[0].mxu0
        %v3128 = vadd.f32 0.0, %v3127
        %v3129 = vpop.f32.mrb[0].mxu0
        %v3130 = vadd.f32 0.0, %v3129
        %v3131 = vpop.f32.mrb[0].mxu0
        %v3132 = vadd.f32 0.0, %v3131
        %3133 = vmatprep.mubr.bf16.mxu0 0
        %3134 = vmatmul.mubr.bf16.gmra.mrb[0].mxu0 %v3056
        %v3135 = vpop.f32.mrb[0].mxu0
        %v3136 = vadd.f32 0.0, %v3135
        %v3137 = vpop.f32.mrb[0].mxu0
        %v3138 = vadd.f32 0.0, %v3137
        %v3139 = vpop.f32.mrb[0].mxu0
        %v3140 = vadd.f32 0.0, %v3139
        %v3141 = vpop.f32.mrb[0].mxu0
        %v3142 = vadd.f32 0.0, %v3141
        %3143 = vmatprep.mubr.bf16.mxu0 0
        %3144 = vmatmul.mubr.bf16.gmra.mrb[0].mxu0 %v3059
        %v3145 = vpop.f32.mrb[0].mxu0
        %v3146 = vadd.f32 0.0, %v3145
        %v3147 = vpop.f32.mrb[0].mxu0
        %v3148 = vadd.f32 0.0, %v3147
        %v3149 = vpop.f32.mrb[0].mxu0
        %v3150 = vadd.f32 0.0, %v3149
        %v3151 = vpop.f32.mrb[0].mxu0
        %v3152 = vadd.f32 0.0, %v3151
        %3153 = vdwg.mxu0
        %3154 = vst [vmem:[#allocation4] sm:$0xff] %v3096
        %3155 = vst [vmem:[#allocation4 + $0x8] sm:$0xff] %v3098
        %3156 = vst [vmem:[#allocation4 + $0x10] sm:$0xff] %v3100
        %3157 = vst [vmem:[#allocation4 + $0x18] sm:$0xff] %v3102
        %3158 = vst [vmem:[#allocation4 + $0x20] sm:$0xff] %v3106
        %3159 = vst [vmem:[#allocation4 + $0x28] sm:$0xff] %v3108
        %3160 = vst [vmem:[#allocation4 + $0x30] sm:$0xff] %v3110
        %3161 = vst [vmem:[#allocation4 + $0x38] sm:$0xff] %v3112
        %3162 = vst [vmem:[#allocation4 + $0x40] sm:$0xff] %v3116
        %3163 = vst [vmem:[#allocation4 + $0x48] sm:$0xff] %v3118
        %3164 = vst [vmem:[#allocation4 + $0x50] sm:$0xff] %v3120
        %3165 = vst [vmem:[#allocation4 + $0x58] sm:$0xff] %v3122
        %3166 = vst [vmem:[#allocation4 + $0x60] sm:$0xff] %v3126
        %3167 = vst [vmem:[#allocation4 + $0x68] sm:$0xff] %v3128
        %3168 = vst [vmem:[#allocation4 + $0x70] sm:$0xff] %v3130
        %3169 = vst [vmem:[#allocation4 + $0x78] sm:$0xff] %v3132
        %3170 = vst [vmem:[#allocation4 + $0x80] sm:$0xff] %v3136
        %3171 = vst [vmem:[#allocation4 + $0x88] sm:$0xff] %v3138
        %3172 = vst [vmem:[#allocation4 + $0x90] sm:$0xff] %v3140
        %3173 = vst [vmem:[#allocation4 + $0x98] sm:$0xff] %v3142
        %3174 = vst [vmem:[#allocation4 + $0xa0] sm:$0xff] %v3146
        %3175 = vst [vmem:[#allocation4 + $0xa8] sm:$0xff] %v3148
        %3176 = vst [vmem:[#allocation4 + $0xb0] sm:$0xff] %v3150
        %3177 = vst [vmem:[#allocation4 + $0xb8] sm:$0xff] %v3152
        %v3178 = vld [vmem:[%s3 + $0x30] sm:$0xf]
        %v3179 = vld [vmem:[%s3 + $0x34] sm:$0xf]
        %v3180 = vld [vmem:[%s3 + $0x38] sm:$0xf]
        %v3181 = vld [vmem:[%s3 + $0x3c] sm:$0xf]
        %v3182 = vld [vmem:[%s3 + $0x40] sm:$0xf]
        %v3183 = vld [vmem:[%s3 + $0x44] sm:$0xf]
        %v3184 = vld [vmem:[%s3 + $0x48] sm:$0xf]
        %v3185 = vld [vmem:[%s3 + $0x4c] sm:$0xf]
        %v3186 = vld [vmem:[%s3 + $0x50] sm:$0xf]
        %v3187 = vld [vmem:[%s3 + $0x54] sm:$0xf]
        %v3188 = vld [vmem:[%s3 + $0x58] sm:$0xf]
        %v3189 = vld [vmem:[%s3 + $0x5c] sm:$0xf]
        %v3202 = vunpack.c.l.b16 %v3178
        %v3203 = vunpack.c.l.b16 %v3179
        %v3204 = vunpack.c.l.b16 %v3180
        %v3205 = vunpack.c.l.b16 %v3181
        %v3206 = vunpack.c.l.b16 %v3182
        %v3207 = vunpack.c.l.b16 %v3183
        %v3208 = vunpack.c.l.b16 %v3184
        %v3209 = vunpack.c.l.b16 %v3185
        %v3210 = vunpack.c.l.b16 %v3186
        %v3211 = vunpack.c.l.b16 %v3187
        %v3212 = vunpack.c.l.b16 %v3188
        %v3213 = vunpack.c.l.b16 %v3189
        %v3214 = vpack.c.b16 %v3203, %v3202
        %v3215 = vpack.c.b16 %v3205, %v3204
        %v3216 = vpack.c.b16 %v3207, %v3206
        %v3217 = vpack.c.b16 %v3209, %v3208
        %v3218 = vpack.c.b16 %v3211, %v3210
        %v3219 = vpack.c.b16 %v3213, %v3212
        %v3221 = vsel %vm344, %v3214, 0
        %v3224 = vsel %vm344, %v3215, 0
        %v3227 = vsel %vm344, %v3216, 0
        %v3230 = vsel %vm344, %v3217, 0
        %v3233 = vsel %vm344, %v3218, 0
        %v3236 = vsel %vm344, %v3219, 0
        %3238 = vmatprep.subr.bf16.mxu0 %v2998
        %3239 = vmatpush1.bf16.msra.mxu0 %v2997
        %3240 = vmatprep.subr.bf16.mxu0 %v3000
        %3241 = vmatpush1.bf16.msra.mxu0 %v2999
        %3242 = vmatprep.subr.bf16.mxu0 0
        %3243 = vmatpush1.bf16.msra.mxu0 0
        %3244 = vmatprep.subr.bf16.mxu0 0
        %3245 = vmatpush1.bf16.msra.mxu0 0
        %3246 = vmatprep.subr.bf16.mxu0 0
        %3247 = vmatpush1.bf16.msra.mxu0 0
        %3248 = vmatprep.subr.bf16.mxu0 0
        %3249 = vmatpush1.bf16.msra.mxu0 0
        %3250 = vmatprep.subr.bf16.mxu0 0
        %3251 = vmatpush1.bf16.msra.mxu0 0
        %3252 = vmatprep.subr.bf16.mxu0 0
        %3253 = vmatpush1.bf16.msra.mxu0 0
        %3254 = vmatprep.subr.bf16.mxu0 0
        %3255 = vmatpush1.bf16.msra.mxu0 0
        %3256 = vmatprep.subr.bf16.mxu0 0
        %3257 = vmatpush1.bf16.msra.mxu0 0
        %3258 = vmatprep.subr.bf16.mxu0 0
        %3259 = vmatpush1.bf16.msra.mxu0 0
        %3260 = vmatprep.subr.bf16.mxu0 0
        %3261 = vmatpush1.bf16.msra.mxu0 0
        %3262 = vmatprep.subr.bf16.mxu0 0
        %3263 = vmatpush1.bf16.msra.mxu0 0
        %3264 = vmatprep.subr.bf16.mxu0 0
        %3265 = vmatpush1.bf16.msra.mxu0 0
        %3266 = vmatprep.subr.bf16.mxu0 0
        %3267 = vmatpush1.bf16.msra.mxu0 0
        %3268 = vmatprep.subr.bf16.mxu0 0
        %3269 = vmatpush1.bf16.msra.mxu0 0
        %3270 = vmatprep.mubr.bf16.mxu0 0
        %3271 = vmatmul.mubr.bf16.gmra.mrb[0].mxu0 %v3221
        %v3272 = vpop.f32.mrb[0].mxu0
        %v3273 = vadd.f32 0.0, %v3272
        %v3274 = vpop.f32.mrb[0].mxu0
        %v3275 = vadd.f32 0.0, %v3274
        %v3276 = vpop.f32.mrb[0].mxu0
        %v3277 = vadd.f32 0.0, %v3276
        %v3278 = vpop.f32.mrb[0].mxu0
        %v3279 = vadd.f32 0.0, %v3278
        %3280 = vmatprep.mubr.bf16.mxu0 0
        %3281 = vmatmul.mubr.bf16.gmra.mrb[0].mxu0 %v3224
        %v3282 = vpop.f32.mrb[0].mxu0
        %v3283 = vadd.f32 0.0, %v3282
        %v3284 = vpop.f32.mrb[0].mxu0
        %v3285 = vadd.f32 0.0, %v3284
        %v3286 = vpop.f32.mrb[0].mxu0
        %v3287 = vadd.f32 0.0, %v3286
        %v3288 = vpop.f32.mrb[0].mxu0
        %v3289 = vadd.f32 0.0, %v3288
        %3290 = vmatprep.mubr.bf16.mxu0 0
        %3291 = vmatmul.mubr.bf16.gmra.mrb[0].mxu0 %v3227
        %v3292 = vpop.f32.mrb[0].mxu0
        %v3293 = vadd.f32 0.0, %v3292
        %v3294 = vpop.f32.mrb[0].mxu0
        %v3295 = vadd.f32 0.0, %v3294
        %v3296 = vpop.f32.mrb[0].mxu0
        %v3297 = vadd.f32 0.0, %v3296
        %v3298 = vpop.f32.mrb[0].mxu0
        %v3299 = vadd.f32 0.0, %v3298
        %3300 = vmatprep.mubr.bf16.mxu0 0
        %3301 = vmatmul.mubr.bf16.gmra.mrb[0].mxu0 %v3230
        %v3302 = vpop.f32.mrb[0].mxu0
        %v3303 = vadd.f32 0.0, %v3302
        %v3304 = vpop.f32.mrb[0].mxu0
        %v3305 = vadd.f32 0.0, %v3304
        %v3306 = vpop.f32.mrb[0].mxu0
        %v3307 = vadd.f32 0.0, %v3306
        %v3308 = vpop.f32.mrb[0].mxu0
        %v3309 = vadd.f32 0.0, %v3308
        %3310 = vmatprep.mubr.bf16.mxu0 0
        %3311 = vmatmul.mubr.bf16.gmra.mrb[0].mxu0 %v3233
        %v3312 = vpop.f32.mrb[0].mxu0
        %v3313 = vadd.f32 0.0, %v3312
        %v3314 = vpop.f32.mrb[0].mxu0
        %v3315 = vadd.f32 0.0, %v3314
        %v3316 = vpop.f32.mrb[0].mxu0
        %v3317 = vadd.f32 0.0, %v3316
        %v3318 = vpop.f32.mrb[0].mxu0
        %v3319 = vadd.f32 0.0, %v3318
        %3320 = vmatprep.mubr.bf16.mxu0 0
        %3321 = vmatmul.mubr.bf16.gmra.mrb[0].mxu0 %v3236
        %v3322 = vpop.f32.mrb[0].mxu0
        %v3323 = vadd.f32 0.0, %v3322
        %v3324 = vpop.f32.mrb[0].mxu0
        %v3325 = vadd.f32 0.0, %v3324
        %v3326 = vpop.f32.mrb[0].mxu0
        %v3327 = vadd.f32 0.0, %v3326
        %v3328 = vpop.f32.mrb[0].mxu0
        %v3329 = vadd.f32 0.0, %v3328
        %3330 = vdwg.mxu0
        %3331 = vst [vmem:[#allocation4 + $0xc0] sm:$0xff] %v3273
        %3332 = vst [vmem:[#allocation4 + $0xc8] sm:$0xff] %v3275
        %3333 = vst [vmem:[#allocation4 + $0xd0] sm:$0xff] %v3277
        %3334 = vst [vmem:[#allocation4 + $0xd8] sm:$0xff] %v3279
        %3335 = vst [vmem:[#allocation4 + $0xe0] sm:$0xff] %v3283
        %3336 = vst [vmem:[#allocation4 + $0xe8] sm:$0xff] %v3285
        %3337 = vst [vmem:[#allocation4 + $0xf0] sm:$0xff] %v3287
        %3338 = vst [vmem:[#allocation4 + $0xf8] sm:$0xff] %v3289
        %3339 = vst [vmem:[#allocation4 + $0x100] sm:$0xff] %v3293
        %3340 = vst [vmem:[#allocation4 + $0x108] sm:$0xff] %v3295
        %3341 = vst [vmem:[#allocation4 + $0x110] sm:$0xff] %v3297
        %3342 = vst [vmem:[#allocation4 + $0x118] sm:$0xff] %v3299
        %3343 = vst [vmem:[#allocation4 + $0x120] sm:$0xff] %v3303
        %3344 = vst [vmem:[#allocation4 + $0x128] sm:$0xff] %v3305
        %3345 = vst [vmem:[#allocation4 + $0x130] sm:$0xff] %v3307
        %3346 = vst [vmem:[#allocation4 + $0x138] sm:$0xff] %v3309
        %3347 = vst [vmem:[#allocation4 + $0x140] sm:$0xff] %v3313
        %3348 = vst [vmem:[#allocation4 + $0x148] sm:$0xff] %v3315
        %3349 = vst [vmem:[#allocation4 + $0x150] sm:$0xff] %v3317
        %3350 = vst [vmem:[#allocation4 + $0x158] sm:$0xff] %v3319
        %3351 = vst [vmem:[#allocation4 + $0x160] sm:$0xff] %v3323
        %3352 = vst [vmem:[#allocation4 + $0x168] sm:$0xff] %v3325
        %3353 = vst [vmem:[#allocation4 + $0x170] sm:$0xff] %v3327
        %3354 = vst [vmem:[#allocation4 + $0x178] sm:$0xff] %v3329
        %v3355 = vld [vmem:[#allocation4 + $0x80] sm:$0xff]
        %v3356 = vld [vmem:[#allocation4 + $0x88] sm:$0xff]
        %v3357 = vld [vmem:[#allocation4 + $0x90] sm:$0xff]
        %v3358 = vld [vmem:[#allocation4 + $0x98] sm:$0xff]
        %v3359 = vld [vmem:[#allocation4 + $0xa0] sm:$0xff]
        %v3360 = vld [vmem:[#allocation4 + $0xa8] sm:$0xff]
        %v3361 = vld [vmem:[#allocation4 + $0xb0] sm:$0xff]
        %v3362 = vld [vmem:[#allocation4 + $0xb8] sm:$0xff]
        %v3363 = vld [vmem:[#allocation4 + $0xc0] sm:$0xff]
        %v3364 = vld [vmem:[#allocation4 + $0xc8] sm:$0xff]
        %v3365 = vld [vmem:[#allocation4 + $0xd0] sm:$0xff]
        %v3366 = vld [vmem:[#allocation4 + $0xd8] sm:$0xff]
        %v3367 = vld [vmem:[#allocation4 + $0xe0] sm:$0xff]
        %v3368 = vld [vmem:[#allocation4 + $0xe8] sm:$0xff]
        %v3369 = vld [vmem:[#allocation4 + $0xf0] sm:$0xff]
        %v3370 = vld [vmem:[#allocation4 + $0xf8] sm:$0xff]
        %v3371 = vld [vmem:[%s4] sm:$0xff]
        %v3372 = vld [vmem:[%s4 + $0x8] sm:$0xff]
        %v3373 = vld [vmem:[%s4 + $0x10] sm:$0xff]
        %v3374 = vld [vmem:[%s4 + $0x18] sm:$0xff]
        %v3375 = vld [vmem:[%s4 + $0x20] sm:$0xff]
        %v3376 = vld [vmem:[%s4 + $0x28] sm:$0xff]
        %v3377 = vld [vmem:[%s4 + $0x30] sm:$0xff]
        %v3378 = vld [vmem:[%s4 + $0x38] sm:$0xff]
        %3380 = vset.pattern.permute.xlu0 0
        %3381 = vperm.xlu0 %3380, %v3371
        %v3382 = vpop.permute.xlu0 %3381
        %3385 = vset.pattern.permute.xlu0 0
        %3386 = vperm.xlu0 %3385, %v3372
        %v3387 = vpop.permute.xlu0 %3386
        %3390 = vset.pattern.permute.xlu0 0
        %3391 = vperm.xlu0 %3390, %v3373
        %v3392 = vpop.permute.xlu0 %3391
        %3395 = vset.pattern.permute.xlu0 0
        %3396 = vperm.xlu0 %3395, %v3374
        %v3397 = vpop.permute.xlu0 %3396
        %3400 = vset.pattern.permute.xlu0 0
        %3401 = vperm.xlu0 %3400, %v3375
        %v3402 = vpop.permute.xlu0 %3401
        %3405 = vset.pattern.permute.xlu0 0
        %3406 = vperm.xlu0 %3405, %v3376
        %v3407 = vpop.permute.xlu0 %3406
        %3410 = vset.pattern.permute.xlu0 0
        %3411 = vperm.xlu0 %3410, %v3377
        %v3412 = vpop.permute.xlu0 %3411
        %3415 = vset.pattern.permute.xlu0 0
        %3416 = vperm.xlu0 %3415, %v3378
        %v3417 = vpop.permute.xlu0 %3416
        %v3419 = vadd.f32 %v3355, %v3382
        %v3420 = vadd.f32 %v3356, %v3382
        %v3421 = vadd.f32 %v3357, %v3387
        %v3422 = vadd.f32 %v3358, %v3387
        %v3423 = vadd.f32 %v3359, %v3392
        %v3424 = vadd.f32 %v3360, %v3392
        %v3425 = vadd.f32 %v3361, %v3397
        %v3426 = vadd.f32 %v3362, %v3397
        %v3427 = vadd.f32 %v3363, %v3402
        %v3428 = vadd.f32 %v3364, %v3402
        %v3429 = vadd.f32 %v3365, %v3407
        %v3430 = vadd.f32 %v3366, %v3407
        %v3431 = vadd.f32 %v3367, %v3412
        %v3432 = vadd.f32 %v3368, %v3412
        %v3433 = vadd.f32 %v3369, %v3417
        %v3434 = vadd.f32 %v3370, %v3417
        %3435 = vst [vmem:[#allocation4 + $0x80] sm:$0xff] %v3419
        %3436 = vst [vmem:[#allocation4 + $0x88] sm:$0xff] %v3420
        %3437 = vst [vmem:[#allocation4 + $0x90] sm:$0xff] %v3421
        %3438 = vst [vmem:[#allocation4 + $0x98] sm:$0xff] %v3422
        %3439 = vst [vmem:[#allocation4 + $0xa0] sm:$0xff] %v3423
        %3440 = vst [vmem:[#allocation4 + $0xa8] sm:$0xff] %v3424
        %3441 = vst [vmem:[#allocation4 + $0xb0] sm:$0xff] %v3425
        %3442 = vst [vmem:[#allocation4 + $0xb8] sm:$0xff] %v3426
        %3443 = vst [vmem:[#allocation4 + $0xc0] sm:$0xff] %v3427
        %3444 = vst [vmem:[#allocation4 + $0xc8] sm:$0xff] %v3428
        %3445 = vst [vmem:[#allocation4 + $0xd0] sm:$0xff] %v3429
        %3446 = vst [vmem:[#allocation4 + $0xd8] sm:$0xff] %v3430
        %3447 = vst [vmem:[#allocation4 + $0xe0] sm:$0xff] %v3431
        %3448 = vst [vmem:[#allocation4 + $0xe8] sm:$0xff] %v3432
        %3449 = vst [vmem:[#allocation4 + $0xf0] sm:$0xff] %v3433
        %3450 = vst [vmem:[#allocation4 + $0xf8] sm:$0xff] %v3434
        %v3451 = vld [vmem:[#allocation4 + $0x80] sm:$0xff]
        %v3452 = vld [vmem:[#allocation4 + $0x90] sm:$0xff]
        %v3453 = vld [vmem:[#allocation4 + $0xa0] sm:$0xff]
        %v3454 = vld [vmem:[#allocation4 + $0xb0] sm:$0xff]
        %v3455 = vld [vmem:[#allocation4 + $0xc0] sm:$0xff]
        %v3456 = vld [vmem:[#allocation4 + $0xd0] sm:$0xff]
        %v3457 = vld [vmem:[#allocation4 + $0xe0] sm:$0xff]
        %v3458 = vld [vmem:[#allocation4 + $0xf0] sm:$0xff]
        %v3459 = vld [vmem:[#allocation4 + $0x100] sm:$0xff]
        %v3460 = vld [vmem:[#allocation4 + $0x110] sm:$0xff]
        %v3461 = vld [vmem:[#allocation4 + $0x120] sm:$0xff]
        %v3462 = vld [vmem:[#allocation4 + $0x130] sm:$0xff]
        %v3463 = vld [vmem:[#allocation4 + $0x140] sm:$0xff]
        %v3464 = vld [vmem:[#allocation4 + $0x150] sm:$0xff]
        %v3465 = vld [vmem:[#allocation4 + $0x160] sm:$0xff]
        %v3466 = vld [vmem:[#allocation4 + $0x170] sm:$0xff]
        %3475 = vrot.lane.b32.xlu0 %v3459, 64
        %v3476 = vpop.permute.xlu0 %3475
        %3477 = vrot.lane.b32.xlu0 %v3460, 64
        %v3478 = vpop.permute.xlu0 %3477
        %3479 = vrot.lane.b32.xlu0 %v3461, 64
        %v3480 = vpop.permute.xlu0 %3479
        %3481 = vrot.lane.b32.xlu0 %v3462, 64
        %v3482 = vpop.permute.xlu0 %3481
        %3483 = vrot.lane.b32.xlu0 %v3463, 64
        %v3484 = vpop.permute.xlu0 %3483
        %3485 = vrot.lane.b32.xlu0 %v3464, 64
        %v3486 = vpop.permute.xlu0 %3485
        %3487 = vrot.lane.b32.xlu0 %v3465, 64
        %v3488 = vpop.permute.xlu0 %3487
        %3489 = vrot.lane.b32.xlu0 %v3466, 64
        %v3490 = vpop.permute.xlu0 %3489
        %v3499 = vadd.f32 %v3451, %v3476
        %v3500 = vadd.f32 %v3452, %v3478
        %v3501 = vadd.f32 %v3453, %v3480
        %v3502 = vadd.f32 %v3454, %v3482
        %v3503 = vadd.f32 %v3455, %v3484
        %v3504 = vadd.f32 %v3456, %v3486
        %v3505 = vadd.f32 %v3457, %v3488
        %v3506 = vadd.f32 %v3458, %v3490
        %3507 = vst.msk [vmem:[#allocation5] sm:$0xff] %vm450, %v3499
        %3508 = vst.msk [vmem:[#allocation5 + $0x8] sm:$0xff] %vm450, %v3500
        %3509 = vst.msk [vmem:[#allocation5 + $0x10] sm:$0xff] %vm450, %v3501
        %3510 = vst.msk [vmem:[#allocation5 + $0x18] sm:$0xff] %vm450, %v3502
        %3511 = vst.msk [vmem:[#allocation5 + $0x20] sm:$0xff] %vm450, %v3503
        %3512 = vst.msk [vmem:[#allocation5 + $0x28] sm:$0xff] %vm450, %v3504
        %3513 = vst.msk [vmem:[#allocation5 + $0x30] sm:$0xff] %vm450, %v3505
        %3514 = vst.msk [vmem:[#allocation5 + $0x38] sm:$0xff] %vm450, %v3506
        %v3515 = vld [vmem:[#allocation4 + $0x80] sm:$0xff]
        %v3516 = vld [vmem:[#allocation4 + $0x90] sm:$0xff]
        %v3517 = vld [vmem:[#allocation4 + $0xa0] sm:$0xff]
        %v3518 = vld [vmem:[#allocation4 + $0xb0] sm:$0xff]
        %v3519 = vld [vmem:[#allocation4 + $0xc0] sm:$0xff]
        %v3520 = vld [vmem:[#allocation4 + $0xd0] sm:$0xff]
        %v3521 = vld [vmem:[#allocation4 + $0xe0] sm:$0xff]
        %v3522 = vld [vmem:[#allocation4 + $0xf0] sm:$0xff]
        %v3523 = vld [vmem:[#allocation4] sm:$0xff]
        %v3524 = vld [vmem:[#allocation4 + $0x10] sm:$0xff]
        %v3525 = vld [vmem:[#allocation4 + $0x20] sm:$0xff]
        %v3526 = vld [vmem:[#allocation4 + $0x30] sm:$0xff]
        %v3527 = vld [vmem:[#allocation4 + $0x40] sm:$0xff]
        %v3528 = vld [vmem:[#allocation4 + $0x50] sm:$0xff]
        %v3529 = vld [vmem:[#allocation4 + $0x60] sm:$0xff]
        %v3530 = vld [vmem:[#allocation4 + $0x70] sm:$0xff]
        %3539 = vrot.lane.b32.xlu0 %v3523, 64
        %v3540 = vpop.permute.xlu0 %3539
        %3541 = vrot.lane.b32.xlu0 %v3524, 64
        %v3542 = vpop.permute.xlu0 %3541
        %3543 = vrot.lane.b32.xlu0 %v3525, 64
        %v3544 = vpop.permute.xlu0 %3543
        %3545 = vrot.lane.b32.xlu0 %v3526, 64
        %v3546 = vpop.permute.xlu0 %3545
        %3547 = vrot.lane.b32.xlu0 %v3527, 64
        %v3548 = vpop.permute.xlu0 %3547
        %3549 = vrot.lane.b32.xlu0 %v3528, 64
        %v3550 = vpop.permute.xlu0 %3549
        %3551 = vrot.lane.b32.xlu0 %v3529, 64
        %v3552 = vpop.permute.xlu0 %3551
        %3553 = vrot.lane.b32.xlu0 %v3530, 64
        %v3554 = vpop.permute.xlu0 %3553
        %v3563 = vadd.f32 %v3515, %v3540
        %v3564 = vadd.f32 %v3516, %v3542
        %v3565 = vadd.f32 %v3517, %v3544
        %v3566 = vadd.f32 %v3518, %v3546
        %v3567 = vadd.f32 %v3519, %v3548
        %v3568 = vadd.f32 %v3520, %v3550
        %v3569 = vadd.f32 %v3521, %v3552
        %v3570 = vadd.f32 %v3522, %v3554
        %v3571 = vld [vmem:[#allocation4 + $0x108] sm:$0xff]
        %v3572 = vld [vmem:[#allocation4 + $0x118] sm:$0xff]
        %v3573 = vld [vmem:[#allocation4 + $0x128] sm:$0xff]
        %v3574 = vld [vmem:[#allocation4 + $0x138] sm:$0xff]
        %v3575 = vld [vmem:[#allocation4 + $0x148] sm:$0xff]
        %v3576 = vld [vmem:[#allocation4 + $0x158] sm:$0xff]
        %v3577 = vld [vmem:[#allocation4 + $0x168] sm:$0xff]
        %v3578 = vld [vmem:[#allocation4 + $0x178] sm:$0xff]
        %3587 = vrot.lane.b32.xlu0 %v3571, 64
        %v3588 = vpop.permute.xlu0 %3587
        %3589 = vrot.lane.b32.xlu0 %v3572, 64
        %v3590 = vpop.permute.xlu0 %3589
        %3591 = vrot.lane.b32.xlu0 %v3573, 64
        %v3592 = vpop.permute.xlu0 %3591
        %3593 = vrot.lane.b32.xlu0 %v3574, 64
        %v3594 = vpop.permute.xlu0 %3593
        %3595 = vrot.lane.b32.xlu0 %v3575, 64
        %v3596 = vpop.permute.xlu0 %3595
        %3597 = vrot.lane.b32.xlu0 %v3576, 64
        %v3598 = vpop.permute.xlu0 %3597
        %3599 = vrot.lane.b32.xlu0 %v3577, 64
        %v3600 = vpop.permute.xlu0 %3599
        %3601 = vrot.lane.b32.xlu0 %v3578, 64
        %v3602 = vpop.permute.xlu0 %3601
        %v3611 = vadd.f32 %v3563, %v3588
        %v3612 = vadd.f32 %v3564, %v3590
        %v3613 = vadd.f32 %v3565, %v3592
        %v3614 = vadd.f32 %v3566, %v3594
        %v3615 = vadd.f32 %v3567, %v3596
        %v3616 = vadd.f32 %v3568, %v3598
        %v3617 = vadd.f32 %v3569, %v3600
        %v3618 = vadd.f32 %v3570, %v3602
        %3627 = vrot.lane.b32.xlu0 %v3611, 64
        %v3628 = vpop.permute.xlu0 %3627
        %3629 = vrot.lane.b32.xlu0 %v3612, 64
        %v3630 = vpop.permute.xlu0 %3629
        %3631 = vrot.lane.b32.xlu0 %v3613, 64
        %v3632 = vpop.permute.xlu0 %3631
        %3633 = vrot.lane.b32.xlu0 %v3614, 64
        %v3634 = vpop.permute.xlu0 %3633
        %3635 = vrot.lane.b32.xlu0 %v3615, 64
        %v3636 = vpop.permute.xlu0 %3635
        %3637 = vrot.lane.b32.xlu0 %v3616, 64
        %v3638 = vpop.permute.xlu0 %3637
        %3639 = vrot.lane.b32.xlu0 %v3617, 64
        %v3640 = vpop.permute.xlu0 %3639
        %3641 = vrot.lane.b32.xlu0 %v3618, 64
        %v3642 = vpop.permute.xlu0 %3641
        %s3651 = scalar_lea.vmem [#allocation5], 64
        %3652 = vst.msk [vmem:[%s3651] sm:$0xff] %vm450, %v3628
        %3653 = vst.msk [vmem:[%s3651 + $0x8] sm:$0xff] %vm450, %v3630
        %3654 = vst.msk [vmem:[%s3651 + $0x10] sm:$0xff] %vm450, %v3632
        %3655 = vst.msk [vmem:[%s3651 + $0x18] sm:$0xff] %vm450, %v3634
        %3656 = vst.msk [vmem:[%s3651 + $0x20] sm:$0xff] %vm450, %v3636
        %3657 = vst.msk [vmem:[%s3651 + $0x28] sm:$0xff] %vm450, %v3638
        %3658 = vst.msk [vmem:[%s3651 + $0x30] sm:$0xff] %vm450, %v3640
        %3659 = vst.msk [vmem:[%s3651 + $0x38] sm:$0xff] %vm450, %v3642
        %v3660 = vld [vmem:[#allocation4 + $0x88] sm:$0xff]
        %v3661 = vld [vmem:[#allocation4 + $0x98] sm:$0xff]
        %v3662 = vld [vmem:[#allocation4 + $0xa8] sm:$0xff]
        %v3663 = vld [vmem:[#allocation4 + $0xb8] sm:$0xff]
        %v3664 = vld [vmem:[#allocation4 + $0xc8] sm:$0xff]
        %v3665 = vld [vmem:[#allocation4 + $0xd8] sm:$0xff]
        %v3666 = vld [vmem:[#allocation4 + $0xe8] sm:$0xff]
        %v3667 = vld [vmem:[#allocation4 + $0xf8] sm:$0xff]
        %v3668 = vld [vmem:[#allocation4] sm:$0xff]
        %v3669 = vld [vmem:[#allocation4 + $0x10] sm:$0xff]
        %v3670 = vld [vmem:[#allocation4 + $0x20] sm:$0xff]
        %v3671 = vld [vmem:[#allocation4 + $0x30] sm:$0xff]
        %v3672 = vld [vmem:[#allocation4 + $0x40] sm:$0xff]
        %v3673 = vld [vmem:[#allocation4 + $0x50] sm:$0xff]
        %v3674 = vld [vmem:[#allocation4 + $0x60] sm:$0xff]
        %v3675 = vld [vmem:[#allocation4 + $0x70] sm:$0xff]
        %3684 = vrot.lane.b32.xlu0 %v3668, 64
        %v3685 = vpop.permute.xlu0 %3684
        %3686 = vrot.lane.b32.xlu0 %v3669, 64
        %v3687 = vpop.permute.xlu0 %3686
        %3688 = vrot.lane.b32.xlu0 %v3670, 64
        %v3689 = vpop.permute.xlu0 %3688
        %3690 = vrot.lane.b32.xlu0 %v3671, 64
        %v3691 = vpop.permute.xlu0 %3690
        %3692 = vrot.lane.b32.xlu0 %v3672, 64
        %v3693 = vpop.permute.xlu0 %3692
        %3694 = vrot.lane.b32.xlu0 %v3673, 64
        %v3695 = vpop.permute.xlu0 %3694
        %3696 = vrot.lane.b32.xlu0 %v3674, 64
        %v3697 = vpop.permute.xlu0 %3696
        %3698 = vrot.lane.b32.xlu0 %v3675, 64
        %v3699 = vpop.permute.xlu0 %3698
        %v3708 = vadd.f32 %v3660, %v3685
        %v3709 = vadd.f32 %v3661, %v3687
        %v3710 = vadd.f32 %v3662, %v3689
        %v3711 = vadd.f32 %v3663, %v3691
        %v3712 = vadd.f32 %v3664, %v3693
        %v3713 = vadd.f32 %v3665, %v3695
        %v3714 = vadd.f32 %v3666, %v3697
        %v3715 = vadd.f32 %v3667, %v3699
        %v3716 = vld [vmem:[#allocation4 + $0x108] sm:$0xff]
        %v3717 = vld [vmem:[#allocation4 + $0x118] sm:$0xff]
        %v3718 = vld [vmem:[#allocation4 + $0x128] sm:$0xff]
        %v3719 = vld [vmem:[#allocation4 + $0x138] sm:$0xff]
        %v3720 = vld [vmem:[#allocation4 + $0x148] sm:$0xff]
        %v3721 = vld [vmem:[#allocation4 + $0x158] sm:$0xff]
        %v3722 = vld [vmem:[#allocation4 + $0x168] sm:$0xff]
        %v3723 = vld [vmem:[#allocation4 + $0x178] sm:$0xff]
        %3732 = vrot.lane.b32.xlu0 %v3716, 64
        %v3733 = vpop.permute.xlu0 %3732
        %3734 = vrot.lane.b32.xlu0 %v3717, 64
        %v3735 = vpop.permute.xlu0 %3734
        %3736 = vrot.lane.b32.xlu0 %v3718, 64
        %v3737 = vpop.permute.xlu0 %3736
        %3738 = vrot.lane.b32.xlu0 %v3719, 64
        %v3739 = vpop.permute.xlu0 %3738
        %3740 = vrot.lane.b32.xlu0 %v3720, 64
        %v3741 = vpop.permute.xlu0 %3740
        %3742 = vrot.lane.b32.xlu0 %v3721, 64
        %v3743 = vpop.permute.xlu0 %3742
        %3744 = vrot.lane.b32.xlu0 %v3722, 64
        %v3745 = vpop.permute.xlu0 %3744
        %3746 = vrot.lane.b32.xlu0 %v3723, 64
        %v3747 = vpop.permute.xlu0 %3746
        %v3756 = vadd.f32 %v3708, %v3733
        %v3757 = vadd.f32 %v3709, %v3735
        %v3758 = vadd.f32 %v3710, %v3737
        %v3759 = vadd.f32 %v3711, %v3739
        %v3760 = vadd.f32 %v3712, %v3741
        %v3761 = vadd.f32 %v3713, %v3743
        %v3762 = vadd.f32 %v3714, %v3745
        %v3763 = vadd.f32 %v3715, %v3747
        %s3764 = scalar_lea.vmem [#allocation5], 128
        %3765 = vst.msk [vmem:[%s3764] sm:$0xff] %vm450, %v3756
        %3766 = vst.msk [vmem:[%s3764 + $0x8] sm:$0xff] %vm450, %v3757
        %3767 = vst.msk [vmem:[%s3764 + $0x10] sm:$0xff] %vm450, %v3758
        %3768 = vst.msk [vmem:[%s3764 + $0x18] sm:$0xff] %vm450, %v3759
        %3769 = vst.msk [vmem:[%s3764 + $0x20] sm:$0xff] %vm450, %v3760
        %3770 = vst.msk [vmem:[%s3764 + $0x28] sm:$0xff] %vm450, %v3761
        %3771 = vst.msk [vmem:[%s3764 + $0x30] sm:$0xff] %vm450, %v3762
        %3772 = vst.msk [vmem:[%s3764 + $0x38] sm:$0xff] %vm450, %v3763
        %v3773 = vld [vmem:[#allocation4 + $0x88] sm:$0xff]
        %v3774 = vld [vmem:[#allocation4 + $0x98] sm:$0xff]
        %v3775 = vld [vmem:[#allocation4 + $0xa8] sm:$0xff]
        %v3776 = vld [vmem:[#allocation4 + $0xb8] sm:$0xff]
        %v3777 = vld [vmem:[#allocation4 + $0xc8] sm:$0xff]
        %v3778 = vld [vmem:[#allocation4 + $0xd8] sm:$0xff]
        %v3779 = vld [vmem:[#allocation4 + $0xe8] sm:$0xff]
        %v3780 = vld [vmem:[#allocation4 + $0xf8] sm:$0xff]
        %v3781 = vld [vmem:[#allocation4 + $0x8] sm:$0xff]
        %v3782 = vld [vmem:[#allocation4 + $0x18] sm:$0xff]
        %v3783 = vld [vmem:[#allocation4 + $0x28] sm:$0xff]
        %v3784 = vld [vmem:[#allocation4 + $0x38] sm:$0xff]
        %v3785 = vld [vmem:[#allocation4 + $0x48] sm:$0xff]
        %v3786 = vld [vmem:[#allocation4 + $0x58] sm:$0xff]
        %v3787 = vld [vmem:[#allocation4 + $0x68] sm:$0xff]
        %v3788 = vld [vmem:[#allocation4 + $0x78] sm:$0xff]
        %3797 = vrot.lane.b32.xlu0 %v3781, 64
        %v3798 = vpop.permute.xlu0 %3797
        %3799 = vrot.lane.b32.xlu0 %v3782, 64
        %v3800 = vpop.permute.xlu0 %3799
        %3801 = vrot.lane.b32.xlu0 %v3783, 64
        %v3802 = vpop.permute.xlu0 %3801
        %3803 = vrot.lane.b32.xlu0 %v3784, 64
        %v3804 = vpop.permute.xlu0 %3803
        %3805 = vrot.lane.b32.xlu0 %v3785, 64
        %v3806 = vpop.permute.xlu0 %3805
        %3807 = vrot.lane.b32.xlu0 %v3786, 64
        %v3808 = vpop.permute.xlu0 %3807
        %3809 = vrot.lane.b32.xlu0 %v3787, 64
        %v3810 = vpop.permute.xlu0 %3809
        %3811 = vrot.lane.b32.xlu0 %v3788, 64
        %v3812 = vpop.permute.xlu0 %3811
        %v3821 = vadd.f32 %v3773, %v3798
        %v3822 = vadd.f32 %v3774, %v3800
        %v3823 = vadd.f32 %v3775, %v3802
        %v3824 = vadd.f32 %v3776, %v3804
        %v3825 = vadd.f32 %v3777, %v3806
        %v3826 = vadd.f32 %v3778, %v3808
        %v3827 = vadd.f32 %v3779, %v3810
        %v3828 = vadd.f32 %v3780, %v3812
        %3837 = vrot.lane.b32.xlu0 %v3821, 64
        %v3838 = vpop.permute.xlu0 %3837
        %3839 = vrot.lane.b32.xlu0 %v3822, 64
        %v3840 = vpop.permute.xlu0 %3839
        %3841 = vrot.lane.b32.xlu0 %v3823, 64
        %v3842 = vpop.permute.xlu0 %3841
        %3843 = vrot.lane.b32.xlu0 %v3824, 64
        %v3844 = vpop.permute.xlu0 %3843
        %3845 = vrot.lane.b32.xlu0 %v3825, 64
        %v3846 = vpop.permute.xlu0 %3845
        %3847 = vrot.lane.b32.xlu0 %v3826, 64
        %v3848 = vpop.permute.xlu0 %3847
        %3849 = vrot.lane.b32.xlu0 %v3827, 64
        %v3850 = vpop.permute.xlu0 %3849
        %3851 = vrot.lane.b32.xlu0 %v3828, 64
        %v3852 = vpop.permute.xlu0 %3851
        %s3861 = scalar_lea.vmem [#allocation5], 192
        %3862 = vst.msk [vmem:[%s3861] sm:$0xff] %vm450, %v3838
        %3863 = vst.msk [vmem:[%s3861 + $0x8] sm:$0xff] %vm450, %v3840
        %3864 = vst.msk [vmem:[%s3861 + $0x10] sm:$0xff] %vm450, %v3842
        %3865 = vst.msk [vmem:[%s3861 + $0x18] sm:$0xff] %vm450, %v3844
        %3866 = vst.msk [vmem:[%s3861 + $0x20] sm:$0xff] %vm450, %v3846
        %3867 = vst.msk [vmem:[%s3861 + $0x28] sm:$0xff] %vm450, %v3848
        %3868 = vst.msk [vmem:[%s3861 + $0x30] sm:$0xff] %vm450, %v3850
        %3869 = vst.msk [vmem:[%s3861 + $0x38] sm:$0xff] %vm450, %v3852
        %v3870 = vld [vmem:[#allocation5] sm:$0xff]
        %v3871 = vld [vmem:[#allocation5 + $0x8] sm:$0xff]
        %v3872 = vld [vmem:[#allocation5 + $0x10] sm:$0xff]
        %v3873 = vld [vmem:[#allocation5 + $0x18] sm:$0xff]
        %v3874 = vld [vmem:[#allocation5 + $0x20] sm:$0xff]
        %v3875 = vld [vmem:[#allocation5 + $0x28] sm:$0xff]
        %v3876 = vld [vmem:[#allocation5 + $0x30] sm:$0xff]
        %v3877 = vld [vmem:[#allocation5 + $0x38] sm:$0xff]
        %v3878 = vmul.f32 %v3870, %v3874
        %v3879 = vmul.f32 %v3871, %v3875
        %v3880 = vmul.f32 %v3872, %v3876
        %v3881 = vmul.f32 %v3873, %v3877
        %v3882 = vsel %vm450, %v3878, 0.0
        %3883 = vadd.xlane.f32.xlu0 %v3882
        %v3884 = vpop.xlane.xlu0 %3883
        %v3885 = vsel %vm450, %v3879, 0.0
        %3886 = vadd.xlane.f32.xlu0 %v3885
        %v3887 = vpop.xlane.xlu0 %3886
        %v3888 = vsel %vm450, %v3880, 0.0
        %3889 = vadd.xlane.f32.xlu0 %v3888
        %v3890 = vpop.xlane.xlu0 %3889
        %v3891 = vsel %vm450, %v3881, 0.0
        %3892 = vadd.xlane.f32.xlu0 %v3891
        %v3893 = vpop.xlane.xlu0 %3892
        %v3894 = vadd.f32 %v3884, %v3887
        %v3895 = vadd.f32 %v3894, %v3890
        %v3896 = vadd.f32 %v3895, %v3893
        %v3897 = vrot.slane %v3896, 4
        %v3898 = vadd.f32 %v3896, %v3897
        %v3899 = vrot.slane %v3898, 2
        %v3900 = vadd.f32 %v3898, %v3899
        %v3901 = vrot.slane %v3900, 1
        %v3902 = vadd.f32 %v3900, %v3901
        %v3903 = vld [vmem:[%s3651 + $0x20] sm:$0xff]
        %v3904 = vld [vmem:[%s3651 + $0x28] sm:$0xff]
        %v3905 = vld [vmem:[%s3651 + $0x30] sm:$0xff]
        %v3906 = vld [vmem:[%s3651 + $0x38] sm:$0xff]
        %v3907 = vmul.f32 %v3870, %v3903
        %v3908 = vmul.f32 %v3871, %v3904
        %v3909 = vmul.f32 %v3872, %v3905
        %v3910 = vmul.f32 %v3873, %v3906
        %v3911 = vsel %vm450, %v3907, 0.0
        %3912 = vadd.xlane.f32.xlu0 %v3911
        %v3913 = vpop.xlane.xlu0 %3912
        %v3914 = vsel %vm450, %v3908, 0.0
        %3915 = vadd.xlane.f32.xlu0 %v3914
        %v3916 = vpop.xlane.xlu0 %3915
        %v3917 = vsel %vm450, %v3909, 0.0
        %3918 = vadd.xlane.f32.xlu0 %v3917
        %v3919 = vpop.xlane.xlu0 %3918
        %v3920 = vsel %vm450, %v3910, 0.0
        %3921 = vadd.xlane.f32.xlu0 %v3920
        %v3922 = vpop.xlane.xlu0 %3921
        %v3923 = vadd.f32 %v3913, %v3916
        %v3924 = vadd.f32 %v3923, %v3919
        %v3925 = vadd.f32 %v3924, %v3922
        %v3926 = vrot.slane %v3925, 4
        %v3927 = vadd.f32 %v3925, %v3926
        %v3928 = vrot.slane %v3927, 2
        %v3929 = vadd.f32 %v3927, %v3928
        %v3930 = vrot.slane %v3929, 1
        %v3931 = vadd.f32 %v3929, %v3930
        %v3932 = vld [vmem:[%s3764 + $0x20] sm:$0xff]
        %v3933 = vld [vmem:[%s3764 + $0x28] sm:$0xff]
        %v3934 = vld [vmem:[%s3764 + $0x30] sm:$0xff]
        %v3935 = vld [vmem:[%s3764 + $0x38] sm:$0xff]
        %v3936 = vmul.f32 %v3870, %v3932
        %v3937 = vmul.f32 %v3871, %v3933
        %v3938 = vmul.f32 %v3872, %v3934
        %v3939 = vmul.f32 %v3873, %v3935
        %v3940 = vsel %vm450, %v3936, 0.0
        %3941 = vadd.xlane.f32.xlu0 %v3940
        %v3942 = vpop.xlane.xlu0 %3941
        %v3943 = vsel %vm450, %v3937, 0.0
        %3944 = vadd.xlane.f32.xlu0 %v3943
        %v3945 = vpop.xlane.xlu0 %3944
        %v3946 = vsel %vm450, %v3938, 0.0
        %3947 = vadd.xlane.f32.xlu0 %v3946
        %v3948 = vpop.xlane.xlu0 %3947
        %v3949 = vsel %vm450, %v3939, 0.0
        %3950 = vadd.xlane.f32.xlu0 %v3949
        %v3951 = vpop.xlane.xlu0 %3950
        %v3952 = vadd.f32 %v3942, %v3945
        %v3953 = vadd.f32 %v3952, %v3948
        %v3954 = vadd.f32 %v3953, %v3951
        %v3955 = vrot.slane %v3954, 4
        %v3956 = vadd.f32 %v3954, %v3955
        %v3957 = vrot.slane %v3956, 2
        %v3958 = vadd.f32 %v3956, %v3957
        %v3959 = vrot.slane %v3958, 1
        %v3960 = vadd.f32 %v3958, %v3959
        %v3961 = vld [vmem:[%s3861 + $0x20] sm:$0xff]
        %v3962 = vld [vmem:[%s3861 + $0x28] sm:$0xff]
        %v3963 = vld [vmem:[%s3861 + $0x30] sm:$0xff]
        %v3964 = vld [vmem:[%s3861 + $0x38] sm:$0xff]
        %v3965 = vmul.f32 %v3870, %v3961
        %v3966 = vmul.f32 %v3871, %v3962
        %v3967 = vmul.f32 %v3872, %v3963
        %v3968 = vmul.f32 %v3873, %v3964
        %v3969 = vsel %vm450, %v3965, 0.0
        %3970 = vadd.xlane.f32.xlu0 %v3969
        %v3971 = vpop.xlane.xlu0 %3970
        %v3972 = vsel %vm450, %v3966, 0.0
        %3973 = vadd.xlane.f32.xlu0 %v3972
        %v3974 = vpop.xlane.xlu0 %3973
        %v3975 = vsel %vm450, %v3967, 0.0
        %3976 = vadd.xlane.f32.xlu0 %v3975
        %v3977 = vpop.xlane.xlu0 %3976
        %v3978 = vsel %vm450, %v3968, 0.0
        %3979 = vadd.xlane.f32.xlu0 %v3978
        %v3980 = vpop.xlane.xlu0 %3979
        %v3981 = vadd.f32 %v3971, %v3974
        %v3982 = vadd.f32 %v3981, %v3977
        %v3983 = vadd.f32 %v3982, %v3980
        %v3984 = vrot.slane %v3983, 4
        %v3985 = vadd.f32 %v3983, %v3984
        %v3986 = vrot.slane %v3985, 2
        %v3987 = vadd.f32 %v3985, %v3986
        %v3988 = vrot.slane %v3987, 1
        %v3989 = vadd.f32 %v3987, %v3988
        %v3990 = vmax.f32 %v3902, %v3931
        %v3991 = vmax.f32 %v3990, %v3960
        %v3992 = vmax.f32 %v3991, %v3989
        %v3993 = vsub.f32 %v3902, %v3992
        %v3994 = vmul.f32 %v3993, 1.442695
        %v3995 = vpow.pop %v3994
        %v3996 = vsub.f32 %v3931, %v3992
        %v3997 = vmul.f32 %v3996, 1.442695
        %v3998 = vpow.pop %v3997
        %v3999 = vsub.f32 %v3960, %v3992
        %v4000 = vmul.f32 %v3999, 1.442695
        %v4001 = vpow.pop %v4000
        %v4002 = vsub.f32 %v3989, %v3992
        %v4003 = vmul.f32 %v4002, 1.442695
        %v4004 = vpow.pop %v4003
        %v4005 = vadd.f32 %v3995, %v3998
        %v4006 = vadd.f32 %v4005, %v4001
        %v4007 = vadd.f32 %v4006, %v4004
        %v4008 = vrcp.pop %v4007
        %v4009 = vmul.f32 %v3995, %v4008
        %v4010 = vld [vmem:[#allocation2 + $0x20] sm:$0xff]
        %v4011 = vld [vmem:[#allocation2 + $0x28] sm:$0xff]
        %v4012 = vunpack.c.l.bf16 %v4010
        %v4013 = vunpack.c.h.bf16 %v4010
        %v4014 = vunpack.c.l.bf16 %v4011
        %v4015 = vunpack.c.h.bf16 %v4011
        %v4016 = vmul.f32 %v4009, %v4012
        %v4017 = vmul.f32 %v4009, %v4013
        %v4018 = vmul.f32 %v4009, %v4014
        %v4019 = vmul.f32 %v4009, %v4015
        %v4020 = vmul.f32 %v3998, %v4008
        %v4021 = vld [vmem:[%s1139 + $0x20] sm:$0xff]
        %v4022 = vld [vmem:[%s1139 + $0x28] sm:$0xff]
        %v4023 = vunpack.c.l.bf16 %v4021
        %v4024 = vunpack.c.h.bf16 %v4021
        %v4025 = vunpack.c.l.bf16 %v4022
        %v4026 = vunpack.c.h.bf16 %v4022
        %v4027 = vmul.f32 %v4020, %v4023
        %v4028 = vmul.f32 %v4020, %v4024
        %v4029 = vmul.f32 %v4020, %v4025
        %v4030 = vmul.f32 %v4020, %v4026
        %v4031 = vadd.f32 %v4016, %v4027
        %v4032 = vadd.f32 %v4017, %v4028
        %v4033 = vadd.f32 %v4018, %v4029
        %v4034 = vadd.f32 %v4019, %v4030
        %v4035 = vmul.f32 %v4001, %v4008
        %v4036 = vld [vmem:[%s1837 + $0x20] sm:$0xff]
        %v4037 = vld [vmem:[%s1837 + $0x28] sm:$0xff]
        %v4038 = vunpack.c.l.bf16 %v4036
        %v4039 = vunpack.c.h.bf16 %v4036
        %v4040 = vunpack.c.l.bf16 %v4037
        %v4041 = vunpack.c.h.bf16 %v4037
        %v4042 = vmul.f32 %v4035, %v4038
        %v4043 = vmul.f32 %v4035, %v4039
        %v4044 = vmul.f32 %v4035, %v4040
        %v4045 = vmul.f32 %v4035, %v4041
        %v4046 = vadd.f32 %v4031, %v4042
        %v4047 = vadd.f32 %v4032, %v4043
        %v4048 = vadd.f32 %v4033, %v4044
        %v4049 = vadd.f32 %v4034, %v4045
        %v4050 = vmul.f32 %v4004, %v4008
        %v4051 = vld [vmem:[%s2526 + $0x20] sm:$0xff]
        %v4052 = vld [vmem:[%s2526 + $0x28] sm:$0xff]
        %v4053 = vunpack.c.l.bf16 %v4051
        %v4054 = vunpack.c.h.bf16 %v4051
        %v4055 = vunpack.c.l.bf16 %v4052
        %v4056 = vunpack.c.h.bf16 %v4052
        %v4057 = vmul.f32 %v4050, %v4053
        %v4058 = vmul.f32 %v4050, %v4054
        %v4059 = vmul.f32 %v4050, %v4055
        %v4060 = vmul.f32 %v4050, %v4056
        %v4061 = vadd.f32 %v4046, %v4057
        %v4062 = vadd.f32 %v4047, %v4058
        %v4063 = vadd.f32 %v4048, %v4059
        %v4064 = vadd.f32 %v4049, %v4060
        %4065 = vst.msk [vmem:[%s217] sm:$0xff] %vm450, %v4061
        %4066 = vst.msk [vmem:[%s217 + $0x8] sm:$0xff] %vm450, %v4062
        %4067 = vst.msk [vmem:[%s217 + $0x10] sm:$0xff] %vm450, %v4063
        %4068 = vst.msk [vmem:[%s217 + $0x18] sm:$0xff] %vm450, %v4064
        %v4069 = vld [vmem:[%s3651] sm:$0xff]
        %v4070 = vld [vmem:[%s3651 + $0x8] sm:$0xff]
        %v4071 = vld [vmem:[%s3651 + $0x10] sm:$0xff]
        %v4072 = vld [vmem:[%s3651 + $0x18] sm:$0xff]
        %v4073 = vld [vmem:[#allocation5 + $0x20] sm:$0xff]
        %v4074 = vld [vmem:[#allocation5 + $0x28] sm:$0xff]
        %v4075 = vld [vmem:[#allocation5 + $0x30] sm:$0xff]
        %v4076 = vld [vmem:[#allocation5 + $0x38] sm:$0xff]
        %v4077 = vmul.f32 %v4069, %v4073
        %v4078 = vmul.f32 %v4070, %v4074
        %v4079 = vmul.f32 %v4071, %v4075
        %v4080 = vmul.f32 %v4072, %v4076
        %v4081 = vsel %vm450, %v4077, 0.0
        %4082 = vadd.xlane.f32.xlu0 %v4081
        %v4083 = vpop.xlane.xlu0 %4082
        %v4084 = vsel %vm450, %v4078, 0.0
        %4085 = vadd.xlane.f32.xlu0 %v4084
        %v4086 = vpop.xlane.xlu0 %4085
        %v4087 = vsel %vm450, %v4079, 0.0
        %4088 = vadd.xlane.f32.xlu0 %v4087
        %v4089 = vpop.xlane.xlu0 %4088
        %v4090 = vsel %vm450, %v4080, 0.0
        %4091 = vadd.xlane.f32.xlu0 %v4090
        %v4092 = vpop.xlane.xlu0 %4091
        %v4093 = vadd.f32 %v4083, %v4086
        %v4094 = vadd.f32 %v4093, %v4089
        %v4095 = vadd.f32 %v4094, %v4092
        %v4096 = vrot.slane %v4095, 4
        %v4097 = vadd.f32 %v4095, %v4096
        %v4098 = vrot.slane %v4097, 2
        %v4099 = vadd.f32 %v4097, %v4098
        %v4100 = vrot.slane %v4099, 1
        %v4101 = vadd.f32 %v4099, %v4100
        %v4102 = vld [vmem:[%s3651 + $0x20] sm:$0xff]
        %v4103 = vld [vmem:[%s3651 + $0x28] sm:$0xff]
        %v4104 = vld [vmem:[%s3651 + $0x30] sm:$0xff]
        %v4105 = vld [vmem:[%s3651 + $0x38] sm:$0xff]
        %v4106 = vmul.f32 %v4069, %v4102
        %v4107 = vmul.f32 %v4070, %v4103
        %v4108 = vmul.f32 %v4071, %v4104
        %v4109 = vmul.f32 %v4072, %v4105
        %v4110 = vsel %vm450, %v4106, 0.0
        %4111 = vadd.xlane.f32.xlu0 %v4110
        %v4112 = vpop.xlane.xlu0 %4111
        %v4113 = vsel %vm450, %v4107, 0.0
        %4114 = vadd.xlane.f32.xlu0 %v4113
        %v4115 = vpop.xlane.xlu0 %4114
        %v4116 = vsel %vm450, %v4108, 0.0
        %4117 = vadd.xlane.f32.xlu0 %v4116
        %v4118 = vpop.xlane.xlu0 %4117
        %v4119 = vsel %vm450, %v4109, 0.0
        %4120 = vadd.xlane.f32.xlu0 %v4119
        %v4121 = vpop.xlane.xlu0 %4120
        %v4122 = vadd.f32 %v4112, %v4115
        %v4123 = vadd.f32 %v4122, %v4118
        %v4124 = vadd.f32 %v4123, %v4121
        %v4125 = vrot.slane %v4124, 4
        %v4126 = vadd.f32 %v4124, %v4125
        %v4127 = vrot.slane %v4126, 2
        %v4128 = vadd.f32 %v4126, %v4127
        %v4129 = vrot.slane %v4128, 1
        %v4130 = vadd.f32 %v4128, %v4129
        %v4131 = vld [vmem:[%s3764 + $0x20] sm:$0xff]
        %v4132 = vld [vmem:[%s3764 + $0x28] sm:$0xff]
        %v4133 = vld [vmem:[%s3764 + $0x30] sm:$0xff]
        %v4134 = vld [vmem:[%s3764 + $0x38] sm:$0xff]
        %v4135 = vmul.f32 %v4069, %v4131
        %v4136 = vmul.f32 %v4070, %v4132
        %v4137 = vmul.f32 %v4071, %v4133
        %v4138 = vmul.f32 %v4072, %v4134
        %v4139 = vsel %vm450, %v4135, 0.0
        %4140 = vadd.xlane.f32.xlu0 %v4139
        %v4141 = vpop.xlane.xlu0 %4140
        %v4142 = vsel %vm450, %v4136, 0.0
        %4143 = vadd.xlane.f32.xlu0 %v4142
        %v4144 = vpop.xlane.xlu0 %4143
        %v4145 = vsel %vm450, %v4137, 0.0
        %4146 = vadd.xlane.f32.xlu0 %v4145
        %v4147 = vpop.xlane.xlu0 %4146
        %v4148 = vsel %vm450, %v4138, 0.0
        %4149 = vadd.xlane.f32.xlu0 %v4148
        %v4150 = vpop.xlane.xlu0 %4149
        %v4151 = vadd.f32 %v4141, %v4144
        %v4152 = vadd.f32 %v4151, %v4147
        %v4153 = vadd.f32 %v4152, %v4150
        %v4154 = vrot.slane %v4153, 4
        %v4155 = vadd.f32 %v4153, %v4154
        %v4156 = vrot.slane %v4155, 2
        %v4157 = vadd.f32 %v4155, %v4156
        %v4158 = vrot.slane %v4157, 1
        %v4159 = vadd.f32 %v4157, %v4158
        %v4160 = vld [vmem:[%s3861 + $0x20] sm:$0xff]
        %v4161 = vld [vmem:[%s3861 + $0x28] sm:$0xff]
        %v4162 = vld [vmem:[%s3861 + $0x30] sm:$0xff]
        %v4163 = vld [vmem:[%s3861 + $0x38] sm:$0xff]
        %v4164 = vmul.f32 %v4069, %v4160
        %v4165 = vmul.f32 %v4070, %v4161
        %v4166 = vmul.f32 %v4071, %v4162
        %v4167 = vmul.f32 %v4072, %v4163
        %v4168 = vsel %vm450, %v4164, 0.0
        %4169 = vadd.xlane.f32.xlu0 %v4168
        %v4170 = vpop.xlane.xlu0 %4169
        %v4171 = vsel %vm450, %v4165, 0.0
        %4172 = vadd.xlane.f32.xlu0 %v4171
        %v4173 = vpop.xlane.xlu0 %4172
        %v4174 = vsel %vm450, %v4166, 0.0
        %4175 = vadd.xlane.f32.xlu0 %v4174
        %v4176 = vpop.xlane.xlu0 %4175
        %v4177 = vsel %vm450, %v4167, 0.0
        %4178 = vadd.xlane.f32.xlu0 %v4177
        %v4179 = vpop.xlane.xlu0 %4178
        %v4180 = vadd.f32 %v4170, %v4173
        %v4181 = vadd.f32 %v4180, %v4176
        %v4182 = vadd.f32 %v4181, %v4179
        %v4183 = vrot.slane %v4182, 4
        %v4184 = vadd.f32 %v4182, %v4183
        %v4185 = vrot.slane %v4184, 2
        %v4186 = vadd.f32 %v4184, %v4185
        %v4187 = vrot.slane %v4186, 1
        %v4188 = vadd.f32 %v4186, %v4187
        %v4189 = vmax.f32 %v4101, %v4130
        %v4190 = vmax.f32 %v4189, %v4159
        %v4191 = vmax.f32 %v4190, %v4188
        %v4192 = vsub.f32 %v4101, %v4191
        %v4193 = vmul.f32 %v4192, 1.442695
        %v4194 = vpow.pop %v4193
        %v4195 = vsub.f32 %v4130, %v4191
        %v4196 = vmul.f32 %v4195, 1.442695
        %v4197 = vpow.pop %v4196
        %v4198 = vsub.f32 %v4159, %v4191
        %v4199 = vmul.f32 %v4198, 1.442695
        %v4200 = vpow.pop %v4199
        %v4201 = vsub.f32 %v4188, %v4191
        %v4202 = vmul.f32 %v4201, 1.442695
        %v4203 = vpow.pop %v4202
        %v4204 = vadd.f32 %v4194, %v4197
        %v4205 = vadd.f32 %v4204, %v4200
        %v4206 = vadd.f32 %v4205, %v4203
        %v4207 = vrcp.pop %v4206
        %v4208 = vmul.f32 %v4194, %v4207
        %v4209 = vld [vmem:[#allocation2 + $0x20] sm:$0xff]
        %v4210 = vld [vmem:[#allocation2 + $0x28] sm:$0xff]
        %v4211 = vunpack.c.l.bf16 %v4209
        %v4212 = vunpack.c.h.bf16 %v4209
        %v4213 = vunpack.c.l.bf16 %v4210
        %v4214 = vunpack.c.h.bf16 %v4210
        %v4215 = vmul.f32 %v4208, %v4211
        %v4216 = vmul.f32 %v4208, %v4212
        %v4217 = vmul.f32 %v4208, %v4213
        %v4218 = vmul.f32 %v4208, %v4214
        %v4219 = vmul.f32 %v4197, %v4207
        %v4220 = vld [vmem:[%s1139 + $0x20] sm:$0xff]
        %v4221 = vld [vmem:[%s1139 + $0x28] sm:$0xff]
        %v4222 = vunpack.c.l.bf16 %v4220
        %v4223 = vunpack.c.h.bf16 %v4220
        %v4224 = vunpack.c.l.bf16 %v4221
        %v4225 = vunpack.c.h.bf16 %v4221
        %v4226 = vmul.f32 %v4219, %v4222
        %v4227 = vmul.f32 %v4219, %v4223
        %v4228 = vmul.f32 %v4219, %v4224
        %v4229 = vmul.f32 %v4219, %v4225
        %v4230 = vadd.f32 %v4215, %v4226
        %v4231 = vadd.f32 %v4216, %v4227
        %v4232 = vadd.f32 %v4217, %v4228
        %v4233 = vadd.f32 %v4218, %v4229
        %v4234 = vmul.f32 %v4200, %v4207
        %v4235 = vld [vmem:[%s1837 + $0x20] sm:$0xff]
        %v4236 = vld [vmem:[%s1837 + $0x28] sm:$0xff]
        %v4237 = vunpack.c.l.bf16 %v4235
        %v4238 = vunpack.c.h.bf16 %v4235
        %v4239 = vunpack.c.l.bf16 %v4236
        %v4240 = vunpack.c.h.bf16 %v4236
        %v4241 = vmul.f32 %v4234, %v4237
        %v4242 = vmul.f32 %v4234, %v4238
        %v4243 = vmul.f32 %v4234, %v4239
        %v4244 = vmul.f32 %v4234, %v4240
        %v4245 = vadd.f32 %v4230, %v4241
        %v4246 = vadd.f32 %v4231, %v4242
        %v4247 = vadd.f32 %v4232, %v4243
        %v4248 = vadd.f32 %v4233, %v4244
        %v4249 = vmul.f32 %v4203, %v4207
        %v4250 = vld [vmem:[%s2526 + $0x20] sm:$0xff]
        %v4251 = vld [vmem:[%s2526 + $0x28] sm:$0xff]
        %v4252 = vunpack.c.l.bf16 %v4250
        %v4253 = vunpack.c.h.bf16 %v4250
        %v4254 = vunpack.c.l.bf16 %v4251
        %v4255 = vunpack.c.h.bf16 %v4251
        %v4256 = vmul.f32 %v4249, %v4252
        %v4257 = vmul.f32 %v4249, %v4253
        %v4258 = vmul.f32 %v4249, %v4254
        %v4259 = vmul.f32 %v4249, %v4255
        %v4260 = vadd.f32 %v4245, %v4256
        %v4261 = vadd.f32 %v4246, %v4257
        %v4262 = vadd.f32 %v4247, %v4258
        %v4263 = vadd.f32 %v4248, %v4259
        %s4264 = scalar_lea.vmem %s217, 32 [#allocation6]
        %4265 = vst.msk [vmem:[%s4264] sm:$0xff] %vm450, %v4260
        %4266 = vst.msk [vmem:[%s4264 + $0x8] sm:$0xff] %vm450, %v4261
        %4267 = vst.msk [vmem:[%s4264 + $0x10] sm:$0xff] %vm450, %v4262
        %4268 = vst.msk [vmem:[%s4264 + $0x18] sm:$0xff] %vm450, %v4263
        %v4269 = vld [vmem:[%s3764] sm:$0xff]
        %v4270 = vld [vmem:[%s3764 + $0x8] sm:$0xff]
        %v4271 = vld [vmem:[%s3764 + $0x10] sm:$0xff]
        %v4272 = vld [vmem:[%s3764 + $0x18] sm:$0xff]
        %v4273 = vld [vmem:[#allocation5 + $0x20] sm:$0xff]
        %v4274 = vld [vmem:[#allocation5 + $0x28] sm:$0xff]
        %v4275 = vld [vmem:[#allocation5 + $0x30] sm:$0xff]
        %v4276 = vld [vmem:[#allocation5 + $0x38] sm:$0xff]
        %v4277 = vmul.f32 %v4269, %v4273
        %v4278 = vmul.f32 %v4270, %v4274
        %v4279 = vmul.f32 %v4271, %v4275
        %v4280 = vmul.f32 %v4272, %v4276
        %v4281 = vsel %vm450, %v4277, 0.0
        %4282 = vadd.xlane.f32.xlu0 %v4281
        %v4283 = vpop.xlane.xlu0 %4282
        %v4284 = vsel %vm450, %v4278, 0.0
        %4285 = vadd.xlane.f32.xlu0 %v4284
        %v4286 = vpop.xlane.xlu0 %4285
        %v4287 = vsel %vm450, %v4279, 0.0
        %4288 = vadd.xlane.f32.xlu0 %v4287
        %v4289 = vpop.xlane.xlu0 %4288
        %v4290 = vsel %vm450, %v4280, 0.0
        %4291 = vadd.xlane.f32.xlu0 %v4290
        %v4292 = vpop.xlane.xlu0 %4291
        %v4293 = vadd.f32 %v4283, %v4286
        %v4294 = vadd.f32 %v4293, %v4289
        %v4295 = vadd.f32 %v4294, %v4292
        %v4296 = vrot.slane %v4295, 4
        %v4297 = vadd.f32 %v4295, %v4296
        %v4298 = vrot.slane %v4297, 2
        %v4299 = vadd.f32 %v4297, %v4298
        %v4300 = vrot.slane %v4299, 1
        %v4301 = vadd.f32 %v4299, %v4300
        %v4302 = vld [vmem:[%s3651 + $0x20] sm:$0xff]
        %v4303 = vld [vmem:[%s3651 + $0x28] sm:$0xff]
        %v4304 = vld [vmem:[%s3651 + $0x30] sm:$0xff]
        %v4305 = vld [vmem:[%s3651 + $0x38] sm:$0xff]
        %v4306 = vmul.f32 %v4269, %v4302
        %v4307 = vmul.f32 %v4270, %v4303
        %v4308 = vmul.f32 %v4271, %v4304
        %v4309 = vmul.f32 %v4272, %v4305
        %v4310 = vsel %vm450, %v4306, 0.0
        %4311 = vadd.xlane.f32.xlu0 %v4310
        %v4312 = vpop.xlane.xlu0 %4311
        %v4313 = vsel %vm450, %v4307, 0.0
        %4314 = vadd.xlane.f32.xlu0 %v4313
        %v4315 = vpop.xlane.xlu0 %4314
        %v4316 = vsel %vm450, %v4308, 0.0
        %4317 = vadd.xlane.f32.xlu0 %v4316
        %v4318 = vpop.xlane.xlu0 %4317
        %v4319 = vsel %vm450, %v4309, 0.0
        %4320 = vadd.xlane.f32.xlu0 %v4319
        %v4321 = vpop.xlane.xlu0 %4320
        %v4322 = vadd.f32 %v4312, %v4315
        %v4323 = vadd.f32 %v4322, %v4318
        %v4324 = vadd.f32 %v4323, %v4321
        %v4325 = vrot.slane %v4324, 4
        %v4326 = vadd.f32 %v4324, %v4325
        %v4327 = vrot.slane %v4326, 2
        %v4328 = vadd.f32 %v4326, %v4327
        %v4329 = vrot.slane %v4328, 1
        %v4330 = vadd.f32 %v4328, %v4329
        %v4331 = vld [vmem:[%s3764 + $0x20] sm:$0xff]
        %v4332 = vld [vmem:[%s3764 + $0x28] sm:$0xff]
        %v4333 = vld [vmem:[%s3764 + $0x30] sm:$0xff]
        %v4334 = vld [vmem:[%s3764 + $0x38] sm:$0xff]
        %v4335 = vmul.f32 %v4269, %v4331
        %v4336 = vmul.f32 %v4270, %v4332
        %v4337 = vmul.f32 %v4271, %v4333
        %v4338 = vmul.f32 %v4272, %v4334
        %v4339 = vsel %vm450, %v4335, 0.0
        %4340 = vadd.xlane.f32.xlu0 %v4339
        %v4341 = vpop.xlane.xlu0 %4340
        %v4342 = vsel %vm450, %v4336, 0.0
        %4343 = vadd.xlane.f32.xlu0 %v4342
        %v4344 = vpop.xlane.xlu0 %4343
        %v4345 = vsel %vm450, %v4337, 0.0
        %4346 = vadd.xlane.f32.xlu0 %v4345
        %v4347 = vpop.xlane.xlu0 %4346
        %v4348 = vsel %vm450, %v4338, 0.0
        %4349 = vadd.xlane.f32.xlu0 %v4348
        %v4350 = vpop.xlane.xlu0 %4349
        %v4351 = vadd.f32 %v4341, %v4344
        %v4352 = vadd.f32 %v4351, %v4347
        %v4353 = vadd.f32 %v4352, %v4350
        %v4354 = vrot.slane %v4353, 4
        %v4355 = vadd.f32 %v4353, %v4354
        %v4356 = vrot.slane %v4355, 2
        %v4357 = vadd.f32 %v4355, %v4356
        %v4358 = vrot.slane %v4357, 1
        %v4359 = vadd.f32 %v4357, %v4358
        %v4360 = vld [vmem:[%s3861 + $0x20] sm:$0xff]
        %v4361 = vld [vmem:[%s3861 + $0x28] sm:$0xff]
        %v4362 = vld [vmem:[%s3861 + $0x30] sm:$0xff]
        %v4363 = vld [vmem:[%s3861 + $0x38] sm:$0xff]
        %v4364 = vmul.f32 %v4269, %v4360
        %v4365 = vmul.f32 %v4270, %v4361
        %v4366 = vmul.f32 %v4271, %v4362
        %v4367 = vmul.f32 %v4272, %v4363
        %v4368 = vsel %vm450, %v4364, 0.0
        %4369 = vadd.xlane.f32.xlu0 %v4368
        %v4370 = vpop.xlane.xlu0 %4369
        %v4371 = vsel %vm450, %v4365, 0.0
        %4372 = vadd.xlane.f32.xlu0 %v4371
        %v4373 = vpop.xlane.xlu0 %4372
        %v4374 = vsel %vm450, %v4366, 0.0
        %4375 = vadd.xlane.f32.xlu0 %v4374
        %v4376 = vpop.xlane.xlu0 %4375
        %v4377 = vsel %vm450, %v4367, 0.0
        %4378 = vadd.xlane.f32.xlu0 %v4377
        %v4379 = vpop.xlane.xlu0 %4378
        %v4380 = vadd.f32 %v4370, %v4373
        %v4381 = vadd.f32 %v4380, %v4376
        %v4382 = vadd.f32 %v4381, %v4379
        %v4383 = vrot.slane %v4382, 4
        %v4384 = vadd.f32 %v4382, %v4383
        %v4385 = vrot.slane %v4384, 2
        %v4386 = vadd.f32 %v4384, %v4385
        %v4387 = vrot.slane %v4386, 1
        %v4388 = vadd.f32 %v4386, %v4387
        %v4389 = vmax.f32 %v4301, %v4330
        %v4390 = vmax.f32 %v4389, %v4359
        %v4391 = vmax.f32 %v4390, %v4388
        %v4392 = vsub.f32 %v4301, %v4391
        %v4393 = vmul.f32 %v4392, 1.442695
        %v4394 = vpow.pop %v4393
        %v4395 = vsub.f32 %v4330, %v4391
        %v4396 = vmul.f32 %v4395, 1.442695
        %v4397 = vpow.pop %v4396
        %v4398 = vsub.f32 %v4359, %v4391
        %v4399 = vmul.f32 %v4398, 1.442695
        %v4400 = vpow.pop %v4399
        %v4401 = vsub.f32 %v4388, %v4391
        %v4402 = vmul.f32 %v4401, 1.442695
        %v4403 = vpow.pop %v4402
        %v4404 = vadd.f32 %v4394, %v4397
        %v4405 = vadd.f32 %v4404, %v4400
        %v4406 = vadd.f32 %v4405, %v4403
        %v4407 = vrcp.pop %v4406
        %v4408 = vmul.f32 %v4394, %v4407
        %v4409 = vld [vmem:[#allocation2 + $0x20] sm:$0xff]
        %v4410 = vld [vmem:[#allocation2 + $0x28] sm:$0xff]
        %v4411 = vunpack.c.l.bf16 %v4409
        %v4412 = vunpack.c.h.bf16 %v4409
        %v4413 = vunpack.c.l.bf16 %v4410
        %v4414 = vunpack.c.h.bf16 %v4410
        %v4415 = vmul.f32 %v4408, %v4411
        %v4416 = vmul.f32 %v4408, %v4412
        %v4417 = vmul.f32 %v4408, %v4413
        %v4418 = vmul.f32 %v4408, %v4414
        %v4419 = vmul.f32 %v4397, %v4407
        %v4420 = vld [vmem:[%s1139 + $0x20] sm:$0xff]
        %v4421 = vld [vmem:[%s1139 + $0x28] sm:$0xff]
        %v4422 = vunpack.c.l.bf16 %v4420
        %v4423 = vunpack.c.h.bf16 %v4420
        %v4424 = vunpack.c.l.bf16 %v4421
        %v4425 = vunpack.c.h.bf16 %v4421
        %v4426 = vmul.f32 %v4419, %v4422
        %v4427 = vmul.f32 %v4419, %v4423
        %v4428 = vmul.f32 %v4419, %v4424
        %v4429 = vmul.f32 %v4419, %v4425
        %v4430 = vadd.f32 %v4415, %v4426
        %v4431 = vadd.f32 %v4416, %v4427
        %v4432 = vadd.f32 %v4417, %v4428
        %v4433 = vadd.f32 %v4418, %v4429
        %v4434 = vmul.f32 %v4400, %v4407
        %v4435 = vld [vmem:[%s1837 + $0x20] sm:$0xff]
        %v4436 = vld [vmem:[%s1837 + $0x28] sm:$0xff]
        %v4437 = vunpack.c.l.bf16 %v4435
        %v4438 = vunpack.c.h.bf16 %v4435
        %v4439 = vunpack.c.l.bf16 %v4436
        %v4440 = vunpack.c.h.bf16 %v4436
        %v4441 = vmul.f32 %v4434, %v4437
        %v4442 = vmul.f32 %v4434, %v4438
        %v4443 = vmul.f32 %v4434, %v4439
        %v4444 = vmul.f32 %v4434, %v4440
        %v4445 = vadd.f32 %v4430, %v4441
        %v4446 = vadd.f32 %v4431, %v4442
        %v4447 = vadd.f32 %v4432, %v4443
        %v4448 = vadd.f32 %v4433, %v4444
        %v4449 = vmul.f32 %v4403, %v4407
        %v4450 = vld [vmem:[%s2526 + $0x20] sm:$0xff]
        %v4451 = vld [vmem:[%s2526 + $0x28] sm:$0xff]
        %v4452 = vunpack.c.l.bf16 %v4450
        %v4453 = vunpack.c.h.bf16 %v4450
        %v4454 = vunpack.c.l.bf16 %v4451
        %v4455 = vunpack.c.h.bf16 %v4451
        %v4456 = vmul.f32 %v4449, %v4452
        %v4457 = vmul.f32 %v4449, %v4453
        %v4458 = vmul.f32 %v4449, %v4454
        %v4459 = vmul.f32 %v4449, %v4455
        %v4460 = vadd.f32 %v4445, %v4456
        %v4461 = vadd.f32 %v4446, %v4457
        %v4462 = vadd.f32 %v4447, %v4458
        %v4463 = vadd.f32 %v4448, %v4459
        %s4464 = scalar_lea.vmem %s217, 64 [#allocation6]
        %4465 = vst.msk [vmem:[%s4464] sm:$0xff] %vm450, %v4460
        %4466 = vst.msk [vmem:[%s4464 + $0x8] sm:$0xff] %vm450, %v4461
        %4467 = vst.msk [vmem:[%s4464 + $0x10] sm:$0xff] %vm450, %v4462
        %4468 = vst.msk [vmem:[%s4464 + $0x18] sm:$0xff] %vm450, %v4463
        %v4469 = vld [vmem:[%s3861] sm:$0xff]
        %v4470 = vld [vmem:[%s3861 + $0x8] sm:$0xff]
        %v4471 = vld [vmem:[%s3861 + $0x10] sm:$0xff]
        %v4472 = vld [vmem:[%s3861 + $0x18] sm:$0xff]
        %v4473 = vld [vmem:[#allocation5 + $0x20] sm:$0xff]
        %v4474 = vld [vmem:[#allocation5 + $0x28] sm:$0xff]
        %v4475 = vld [vmem:[#allocation5 + $0x30] sm:$0xff]
        %v4476 = vld [vmem:[#allocation5 + $0x38] sm:$0xff]
        %v4477 = vmul.f32 %v4469, %v4473
        %v4478 = vmul.f32 %v4470, %v4474
        %v4479 = vmul.f32 %v4471, %v4475
        %v4480 = vmul.f32 %v4472, %v4476
        %v4481 = vsel %vm450, %v4477, 0.0
        %4482 = vadd.xlane.f32.xlu0 %v4481
        %v4483 = vpop.xlane.xlu0 %4482
        %v4484 = vsel %vm450, %v4478, 0.0
        %4485 = vadd.xlane.f32.xlu0 %v4484
        %v4486 = vpop.xlane.xlu0 %4485
        %v4487 = vsel %vm450, %v4479, 0.0
        %4488 = vadd.xlane.f32.xlu0 %v4487
        %v4489 = vpop.xlane.xlu0 %4488
        %v4490 = vsel %vm450, %v4480, 0.0
        %4491 = vadd.xlane.f32.xlu0 %v4490
        %v4492 = vpop.xlane.xlu0 %4491
        %v4493 = vadd.f32 %v4483, %v4486
        %v4494 = vadd.f32 %v4493, %v4489
        %v4495 = vadd.f32 %v4494, %v4492
        %v4496 = vrot.slane %v4495, 4
        %v4497 = vadd.f32 %v4495, %v4496
        %v4498 = vrot.slane %v4497, 2
        %v4499 = vadd.f32 %v4497, %v4498
        %v4500 = vrot.slane %v4499, 1
        %v4501 = vadd.f32 %v4499, %v4500
        %v4502 = vld [vmem:[%s3651 + $0x20] sm:$0xff]
        %v4503 = vld [vmem:[%s3651 + $0x28] sm:$0xff]
        %v4504 = vld [vmem:[%s3651 + $0x30] sm:$0xff]
        %v4505 = vld [vmem:[%s3651 + $0x38] sm:$0xff]
        %v4506 = vmul.f32 %v4469, %v4502
        %v4507 = vmul.f32 %v4470, %v4503
        %v4508 = vmul.f32 %v4471, %v4504
        %v4509 = vmul.f32 %v4472, %v4505
        %v4510 = vsel %vm450, %v4506, 0.0
        %4511 = vadd.xlane.f32.xlu0 %v4510
        %v4512 = vpop.xlane.xlu0 %4511
        %v4513 = vsel %vm450, %v4507, 0.0
        %4514 = vadd.xlane.f32.xlu0 %v4513
        %v4515 = vpop.xlane.xlu0 %4514
        %v4516 = vsel %vm450, %v4508, 0.0
        %4517 = vadd.xlane.f32.xlu0 %v4516
        %v4518 = vpop.xlane.xlu0 %4517
        %v4519 = vsel %vm450, %v4509, 0.0
        %4520 = vadd.xlane.f32.xlu0 %v4519
        %v4521 = vpop.xlane.xlu0 %4520
        %v4522 = vadd.f32 %v4512, %v4515
        %v4523 = vadd.f32 %v4522, %v4518
        %v4524 = vadd.f32 %v4523, %v4521
        %v4525 = vrot.slane %v4524, 4
        %v4526 = vadd.f32 %v4524, %v4525
        %v4527 = vrot.slane %v4526, 2
        %v4528 = vadd.f32 %v4526, %v4527
        %v4529 = vrot.slane %v4528, 1
        %v4530 = vadd.f32 %v4528, %v4529
        %v4531 = vld [vmem:[%s3764 + $0x20] sm:$0xff]
        %v4532 = vld [vmem:[%s3764 + $0x28] sm:$0xff]
        %v4533 = vld [vmem:[%s3764 + $0x30] sm:$0xff]
        %v4534 = vld [vmem:[%s3764 + $0x38] sm:$0xff]
        %v4535 = vmul.f32 %v4469, %v4531
        %v4536 = vmul.f32 %v4470, %v4532
        %v4537 = vmul.f32 %v4471, %v4533
        %v4538 = vmul.f32 %v4472, %v4534
        %v4539 = vsel %vm450, %v4535, 0.0
        %4540 = vadd.xlane.f32.xlu0 %v4539
        %v4541 = vpop.xlane.xlu0 %4540
        %v4542 = vsel %vm450, %v4536, 0.0
        %4543 = vadd.xlane.f32.xlu0 %v4542
        %v4544 = vpop.xlane.xlu0 %4543
        %v4545 = vsel %vm450, %v4537, 0.0
        %4546 = vadd.xlane.f32.xlu0 %v4545
        %v4547 = vpop.xlane.xlu0 %4546
        %v4548 = vsel %vm450, %v4538, 0.0
        %4549 = vadd.xlane.f32.xlu0 %v4548
        %v4550 = vpop.xlane.xlu0 %4549
        %v4551 = vadd.f32 %v4541, %v4544
        %v4552 = vadd.f32 %v4551, %v4547
        %v4553 = vadd.f32 %v4552, %v4550
        %v4554 = vrot.slane %v4553, 4
        %v4555 = vadd.f32 %v4553, %v4554
        %v4556 = vrot.slane %v4555, 2
        %v4557 = vadd.f32 %v4555, %v4556
        %v4558 = vrot.slane %v4557, 1
        %v4559 = vadd.f32 %v4557, %v4558
        %v4560 = vld [vmem:[%s3861 + $0x20] sm:$0xff]
        %v4561 = vld [vmem:[%s3861 + $0x28] sm:$0xff]
        %v4562 = vld [vmem:[%s3861 + $0x30] sm:$0xff]
        %v4563 = vld [vmem:[%s3861 + $0x38] sm:$0xff]
        %v4564 = vmul.f32 %v4469, %v4560
        %v4565 = vmul.f32 %v4470, %v4561
        %v4566 = vmul.f32 %v4471, %v4562
        %v4567 = vmul.f32 %v4472, %v4563
        %v4568 = vsel %vm450, %v4564, 0.0
        %4569 = vadd.xlane.f32.xlu0 %v4568
        %v4570 = vpop.xlane.xlu0 %4569
        %v4571 = vsel %vm450, %v4565, 0.0
        %4572 = vadd.xlane.f32.xlu0 %v4571
        %v4573 = vpop.xlane.xlu0 %4572
        %v4574 = vsel %vm450, %v4566, 0.0
        %4575 = vadd.xlane.f32.xlu0 %v4574
        %v4576 = vpop.xlane.xlu0 %4575
        %v4577 = vsel %vm450, %v4567, 0.0
        %4578 = vadd.xlane.f32.xlu0 %v4577
        %v4579 = vpop.xlane.xlu0 %4578
        %v4580 = vadd.f32 %v4570, %v4573
        %v4581 = vadd.f32 %v4580, %v4576
        %v4582 = vadd.f32 %v4581, %v4579
        %v4583 = vrot.slane %v4582, 4
        %v4584 = vadd.f32 %v4582, %v4583
        %v4585 = vrot.slane %v4584, 2
        %v4586 = vadd.f32 %v4584, %v4585
        %v4587 = vrot.slane %v4586, 1
        %v4588 = vadd.f32 %v4586, %v4587
        %v4589 = vmax.f32 %v4501, %v4530
        %v4590 = vmax.f32 %v4589, %v4559
        %v4591 = vmax.f32 %v4590, %v4588
        %v4592 = vsub.f32 %v4501, %v4591
        %v4593 = vmul.f32 %v4592, 1.442695
        %v4594 = vpow.pop %v4593
        %v4595 = vsub.f32 %v4530, %v4591
        %v4596 = vmul.f32 %v4595, 1.442695
        %v4597 = vpow.pop %v4596
        %v4598 = vsub.f32 %v4559, %v4591
        %v4599 = vmul.f32 %v4598, 1.442695
        %v4600 = vpow.pop %v4599
        %v4601 = vsub.f32 %v4588, %v4591
        %v4602 = vmul.f32 %v4601, 1.442695
        %v4603 = vpow.pop %v4602
        %v4604 = vadd.f32 %v4594, %v4597
        %v4605 = vadd.f32 %v4604, %v4600
        %v4606 = vadd.f32 %v4605, %v4603
        %v4607 = vrcp.pop %v4606
        %v4608 = vmul.f32 %v4594, %v4607
        %v4609 = vld [vmem:[#allocation2 + $0x20] sm:$0xff]
        %v4610 = vld [vmem:[#allocation2 + $0x28] sm:$0xff]
        %v4611 = vunpack.c.l.bf16 %v4609
        %v4612 = vunpack.c.h.bf16 %v4609
        %v4613 = vunpack.c.l.bf16 %v4610
        %v4614 = vunpack.c.h.bf16 %v4610
        %v4615 = vmul.f32 %v4608, %v4611
        %v4616 = vmul.f32 %v4608, %v4612
        %v4617 = vmul.f32 %v4608, %v4613
        %v4618 = vmul.f32 %v4608, %v4614
        %v4619 = vmul.f32 %v4597, %v4607
        %v4620 = vld [vmem:[%s1139 + $0x20] sm:$0xff]
        %v4621 = vld [vmem:[%s1139 + $0x28] sm:$0xff]
        %v4622 = vunpack.c.l.bf16 %v4620
        %v4623 = vunpack.c.h.bf16 %v4620
        %v4624 = vunpack.c.l.bf16 %v4621
        %v4625 = vunpack.c.h.bf16 %v4621
        %v4626 = vmul.f32 %v4619, %v4622
        %v4627 = vmul.f32 %v4619, %v4623
        %v4628 = vmul.f32 %v4619, %v4624
        %v4629 = vmul.f32 %v4619, %v4625
        %v4630 = vadd.f32 %v4615, %v4626
        %v4631 = vadd.f32 %v4616, %v4627
        %v4632 = vadd.f32 %v4617, %v4628
        %v4633 = vadd.f32 %v4618, %v4629
        %v4634 = vmul.f32 %v4600, %v4607
        %v4635 = vld [vmem:[%s1837 + $0x20] sm:$0xff]
        %v4636 = vld [vmem:[%s1837 + $0x28] sm:$0xff]
        %v4637 = vunpack.c.l.bf16 %v4635
        %v4638 = vunpack.c.h.bf16 %v4635
        %v4639 = vunpack.c.l.bf16 %v4636
        %v4640 = vunpack.c.h.bf16 %v4636
        %v4641 = vmul.f32 %v4634, %v4637
        %v4642 = vmul.f32 %v4634, %v4638
        %v4643 = vmul.f32 %v4634, %v4639
        %v4644 = vmul.f32 %v4634, %v4640
        %v4645 = vadd.f32 %v4630, %v4641
        %v4646 = vadd.f32 %v4631, %v4642
        %v4647 = vadd.f32 %v4632, %v4643
        %v4648 = vadd.f32 %v4633, %v4644
        %v4649 = vmul.f32 %v4603, %v4607
        %v4650 = vld [vmem:[%s2526 + $0x20] sm:$0xff]
        %v4651 = vld [vmem:[%s2526 + $0x28] sm:$0xff]
        %v4652 = vunpack.c.l.bf16 %v4650
        %v4653 = vunpack.c.h.bf16 %v4650
        %v4654 = vunpack.c.l.bf16 %v4651
        %v4655 = vunpack.c.h.bf16 %v4651
        %v4656 = vmul.f32 %v4649, %v4652
        %v4657 = vmul.f32 %v4649, %v4653
        %v4658 = vmul.f32 %v4649, %v4654
        %v4659 = vmul.f32 %v4649, %v4655
        %v4660 = vadd.f32 %v4645, %v4656
        %v4661 = vadd.f32 %v4646, %v4657
        %v4662 = vadd.f32 %v4647, %v4658
        %v4663 = vadd.f32 %v4648, %v4659
        %s4664 = scalar_lea.vmem %s217, 96 [#allocation6]
        %4665 = vst.msk [vmem:[%s4664] sm:$0xff] %vm450, %v4660
        %4666 = vst.msk [vmem:[%s4664 + $0x8] sm:$0xff] %vm450, %v4661
        %4667 = vst.msk [vmem:[%s4664 + $0x10] sm:$0xff] %vm450, %v4662
        %4668 = vst.msk [vmem:[%s4664 + $0x18] sm:$0xff] %vm450, %v4663
        %s4669 = sand.u32 %s137, 1
        %s4670 = scalar_lea.sflag [#allocation7], %s4669
        %s4671 = sand.u32 %s137, 1
        %s4672 = smul.addr %s4671, 128
        %s4673 = scalar_lea.vmem [#allocation6], %s4672
        // Predicated region
        $region41: #{tpu_custom_call.1} parent=39 // pred_check
          %p4674 = pneg %p147
        $region42: #{tpu_custom_call.1} parent=39 // pred_check_branch
          %4676 = sbr.rel (%p4674) target = $region44
        $region43: #{tpu_custom_call.1} parent=39 // pred_region
          %s4678 = ssub.s32 2048, 2048
          %4679 = vsyncadd %s4670, %s4678
          %s4680 = smul.addr %s19, 16
          %s4681 = smul.addr %s4680, 128
          %s4682 = scalar_lea.hbm %s5, %s4681
          %s4683 = sshll.u32 %s4673, 4
          %s4684 = int_to_ptr.vmem [resolvable:$true] %s4683
          %4689 = dma.vmem_to_hbm [thread:$0]  %s4684, 2048, %s4682, %s4670, 128, 128, 8
        $region44: #{tpu_custom_call.1} parent=39 // pred_fallthru
          _
      $region40: #{tpu_custom_call.1} parent=5 // pred_fallthru
        _
      %p4690 = scmp.le.s32.totalorder 2, %s14
      // Predicated region
      $region45: #{tpu_custom_call.1} parent=5 // pred_check
        %p4691 = pneg %p4690
      $region46: #{tpu_custom_call.1} parent=5 // pred_check_branch
        %4693 = sbr.rel (%p4691) target = $region48
      $region47: #{tpu_custom_call.1} parent=5 // pred_region
        %s4694 = ssub.s32 %s14, 2
        // Predicated region
        $region49: #{tpu_custom_call.1} parent=47 // pred_check
          %p4695 = pneg %p153
        $region50: #{tpu_custom_call.1} parent=47 // pred_check_branch
          %4697 = sbr.rel (%p4695) target = $region52
        $region51: #{tpu_custom_call.1} parent=47 // pred_region
          %s4698 = sand.u32 %s138, 1
          %s4699 = scalar_lea.sflag [#allocation7], %s4698
          %s4700 = sand.u32 %s138, 1
          %s4701 = smul.addr %s4700, 128
          %s4702 = scalar_lea.vmem [#allocation6], %s4701
          %4703 = dma.done %s4699, 2048
        $region52: #{tpu_custom_call.1} parent=47 // pred_fallthru
          _
      $region48: #{tpu_custom_call.1} parent=5 // pred_fallthru
        _
    $region6: #{tpu_custom_call.1} parent=1 // loop_footer
      %s18 = sadd.s32 1, %s14
    $region7: #{tpu_custom_call.1} parent=1 // loop_footer_branch
      %13 = sbr.rel target = $region3
    $region8: #{tpu_custom_call.1} parent=1 // loop_exit
      _
    %4704 = vsyncpa [#allocation7], 1
    %s4705 = scalar_lea.sflag [#allocation7], 1
    %4706 = vsyncpa %s4705, 1

</llo_original>
